<compile_context>
chip_gen: v6e
topology: v6e:2x2x1
jax: 0.10.0
libtpu: 0.0.40
codegen_flags: <defaults>
</compile_context>

<pallas_src>
import functools

import numpy as np
import jax
import jax.numpy as jnp
from jax.experimental import pallas as pl
from jax.experimental.pallas import tpu as pltpu


class Cfg:
    # Structurally identical to the PyTorch defaults
    # (D=8, W=256, input_ch=3, input_ch_views=3, dim_aud=76, output_ch=4,
    #  skips=[4]); scaled down (W=32, dim_aud=8) for a fast self-test.
    D = 8
    W = 32
    input_ch = 3
    input_ch_views = 3
    dim_aud = 8
    output_ch = 4
    skips = (4,)


IN_PAD = 128    # packed input lanes: [pts+aud | views | zeros]
OUT_PAD = 128   # lane-dense output slab width (wrapper slices back to 3/4 cols)


def _round_up(v, m):
    return (v + m - 1) // m * m


# ----------------------------- kernel bodies -------------------------------


def _dot(a, w):
    # bf16 operands, f32 accumulation on the MXU.
    return jnp.dot(a, w, preferred_element_type=jnp.float32)


def _pts_mlp(cfg, x_in, w_in_ref, w_h_ref, b_ref):
    """8-layer pts MLP; the skip concat is expressed as a split matmul.

    torch: h = relu(pts_linears[i](h)); if i in skips: h = cat([input_pts, h])
    The concat feeding layer i+1 becomes
        x_in @ W_x + h @ W_h + b
    where W_x only has non-zero rows on the input_pts lanes of the packed input.
    Activations stay bf16 between layers (f32 accumulate + bias + ReLU, one cast).
    """
    h = jnp.maximum(_dot(x_in, w_in_ref[0]) + b_ref[0:1, :], 0.0)
    h = h.astype(jnp.bfloat16)
    in_idx = 1
    for i in range(1, cfg.D):
        acc = _dot(h, w_h_ref[i - 1]) + b_ref[i:i + 1, :]
        if (i - 1) in cfg.skips:
            acc = acc + _dot(x_in, w_in_ref[in_idx])
            in_idx += 1
        h = jnp.maximum(acc, 0.0).astype(jnp.bfloat16)
    return h


def _kernel_noview(cfg, x_ref, w_in_ref, w_h_ref, b_ref, hw_ref, hb_ref, out_ref):
    h = _pts_mlp(cfg, x_ref[...], w_in_ref, w_h_ref, b_ref)
    # output_linear folded into a 128-lane head -> one unmasked dense store.
    out = _dot(h, hw_ref[...]) + hb_ref[...]
    out_ref[...] = out.astype(out_ref.dtype)


def _kernel_view(cfg, x_ref, w_in_ref, w_h_ref, b_ref,
                 wv_h_ref, wv_in_ref, wv_ref, bv_ref,
                 hw_h_ref, hw_hv_ref, hb_ref, out_ref):
    x_in = x_ref[...]
    h = _pts_mlp(cfg, x_in, w_in_ref, w_h_ref, b_ref)

    # views_linears[0] on cat([feature(=h), input_views]) as a split matmul;
    # the views part contracts over the packed-input lanes (K = 128).
    hv = jnp.maximum(_dot(h, wv_h_ref[...]) + _dot(x_in, wv_in_ref[...])
                     + bv_ref[0:1, :], 0.0).astype(jnp.bfloat16)
    for j in range(cfg.D // 4):
        hv = jnp.maximum(_dot(hv, wv_ref[j]) + bv_ref[j + 1:j + 2, :],
                         0.0).astype(jnp.bfloat16)

    # rgb (cols 0..2, contracts over hv) and alpha (col 3, contracts over h)
    # folded into 128-lane heads -> one dense (tm, 128) store.
    out = _dot(hv, hw_hv_ref[...]) + _dot(h, hw_h_ref[...]) + hb_ref[...]
    out_ref[...] = out.astype(out_ref.dtype)


# ------------------------------ wrapper / glue ------------------------------


def facenerf_pallas(packed, x, cfg, use_viewdirs, tm=2048,
                    out_dtype=jnp.bfloat16, return_padded=False):
    n = x.shape[0]
    tm = min(tm, n)
    assert n % tm == 0 and tm % 8 == 0          # callers must pad to tm multiple
    in_all = cfg.input_ch + cfg.dim_aud
    in_tot = in_all + cfg.input_ch_views
    assert in_tot <= IN_PAD
    out_dim = 4 if use_viewdirs else cfg.output_ch
    WP = _round_up(cfg.W, 128)
    VP = _round_up(cfg.W // 2, 128)

    # One packed, lane-dense bf16 input: pts+aud in lanes [0, in_all),
    # views in lanes [in_all, in_tot), zeros above (weight rows there are 0).
    x_in = jnp.zeros((n, IN_PAD), jnp.bfloat16)
    x_in = x_in.at[:, :in_tot].set(x[:, :in_tot].astype(jnp.bfloat16))

    inputs = [x_in]
    in_specs = [pl.BlockSpec((tm, IN_PAD), lambda i: (i, 0))]

    # Parameter slabs: grid-invariant full blocks (one DMA each).
    for p in packed:
        inputs.append(p)
        in_specs.append(pl.BlockSpec(p.shape, lambda i, nd=p.ndim: (0,) * nd))

    kernel = functools.partial(
        _kernel_view if use_viewdirs else _kernel_noview, cfg)

    # Cost estimate: lets XLA schedule the wrapper pad/slice around the kernel.
    mm = IN_PAD * WP + (cfg.D - 1) * WP * WP + len(cfg.skips) * IN_PAD * WP
    if use_viewdirs:
        mm += WP * VP + IN_PAD * VP + (cfg.D // 4) * VP * VP
        mm += VP * OUT_PAD + WP * OUT_PAD
    else:
        mm += WP * OUT_PAD
    param_bytes = sum(int(np.prod(p.shape)) * np.dtype(p.dtype).itemsize
                      for p in packed)
    out_itemsize = np.dtype(out_dtype).itemsize
    cost = pl.CostEstimate(
        flops=2 * n * mm,
        transcendentals=0,
        bytes_accessed=n * IN_PAD * 2 + n * OUT_PAD * out_itemsize + param_bytes)

    # Only raise the scoped-VMEM limit when the footprint actually needs it
    # (v5e default is ~16 MiB; v6e/v7x ~32 MiB). Cap at 64 MiB (v7x physical).
    vmem_need = (2 * tm * (IN_PAD * 2 + OUT_PAD * out_itemsize)
                 + 2 * param_bytes)
    cp_kwargs = dict(dimension_semantics=("parallel",))
    if vmem_need > (12 << 20):
        cp_kwargs["vmem_limit_bytes"] = int(min(2 * vmem_need, 64 << 20))

    out = pl.pallas_call(
        kernel,
        out_shape=jax.ShapeDtypeStruct((n, OUT_PAD), out_dtype),
        grid_spec=pltpu.PrefetchScalarGridSpec(
            num_scalar_prefetch=0,
            grid=(n // tm,),
            in_specs=in_specs,
            out_specs=pl.BlockSpec((tm, OUT_PAD), lambda i: (i, 0)),
        ),
        compiler_params=pltpu.CompilerParams(**cp_kwargs),
        cost_estimate=cost,
    )(*inputs)

    if return_padded:
        return out          # downstream consumers can read the padded slab
    return out[:, :out_dim]


# --------------------------- params: init / pack ----------------------------


def init_params(key, cfg, use_viewdirs):
    """PyTorch-style (uniform +-1/sqrt(fan_in)) init at natural shapes."""
    in_all = cfg.input_ch + cfg.dim_aud
    keys = iter(jax.random.split(key, 64))

    def lin(fan_in, fan_out):
        k1, k2 = jax.random.split(next(keys))
        bound = 1.0 / np.sqrt(fan_in)
        w = jax.random.uniform(k1, (fan_in, fan_out), jnp.float32, -bound, bound)
        b = jax.random.uniform(k2, (fan_out,), jnp.float32, -bound, bound)
        return w, b

    p = {"pts": [lin(in_all, cfg.W)]}
    for i in range(1, cfg.D):
        fan_in = cfg.W + in_all if (i - 1) in cfg.skips else cfg.W
        p["pts"].append(lin(fan_in, cfg.W))
    if use_viewdirs:
        wh = cfg.W // 2
        p["views"] = [lin(cfg.W + cfg.input_ch_views, wh)]   # rows: [h | views]
        for _ in range(cfg.D // 4):
            p["views"].append(lin(wh, wh))
        p["alpha"] = lin(cfg.W, 1)
        p["rgb"] = lin(wh, 3)
        # feature_linear exists in the torch module but forward() uses feature = h.
    else:
        p["out"] = lin(cfg.W, cfg.output_ch)
    return p


def pack_params(p, cfg, use_viewdirs):
    """Pack natural params into lane-padded kernel slabs (bf16 weights)."""
    W = cfg.W
    WP = _round_up(W, 128)
    VP = _round_up(W // 2, 128)
    in_all = cfg.input_ch + cfg.dim_aud
    wh = W // 2

    def pad(w, rows, cols, r0=0):
        out = jnp.zeros((rows, cols), jnp.float32)
        return out.at[r0:r0 + w.shape[0], :w.shape[1]].set(w)

    def pad_b(b, cols):
        return jnp.zeros((cols,), jnp.float32).at[:b.shape[0]].set(b)

    # pts MLP: input-contracted slices (layer 0 + skip x-part) in one slab,
    # hidden-to-hidden slices in another, biases in a third.
    w_in_slices, w_h_slices, b_pts = [], [], []
    w0, b0 = p["pts"][0]
    w_in_slices.append(pad(w0, IN_PAD, WP))
    b_pts.append(pad_b(b0, WP))
    for i in range(1, cfg.D):
        w, b = p["pts"][i]
        if (i - 1) in cfg.skips:
            # torch Linear(in_all + W, W) on cat([input_pts, h]):
            # rows [:in_all] multiply input_pts, rows [in_all:] multiply h.
            w_in_slices.append(pad(w[:in_all], IN_PAD, WP))
            w_h_slices.append(pad(w[in_all:], WP, WP))
        else:
            w_h_slices.append(pad(w, WP, WP))
        b_pts.append(pad_b(b, WP))
    w_in = jnp.stack(w_in_slices).astype(jnp.bfloat16)    # (1+n_skips, 128, WP)
    w_h = jnp.stack(w_h_slices).astype(jnp.bfloat16)      # (D-1, WP, WP)
    b_pts = jnp.stack(b_pts)                              # (D, WP) f32

    if not use_viewdirs:
        wo, bo = p["out"]
        hw = pad(wo, WP, OUT_PAD).astype(jnp.bfloat16)
        hb = jnp.zeros((1, OUT_PAD), jnp.float32).at[0, :bo.shape[0]].set(bo)
        return (w_in, w_h, b_pts, hw, hb)

    # views branch at its native half width (VP lanes).
    wv0, bv0 = p["views"][0]
    wv_h = pad(wv0[:W], WP, VP).astype(jnp.bfloat16)                  # h part
    wv_in = pad(wv0[W:], IN_PAD, VP, r0=in_all).astype(jnp.bfloat16)  # views lanes
    bv = [pad_b(bv0, VP)]
    wv_slices = []
    for w, b in p["views"][1:]:
        wv_slices.append(pad(w, VP, VP))
        bv.append(pad_b(b, VP))
    wv = jnp.stack(wv_slices).astype(jnp.bfloat16)        # (D//4, VP, VP)
    bv = jnp.stack(bv)                                    # (1+D//4, VP) f32

    # Heads: alpha contracts over h (WP lanes), rgb over hv (VP lanes).
    wa, ba = p["alpha"]
    wr, br = p["rgb"]
    hw_h = (jnp.zeros((WP, OUT_PAD), jnp.float32)
            .at[:W, 3:4].set(wa).astype(jnp.bfloat16))
    hw_hv = (jnp.zeros((VP, OUT_PAD), jnp.float32)
             .at[:wh, 0:3].set(wr).astype(jnp.bfloat16))
    hb = (jnp.zeros((1, OUT_PAD), jnp.float32)
          .at[0, 0:3].set(br).at[0, 3].set(ba[0]))
    return (w_in, w_h, b_pts, wv_h, wv_in, wv, bv, hw_h, hw_hv, hb)


# ------------------------------ JAX reference -------------------------------


def reference(p, x, cfg, use_viewdirs):
    """Pure-JAX mirror of the PyTorch forward (bf16 matmul operands, f32 acc)."""
    def dotf(a, w):
        return jnp.dot(a.astype(jnp.bfloat16), w.astype(jnp.bfloat16),
                       preferred_element_type=jnp.float32)

    in_all = cfg.input_ch + cfg.dim_aud
    input_pts = x[:, :in_all]
    input_views = x[:, in_all:in_all + cfg.input_ch_views]

    h = input_pts
    for i, (w, b) in enumerate(p["pts"]):
        h = jnp.maximum(dotf(h, w) + b, 0.0)
        if i in cfg.skips:
            h = jnp.concatenate([input_pts, h], axis=-1)

    if use_viewdirs:
        wa, ba = p["alpha"]
        alpha = dotf(h, wa) + ba
        hv = jnp.concatenate([h, input_views], axis=-1)
        for w, b in p["views"]:
            hv = jnp.maximum(dotf(hv, w) + b, 0.0)
        wr, br = p["rgb"]
        rgb = dotf(hv, wr) + br
        return jnp.concatenate([rgb, alpha], axis=-1)
    wo, bo = p["out"]
    return dotf(h, wo) + bo


# ----------------------------------- main -----------------------------------

if __name__ == "__main__":
    cfg = Cfg()
    key = jax.random.PRNGKey(0)
    kx, kp_f, kp_t = jax.random.split(key, 3)

    N = 2048                                                # 4 grid steps at tm=512
    C = cfg.input_ch + cfg.dim_aud + cfg.input_ch_views     # 3 + 8 + 3 = 14
    x = jax.random.normal(kx, (N, C), jnp.float32)

    for use_viewdirs, kp in ((False, kp_f), (True, kp_t)):
        params = init_params(kp, cfg, use_viewdirs)
        packed = pack_params(params, cfg, use_viewdirs)
        out = facenerf_pallas(packed, x, cfg, use_viewdirs, tm=512)
        out = jax.block_until_ready(out)
        ref = reference(params, x, cfg, use_viewdirs)
        np.testing.assert_allclose(np.asarray(out.astype(jnp.float32)),
                                   np.asarray(ref), rtol=2e-2, atol=2e-2)

    print("KERNEL_OK")
</pallas_src>

<mosaic_0001>
module attributes {stable_mosaic.version = 11 : i64} {
  func.func @_kernel_noview(%arg0: i32, %arg1: memref<512x128xbf16, #tpu.memory_space<vmem>>, %arg2: memref<2x128x128xbf16, #tpu.memory_space<vmem>>, %arg3: memref<7x128x128xbf16, #tpu.memory_space<vmem>>, %arg4: memref<8x128xf32, #tpu.memory_space<vmem>>, %arg5: memref<128x128xbf16, #tpu.memory_space<vmem>>, %arg6: memref<1x128xf32, #tpu.memory_space<vmem>>, %arg7: memref<512x128xbf16, #tpu.memory_space<vmem>>) attributes {dimension_semantics = [#tpu.dimension_semantics<parallel>], iteration_bounds = array<i64: 4>, scalar_prefetch = 0 : i64, scratch_operands = 0 : i64, tpu.core_type = #tpu.core_type<tc>, window_params = [{transform_indices = @transform_0, window_bounds = array<i64: 512, 128>}, {pipeline_mode = #tpu.pipeline_mode<synchronous>, transform_indices = @transform_1, window_bounds = array<i64: 2, 128, 128>}, {pipeline_mode = #tpu.pipeline_mode<synchronous>, transform_indices = @transform_2, window_bounds = array<i64: 7, 128, 128>}, {pipeline_mode = #tpu.pipeline_mode<synchronous>, transform_indices = @transform_3, window_bounds = array<i64: 8, 128>}, {pipeline_mode = #tpu.pipeline_mode<synchronous>, transform_indices = @transform_4, window_bounds = array<i64: 128, 128>}, {pipeline_mode = #tpu.pipeline_mode<synchronous>, transform_indices = @transform_5, window_bounds = array<i64: 1, 128>}, {transform_indices = @transform_6, window_bounds = array<i64: 512, 128>}]} {
    %c0 = arith.constant 0 : index
    %c0_0 = arith.constant 0 : index
    %0 = vector.load %arg1[%c0, %c0_0] : memref<512x128xbf16, #tpu.memory_space<vmem>>, vector<512x128xbf16>
    %c0_1 = arith.constant 0 : index
    %c0_2 = arith.constant 0 : index
    %c0_3 = arith.constant 0 : index
    %1 = vector.load %arg2[%c0_1, %c0_2, %c0_3] : memref<2x128x128xbf16, #tpu.memory_space<vmem>>, vector<1x128x128xbf16>
    %2 = vector.shape_cast %1 : vector<1x128x128xbf16> to vector<128x128xbf16>
    %cst = arith.constant dense<0.000000e+00> : vector<512x128xf32>
    %3 = tpu.matmul %0, %2, %cst {dimension_numbers = #tpu.dot_dimension_numbers<[1], [0], [0], [1], [0, 0, 1, 1], [], []>} : vector<512x128xbf16>, vector<128x128xbf16>, vector<512x128xf32> -> vector<512x128xf32>
    %c0_4 = arith.constant 0 : index
    %c0_5 = arith.constant 0 : index
    %4 = vector.load %arg4[%c0_4, %c0_5] : memref<8x128xf32, #tpu.memory_space<vmem>>, vector<1x128xf32>
    %5 = vector.broadcast %4 : vector<1x128xf32> to vector<512x128xf32>
    %6 = arith.addf %3, %5 : vector<512x128xf32>
    %cst_6 = arith.constant 0.000000e+00 : f32
    %7 = vector.broadcast %cst_6 : f32 to vector<512x128xf32>
    %8 = arith.maximumf %6, %7 : vector<512x128xf32>
    %9 = arith.truncf %8 : vector<512x128xf32> to vector<512x128xbf16>
    %c0_7 = arith.constant 0 : index
    %c0_8 = arith.constant 0 : index
    %c0_9 = arith.constant 0 : index
    %10 = vector.load %arg3[%c0_7, %c0_8, %c0_9] : memref<7x128x128xbf16, #tpu.memory_space<vmem>>, vector<1x128x128xbf16>
    %11 = vector.shape_cast %10 : vector<1x128x128xbf16> to vector<128x128xbf16>
    %cst_10 = arith.constant dense<0.000000e+00> : vector<512x128xf32>
    %12 = tpu.matmul %9, %11, %cst_10 {dimension_numbers = #tpu.dot_dimension_numbers<[1], [0], [0], [1], [0, 0, 1, 1], [], []>} : vector<512x128xbf16>, vector<128x128xbf16>, vector<512x128xf32> -> vector<512x128xf32>
    %c1 = arith.constant 1 : index
    %c0_11 = arith.constant 0 : index
    %13 = vector.load %arg4[%c1, %c0_11] : memref<8x128xf32, #tpu.memory_space<vmem>>, vector<1x128xf32>
    %14 = vector.broadcast %13 : vector<1x128xf32> to vector<512x128xf32>
    %15 = arith.addf %12, %14 : vector<512x128xf32>
    %cst_12 = arith.constant 0.000000e+00 : f32
    %16 = vector.broadcast %cst_12 : f32 to vector<512x128xf32>
    %17 = arith.maximumf %15, %16 : vector<512x128xf32>
    %18 = arith.truncf %17 : vector<512x128xf32> to vector<512x128xbf16>
    %c1_13 = arith.constant 1 : index
    %c0_14 = arith.constant 0 : index
    %c0_15 = arith.constant 0 : index
    %19 = vector.load %arg3[%c1_13, %c0_14, %c0_15] : memref<7x128x128xbf16, #tpu.memory_space<vmem>>, vector<1x128x128xbf16>
    %20 = vector.shape_cast %19 : vector<1x128x128xbf16> to vector<128x128xbf16>
    %cst_16 = arith.constant dense<0.000000e+00> : vector<512x128xf32>
    %21 = tpu.matmul %18, %20, %cst_16 {dimension_numbers = #tpu.dot_dimension_numbers<[1], [0], [0], [1], [0, 0, 1, 1], [], []>} : vector<512x128xbf16>, vector<128x128xbf16>, vector<512x128xf32> -> vector<512x128xf32>
    %c2 = arith.constant 2 : index
    %c0_17 = arith.constant 0 : index
    %22 = vector.load %arg4[%c2, %c0_17] : memref<8x128xf32, #tpu.memory_space<vmem>>, vector<1x128xf32>
    %23 = vector.broadcast %22 : vector<1x128xf32> to vector<512x128xf32>
    %24 = arith.addf %21, %23 : vector<512x128xf32>
    %cst_18 = arith.constant 0.000000e+00 : f32
    %25 = vector.broadcast %cst_18 : f32 to vector<512x128xf32>
    %26 = arith.maximumf %24, %25 : vector<512x128xf32>
    %27 = arith.truncf %26 : vector<512x128xf32> to vector<512x128xbf16>
    %c2_19 = arith.constant 2 : index
    %c0_20 = arith.constant 0 : index
    %c0_21 = arith.constant 0 : index
    %28 = vector.load %arg3[%c2_19, %c0_20, %c0_21] : memref<7x128x128xbf16, #tpu.memory_space<vmem>>, vector<1x128x128xbf16>
    %29 = vector.shape_cast %28 : vector<1x128x128xbf16> to vector<128x128xbf16>
    %cst_22 = arith.constant dense<0.000000e+00> : vector<512x128xf32>
    %30 = tpu.matmul %27, %29, %cst_22 {dimension_numbers = #tpu.dot_dimension_numbers<[1], [0], [0], [1], [0, 0, 1, 1], [], []>} : vector<512x128xbf16>, vector<128x128xbf16>, vector<512x128xf32> -> vector<512x128xf32>
    %c3 = arith.constant 3 : index
    %c0_23 = arith.constant 0 : index
    %31 = vector.load %arg4[%c3, %c0_23] : memref<8x128xf32, #tpu.memory_space<vmem>>, vector<1x128xf32>
    %32 = vector.broadcast %31 : vector<1x128xf32> to vector<512x128xf32>
    %33 = arith.addf %30, %32 : vector<512x128xf32>
    %cst_24 = arith.constant 0.000000e+00 : f32
    %34 = vector.broadcast %cst_24 : f32 to vector<512x128xf32>
    %35 = arith.maximumf %33, %34 : vector<512x128xf32>
    %36 = arith.truncf %35 : vector<512x128xf32> to vector<512x128xbf16>
    %c3_25 = arith.constant 3 : index
    %c0_26 = arith.constant 0 : index
    %c0_27 = arith.constant 0 : index
    %37 = vector.load %arg3[%c3_25, %c0_26, %c0_27] : memref<7x128x128xbf16, #tpu.memory_space<vmem>>, vector<1x128x128xbf16>
    %38 = vector.shape_cast %37 : vector<1x128x128xbf16> to vector<128x128xbf16>
    %cst_28 = arith.constant dense<0.000000e+00> : vector<512x128xf32>
    %39 = tpu.matmul %36, %38, %cst_28 {dimension_numbers = #tpu.dot_dimension_numbers<[1], [0], [0], [1], [0, 0, 1, 1], [], []>} : vector<512x128xbf16>, vector<128x128xbf16>, vector<512x128xf32> -> vector<512x128xf32>
    %c4 = arith.constant 4 : index
    %c0_29 = arith.constant 0 : index
    %40 = vector.load %arg4[%c4, %c0_29] : memref<8x128xf32, #tpu.memory_space<vmem>>, vector<1x128xf32>
    %41 = vector.broadcast %40 : vector<1x128xf32> to vector<512x128xf32>
    %42 = arith.addf %39, %41 : vector<512x128xf32>
    %cst_30 = arith.constant 0.000000e+00 : f32
    %43 = vector.broadcast %cst_30 : f32 to vector<512x128xf32>
    %44 = arith.maximumf %42, %43 : vector<512x128xf32>
    %45 = arith.truncf %44 : vector<512x128xf32> to vector<512x128xbf16>
    %c4_31 = arith.constant 4 : index
    %c0_32 = arith.constant 0 : index
    %c0_33 = arith.constant 0 : index
    %46 = vector.load %arg3[%c4_31, %c0_32, %c0_33] : memref<7x128x128xbf16, #tpu.memory_space<vmem>>, vector<1x128x128xbf16>
    %47 = vector.shape_cast %46 : vector<1x128x128xbf16> to vector<128x128xbf16>
    %cst_34 = arith.constant dense<0.000000e+00> : vector<512x128xf32>
    %48 = tpu.matmul %45, %47, %cst_34 {dimension_numbers = #tpu.dot_dimension_numbers<[1], [0], [0], [1], [0, 0, 1, 1], [], []>} : vector<512x128xbf16>, vector<128x128xbf16>, vector<512x128xf32> -> vector<512x128xf32>
    %c5 = arith.constant 5 : index
    %c0_35 = arith.constant 0 : index
    %49 = vector.load %arg4[%c5, %c0_35] : memref<8x128xf32, #tpu.memory_space<vmem>>, vector<1x128xf32>
    %50 = vector.broadcast %49 : vector<1x128xf32> to vector<512x128xf32>
    %51 = arith.addf %48, %50 : vector<512x128xf32>
    %c1_36 = arith.constant 1 : index
    %c0_37 = arith.constant 0 : index
    %c0_38 = arith.constant 0 : index
    %52 = vector.load %arg2[%c1_36, %c0_37, %c0_38] : memref<2x128x128xbf16, #tpu.memory_space<vmem>>, vector<1x128x128xbf16>
    %53 = vector.shape_cast %52 : vector<1x128x128xbf16> to vector<128x128xbf16>
    %cst_39 = arith.constant dense<0.000000e+00> : vector<512x128xf32>
    %54 = tpu.matmul %0, %53, %cst_39 {dimension_numbers = #tpu.dot_dimension_numbers<[1], [0], [0], [1], [0, 0, 1, 1], [], []>} : vector<512x128xbf16>, vector<128x128xbf16>, vector<512x128xf32> -> vector<512x128xf32>
    %55 = arith.addf %51, %54 : vector<512x128xf32>
    %cst_40 = arith.constant 0.000000e+00 : f32
    %56 = vector.broadcast %cst_40 : f32 to vector<512x128xf32>
    %57 = arith.maximumf %55, %56 : vector<512x128xf32>
    %58 = arith.truncf %57 : vector<512x128xf32> to vector<512x128xbf16>
    %c5_41 = arith.constant 5 : index
    %c0_42 = arith.constant 0 : index
    %c0_43 = arith.constant 0 : index
    %59 = vector.load %arg3[%c5_41, %c0_42, %c0_43] : memref<7x128x128xbf16, #tpu.memory_space<vmem>>, vector<1x128x128xbf16>
    %60 = vector.shape_cast %59 : vector<1x128x128xbf16> to vector<128x128xbf16>
    %cst_44 = arith.constant dense<0.000000e+00> : vector<512x128xf32>
    %61 = tpu.matmul %58, %60, %cst_44 {dimension_numbers = #tpu.dot_dimension_numbers<[1], [0], [0], [1], [0, 0, 1, 1], [], []>} : vector<512x128xbf16>, vector<128x128xbf16>, vector<512x128xf32> -> vector<512x128xf32>
    %c6 = arith.constant 6 : index
    %c0_45 = arith.constant 0 : index
    %62 = vector.load %arg4[%c6, %c0_45] : memref<8x128xf32, #tpu.memory_space<vmem>>, vector<1x128xf32>
    %63 = vector.broadcast %62 : vector<1x128xf32> to vector<512x128xf32>
    %64 = arith.addf %61, %63 : vector<512x128xf32>
    %cst_46 = arith.constant 0.000000e+00 : f32
    %65 = vector.broadcast %cst_46 : f32 to vector<512x128xf32>
    %66 = arith.maximumf %64, %65 : vector<512x128xf32>
    %67 = arith.truncf %66 : vector<512x128xf32> to vector<512x128xbf16>
    %c6_47 = arith.constant 6 : index
    %c0_48 = arith.constant 0 : index
    %c0_49 = arith.constant 0 : index
    %68 = vector.load %arg3[%c6_47, %c0_48, %c0_49] : memref<7x128x128xbf16, #tpu.memory_space<vmem>>, vector<1x128x128xbf16>
    %69 = vector.shape_cast %68 : vector<1x128x128xbf16> to vector<128x128xbf16>
    %cst_50 = arith.constant dense<0.000000e+00> : vector<512x128xf32>
    %70 = tpu.matmul %67, %69, %cst_50 {dimension_numbers = #tpu.dot_dimension_numbers<[1], [0], [0], [1], [0, 0, 1, 1], [], []>} : vector<512x128xbf16>, vector<128x128xbf16>, vector<512x128xf32> -> vector<512x128xf32>
    %c7 = arith.constant 7 : index
    %c0_51 = arith.constant 0 : index
    %71 = vector.load %arg4[%c7, %c0_51] : memref<8x128xf32, #tpu.memory_space<vmem>>, vector<1x128xf32>
    %72 = vector.broadcast %71 : vector<1x128xf32> to vector<512x128xf32>
    %73 = arith.addf %70, %72 : vector<512x128xf32>
    %cst_52 = arith.constant 0.000000e+00 : f32
    %74 = vector.broadcast %cst_52 : f32 to vector<512x128xf32>
    %75 = arith.maximumf %73, %74 : vector<512x128xf32>
    %76 = arith.truncf %75 : vector<512x128xf32> to vector<512x128xbf16>
    %c0_53 = arith.constant 0 : index
    %c0_54 = arith.constant 0 : index
    %77 = vector.load %arg5[%c0_53, %c0_54] : memref<128x128xbf16, #tpu.memory_space<vmem>>, vector<128x128xbf16>
    %cst_55 = arith.constant dense<0.000000e+00> : vector<512x128xf32>
    %78 = tpu.matmul %76, %77, %cst_55 {dimension_numbers = #tpu.dot_dimension_numbers<[1], [0], [0], [1], [0, 0, 1, 1], [], []>} : vector<512x128xbf16>, vector<128x128xbf16>, vector<512x128xf32> -> vector<512x128xf32>
    %c0_56 = arith.constant 0 : index
    %c0_57 = arith.constant 0 : index
    %79 = vector.load %arg6[%c0_56, %c0_57] : memref<1x128xf32, #tpu.memory_space<vmem>>, vector<1x128xf32>
    %80 = vector.broadcast %79 : vector<1x128xf32> to vector<512x128xf32>
    %81 = arith.addf %78, %80 : vector<512x128xf32>
    %82 = arith.truncf %81 : vector<512x128xf32> to vector<512x128xbf16>
    %c0_58 = arith.constant 0 : index
    %c0_59 = arith.constant 0 : index
    %83 = vector.load %arg7[%c0_58, %c0_59] : memref<512x128xbf16, #tpu.memory_space<vmem>>, vector<512x128xbf16>
    tpu.vector_store %arg7[%c0_58, %c0_59], %82 {strides = array<i32>} : memref<512x128xbf16, #tpu.memory_space<vmem>>, vector<512x128xbf16>,
    return
  }
  func.func @transform_0(%arg0: i32) -> (i32, i32) {
    %c0_i32 = arith.constant 0 : i32
    %c0_i32_0 = arith.constant 0 : i32
    return %arg0, %c0_i32 : i32, i32
  }
  func.func @transform_1(%arg0: i32) -> (i32, i32, i32) {
    %c0_i32 = arith.constant 0 : i32
    %c0_i32_0 = arith.constant 0 : i32
    %c0_i32_1 = arith.constant 0 : i32
    %c0_i32_2 = arith.constant 0 : i32
    return %c0_i32, %c0_i32_0, %c0_i32_1 : i32, i32, i32
  }
  func.func @transform_2(%arg0: i32) -> (i32, i32, i32) {
    %c0_i32 = arith.constant 0 : i32
    %c0_i32_0 = arith.constant 0 : i32
    %c0_i32_1 = arith.constant 0 : i32
    %c0_i32_2 = arith.constant 0 : i32
    return %c0_i32, %c0_i32_0, %c0_i32_1 : i32, i32, i32
  }
  func.func @transform_3(%arg0: i32) -> (i32, i32) {
    %c0_i32 = arith.constant 0 : i32
    %c0_i32_0 = arith.constant 0 : i32
    %c0_i32_1 = arith.constant 0 : i32
    return %c0_i32, %c0_i32_0 : i32, i32
  }
  func.func @transform_4(%arg0: i32) -> (i32, i32) {
    %c0_i32 = arith.constant 0 : i32
    %c0_i32_0 = arith.constant 0 : i32
    %c0_i32_1 = arith.constant 0 : i32
    return %c0_i32, %c0_i32_0 : i32, i32
  }
  func.func @transform_5(%arg0: i32) -> (i32, i32) {
    %c0_i32 = arith.constant 0 : i32
    %c0_i32_0 = arith.constant 0 : i32
    %c0_i32_1 = arith.constant 0 : i32
    return %c0_i32, %c0_i32_0 : i32, i32
  }
  func.func @transform_6(%arg0: i32) -> (i32, i32) {
    %c0_i32 = arith.constant 0 : i32
    %c0_i32_0 = arith.constant 0 : i32
    return %arg0, %c0_i32 : i32, i32
  }
}

</mosaic_0001>

<llo_original>
// kernel: tpu_custom_call.1
$region0: #{tpu_custom_call.1}
  #allocation0 [shape = 'u32[]', space=smem, size = 0x4, offset = 0x4, fixed_abs, tag = 'smem constant byte address 0x4 - core index']
  #allocation1 [shape = 'u32[144,128]{1,0:T(1,128)}', space=vmem, size = 0x12000, scoped, tag = 'internal scratch']
  %s0 = inlined_call_operand.hbm [shape: bf16[2048,128], index: 0, kind: input, shape index: {}]
  %s1 = inlined_call_operand.hbm [shape: bf16[2,128,128], index: 1, kind: input, shape index: {}]
  %s2 = inlined_call_operand.hbm [shape: bf16[7,128,128], index: 2, kind: input, shape index: {}]
  %s3 = inlined_call_operand.hbm [shape: f32[8,128], index: 3, kind: input, shape index: {}]
  %s4 = inlined_call_operand.hbm [shape: bf16[128,128], index: 4, kind: input, shape index: {}]
  %s5 = inlined_call_operand.vmem [shape: f32[1,128], index: 5, kind: input, shape index: {}]
  %s6 = inlined_call_operand.hbm [shape: bf16[2048,128], index: 6, kind: output, shape index: {}]
  %s7 = sld [smem:[#allocation0]]
  $region77: #{tpu_custom_call.1} parent=0
    _
  %s9 = ssub.s32 1, %s7
  %s10 = scalar_select 0, %s9, %s7
  $region1: #{tpu_custom_call.1} parent=0
    #allocation2 [shape = 'u8[262144]{0}', space=vmem, size = 0x40000, scoped, tag = 'input window, operand 0']
    #allocation3 [shape = 's32[2]{0}', space=sflag, size = 0x8, scoped, tag = 'scoped memory for tpu_custom_call.1']
    #allocation4 [shape = 's32[2]{0}', space=sflag, size = 0x8, scoped, tag = 'scoped memory for tpu_custom_call.1']
    #allocation5 [shape = 'u8[65536]{0}', space=vmem, size = 0x10000, scoped, tag = 'input window, operand 1, single buffered']
    #allocation6 [shape = 's32[1]{0}', space=sflag, size = 0x4, scoped, tag = 'scoped memory for tpu_custom_call.1']
    #allocation7 [shape = 'u8[229376]{0}', space=vmem, size = 0x38000, scoped, tag = 'input window, operand 2, single buffered']
    #allocation8 [shape = 'u8[4096]{0}', space=vmem, size = 0x1000, scoped, tag = 'input window, operand 3, single buffered']
    #allocation9 [shape = 's32[1]{0}', space=sflag, size = 0x4, scoped, tag = 'scoped memory for tpu_custom_call.1']
    #allocation10 [shape = 'u8[32768]{0}', space=vmem, size = 0x8000, scoped, tag = 'input window, operand 4, single buffered']
    #allocation11 [shape = 'u8[262144]{0}', space=vmem, size = 0x40000, scoped, tag = 'output window, operand 0']
    %11 = vsyncpa [#allocation3], 0
    %s12 = scalar_lea.sflag [#allocation3], 1
    %13 = vsyncpa %s12, 0
    %14 = vsyncpa [#allocation6], 0
    %15 = vsyncpa [#allocation9], 0
    %16 = vsyncpa [#allocation4], 0
    %s17 = scalar_lea.sflag [#allocation4], 1
    %18 = vsyncpa %s17, 0
    loop: start=0, step=1, limit=6
    $region2: #{tpu_custom_call.1} parent=1 // loop_pre_header
      _
    $region3: #{tpu_custom_call.1} parent=1 // loop_header
      %s20 = sphi 0, %s24
      %p21 = scmp.ge.s32.totalorder %s20, 6
      %s30 = sphi 0, %s32
      %s33 = sphi 0, %s30
      %s34 = sphi 0, %s33
      %s50 = sphi 0, %s34
      %s54 = sphi 0, %s54
      %s56 = sphi 0, %s54
      %s57 = sphi 0, %s56
      %s71 = sphi 0, %s57
      %s75 = sphi 0, %s75
      %s77 = sphi 0, %s75
      %s78 = sphi 0, %s77
      %s92 = sphi 0, %s78
      %s96 = sphi 0, %s96
      %s98 = sphi 0, %s96
      %s99 = sphi 0, %s98
      %s113 = sphi 0, %s99
      %s117 = sphi 0, %s117
      %s119 = sphi 0, %s117
      %s120 = sphi 0, %s119
      %s134 = sphi 0, %s120
      %s138 = sphi 0, %s138
      %s140 = sphi 0, %s138
      %s141 = sphi 0, %s140
      %s155 = sphi 0, %s141
      %s161 = sphi 0, %s163
      %s164 = sphi 0, %s161
      %s165 = sphi 0, %s164
      %s181 = sphi 0, %s165
    $region4: #{tpu_custom_call.1} parent=1 // loop_header_branch
      %23 = sbr.rel (%p21) target = $region8
    $region5: #{tpu_custom_call.1} parent=1 // loop_body
      %s25 = ssub.s32 %s20, 1
      %s26 = ssub.s32 %s20, 2
      %s27 = sadd.s32 %s20, 1
      %s28 = ssub.s32 %s20, %s27
      %p29 = scmp.eq.s32.totalorder %s28, 0
      %s31 = sadd.s32 %s30, 1
      %s32 = scalar_select %p29, %s30, %s31
      %p35 = pneg %p29
      %p36 = scmp.eq.s32.totalorder %s20, 3
      %p37 = por %p35, %p36
      %p38 = scmp.ne.s32.totalorder %s30, %s33
      %p39 = scmp.eq.s32.totalorder %s20, 0
      %p40 = por %p38, %p39
      %p41 = scmp.ne.s32.totalorder %s30, %s33
      %p42 = scmp.eq.s32.totalorder %s25, 3
      %p43 = por %p41, %p42
      %p44 = scmp.ne.s32.totalorder %s33, %s34
      %p45 = scmp.eq.s32.totalorder %s25, 0
      %p46 = por %p44, %p45
      %p47 = scmp.ne.s32.totalorder %s33, %s34
      %p48 = scmp.eq.s32.totalorder %s26, 3
      %p49 = por %p47, %p48
      %p51 = scmp.ne.s32.totalorder %s34, %s50
      %p52 = scmp.eq.s32.totalorder %s26, 0
      %p53 = por %p51, %p52
      %s55 = sadd.s32 %s54, 1
      %p58 = scmp.eq.s32.totalorder %s20, 3
      %p59 = scmp.ne.s32.totalorder %s54, %s56
      %p60 = scmp.eq.s32.totalorder %s20, 0
      %p61 = por %p59, %p60
      %p62 = scmp.ne.s32.totalorder %s54, %s56
      %p63 = scmp.eq.s32.totalorder %s25, 3
      %p64 = por %p62, %p63
      %p65 = scmp.ne.s32.totalorder %s56, %s57
      %p66 = scmp.eq.s32.totalorder %s25, 0
      %p67 = por %p65, %p66
      %p68 = scmp.ne.s32.totalorder %s56, %s57
      %p69 = scmp.eq.s32.totalorder %s26, 3
      %p70 = por %p68, %p69
      %p72 = scmp.ne.s32.totalorder %s57, %s71
      %p73 = scmp.eq.s32.totalorder %s26, 0
      %p74 = por %p72, %p73
      %s76 = sadd.s32 %s75, 1
      %p79 = scmp.eq.s32.totalorder %s20, 3
      %p80 = scmp.ne.s32.totalorder %s75, %s77
      %p81 = scmp.eq.s32.totalorder %s20, 0
      %p82 = por %p80, %p81
      %p83 = scmp.ne.s32.totalorder %s75, %s77
      %p84 = scmp.eq.s32.totalorder %s25, 3
      %p85 = por %p83, %p84
      %p86 = scmp.ne.s32.totalorder %s77, %s78
      %p87 = scmp.eq.s32.totalorder %s25, 0
      %p88 = por %p86, %p87
      %p89 = scmp.ne.s32.totalorder %s77, %s78
      %p90 = scmp.eq.s32.totalorder %s26, 3
      %p91 = por %p89, %p90
      %p93 = scmp.ne.s32.totalorder %s78, %s92
      %p94 = scmp.eq.s32.totalorder %s26, 0
      %p95 = por %p93, %p94
      %s97 = sadd.s32 %s96, 1
      %p100 = scmp.eq.s32.totalorder %s20, 3
      %p101 = scmp.ne.s32.totalorder %s96, %s98
      %p102 = scmp.eq.s32.totalorder %s20, 0
      %p103 = por %p101, %p102
      %p104 = scmp.ne.s32.totalorder %s96, %s98
      %p105 = scmp.eq.s32.totalorder %s25, 3
      %p106 = por %p104, %p105
      %p107 = scmp.ne.s32.totalorder %s98, %s99
      %p108 = scmp.eq.s32.totalorder %s25, 0
      %p109 = por %p107, %p108
      %p110 = scmp.ne.s32.totalorder %s98, %s99
      %p111 = scmp.eq.s32.totalorder %s26, 3
      %p112 = por %p110, %p111
      %p114 = scmp.ne.s32.totalorder %s99, %s113
      %p115 = scmp.eq.s32.totalorder %s26, 0
      %p116 = por %p114, %p115
      %s118 = sadd.s32 %s117, 1
      %p121 = scmp.eq.s32.totalorder %s20, 3
      %p122 = scmp.ne.s32.totalorder %s117, %s119
      %p123 = scmp.eq.s32.totalorder %s20, 0
      %p124 = por %p122, %p123
      %p125 = scmp.ne.s32.totalorder %s117, %s119
      %p126 = scmp.eq.s32.totalorder %s25, 3
      %p127 = por %p125, %p126
      %p128 = scmp.ne.s32.totalorder %s119, %s120
      %p129 = scmp.eq.s32.totalorder %s25, 0
      %p130 = por %p128, %p129
      %p131 = scmp.ne.s32.totalorder %s119, %s120
      %p132 = scmp.eq.s32.totalorder %s26, 3
      %p133 = por %p131, %p132
      %p135 = scmp.ne.s32.totalorder %s120, %s134
      %p136 = scmp.eq.s32.totalorder %s26, 0
      %p137 = por %p135, %p136
      %s139 = sadd.s32 %s138, 1
      %p142 = scmp.eq.s32.totalorder %s20, 3
      %p143 = scmp.ne.s32.totalorder %s138, %s140
      %p144 = scmp.eq.s32.totalorder %s20, 0
      %p145 = por %p143, %p144
      %p146 = scmp.ne.s32.totalorder %s138, %s140
      %p147 = scmp.eq.s32.totalorder %s25, 3
      %p148 = por %p146, %p147
      %p149 = scmp.ne.s32.totalorder %s140, %s141
      %p150 = scmp.eq.s32.totalorder %s25, 0
      %p151 = por %p149, %p150
      %p152 = scmp.ne.s32.totalorder %s140, %s141
      %p153 = scmp.eq.s32.totalorder %s26, 3
      %p154 = por %p152, %p153
      %p156 = scmp.ne.s32.totalorder %s141, %s155
      %p157 = scmp.eq.s32.totalorder %s26, 0
      %p158 = por %p156, %p157
      %s159 = ssub.s32 %s20, %s27
      %p160 = scmp.eq.s32.totalorder %s159, 0
      %s162 = sadd.s32 %s161, 1
      %s163 = scalar_select %p160, %s161, %s162
      %p166 = pneg %p160
      %p167 = scmp.eq.s32.totalorder %s20, 3
      %p168 = por %p166, %p167
      %p169 = scmp.ne.s32.totalorder %s161, %s164
      %p170 = scmp.eq.s32.totalorder %s20, 0
      %p171 = por %p169, %p170
      %p172 = scmp.ne.s32.totalorder %s161, %s164
      %p173 = scmp.eq.s32.totalorder %s25, 3
      %p174 = por %p172, %p173
      %p175 = scmp.ne.s32.totalorder %s164, %s165
      %p176 = scmp.eq.s32.totalorder %s25, 0
      %p177 = por %p175, %p176
      %p178 = scmp.ne.s32.totalorder %s164, %s165
      %p179 = scmp.eq.s32.totalorder %s26, 3
      %p180 = por %p178, %p179
      %p182 = scmp.ne.s32.totalorder %s165, %s181
      %p183 = scmp.eq.s32.totalorder %s26, 0
      %p184 = por %p182, %p183
      %p185 = scmp.le.s32.totalorder 1, %s20
      %p186 = scmp.lt.s32.totalorder %s20, 5
      %p187 = pnand %p185, %p186
      %p188 = pneg %p187
      // Predicated region
      $region9: #{tpu_custom_call.1} parent=5 // pred_check
        _
      $region10: #{tpu_custom_call.1} parent=5 // pred_check_branch
        %190 = sbr.rel (%p187) target = $region12
      $region11: #{tpu_custom_call.1} parent=5 // pred_region
        %s191 = ssub.s32 %s20, 1
        // Predicated region
        $region13: #{tpu_custom_call.1} parent=11 // pred_check
          %p192 = pneg %p67
        $region14: #{tpu_custom_call.1} parent=11 // pred_check_branch
          %194 = sbr.rel (%p192) target = $region16
        $region15: #{tpu_custom_call.1} parent=11 // pred_region
          %s196 = ssub.s32 2048, 2048
          %197 = vsyncadd [#allocation6], %s196
          %s198 = sshll.u32 [#allocation5], 4
          %s199 = int_to_ptr.vmem [resolvable:$true] %s198
          %204 = dma.hbm_to_vmem [thread:$0]  %s1, 2048, %s199, [#allocation6], 64, 64, 4
        $region16: #{tpu_custom_call.1} parent=11 // pred_fallthru
          _
        // Predicated region
        $region17: #{tpu_custom_call.1} parent=11 // pred_check
          %p205 = pneg %p88
        $region18: #{tpu_custom_call.1} parent=11 // pred_check_branch
          %207 = sbr.rel (%p205) target = $region20
        $region19: #{tpu_custom_call.1} parent=11 // pred_region
          %s209 = ssub.s32 7168, 7168
          %210 = vsyncadd [#allocation6], %s209
          %s211 = sshll.u32 [#allocation7], 4
          %s212 = int_to_ptr.vmem [resolvable:$true] %s211
          %217 = dma.hbm_to_vmem [thread:$0]  %s2, 7168, %s212, [#allocation6], 64, 64, 4
        $region20: #{tpu_custom_call.1} parent=11 // pred_fallthru
          _
        // Predicated region
        $region21: #{tpu_custom_call.1} parent=11 // pred_check
          %p218 = pneg %p109
        $region22: #{tpu_custom_call.1} parent=11 // pred_check_branch
          %220 = sbr.rel (%p218) target = $region24
        $region23: #{tpu_custom_call.1} parent=11 // pred_region
          %s222 = ssub.s32 128, 128
          %223 = vsyncadd [#allocation9], %s222
          %s225 = sshll.u32 [#allocation8], 4
          %s226 = int_to_ptr.vmem [resolvable:$true] %s225
          %228 = dma.hbm_to_vmem [thread:$0]  %s3, 128, %s226, [#allocation9]
        $region24: #{tpu_custom_call.1} parent=11 // pred_fallthru
          _
        // Predicated region
        $region25: #{tpu_custom_call.1} parent=11 // pred_check
          %p229 = pneg %p130
        $region26: #{tpu_custom_call.1} parent=11 // pred_check_branch
          %231 = sbr.rel (%p229) target = $region28
        $region27: #{tpu_custom_call.1} parent=11 // pred_region
          %s233 = ssub.s32 1024, 1024
          %234 = vsyncadd [#allocation9], %s233
          %s235 = sshll.u32 [#allocation10], 4
          %s236 = int_to_ptr.vmem [resolvable:$true] %s235
          %241 = dma.hbm_to_vmem [thread:$0]  %s4, 1024, %s236, [#allocation9], 64, 64, 4
        $region28: #{tpu_custom_call.1} parent=11 // pred_fallthru
          _
        // Predicated region
        $region29: #{tpu_custom_call.1} parent=11 // pred_check
          %p242 = pneg %p151
        $region30: #{tpu_custom_call.1} parent=11 // pred_check_branch
          %244 = sbr.rel (%p242) target = $region32
        $region31: #{tpu_custom_call.1} parent=11 // pred_region
          _
        $region32: #{tpu_custom_call.1} parent=11 // pred_fallthru
          _
      $region12: #{tpu_custom_call.1} parent=5 // pred_fallthru
        _
      %p245 = scmp.lt.s32.totalorder %s20, 4
      // Predicated region
      $region33: #{tpu_custom_call.1} parent=5 // pred_check
        %p246 = pneg %p245
      $region34: #{tpu_custom_call.1} parent=5 // pred_check_branch
        %248 = sbr.rel (%p246) target = $region36
      $region35: #{tpu_custom_call.1} parent=5 // pred_region
        // Predicated region
        $region37: #{tpu_custom_call.1} parent=35 // pred_check
          %p249 = pneg %p40
        $region38: #{tpu_custom_call.1} parent=35 // pred_check_branch
          %251 = sbr.rel (%p249) target = $region40
        $region39: #{tpu_custom_call.1} parent=35 // pred_region
          %s252 = sand.u32 %s30, 1
          %s253 = scalar_lea.sflag [#allocation3], %s252
          %s254 = sand.u32 %s30, 1
          %s255 = smul.addr %s254, 256
          %s256 = scalar_lea.vmem [#allocation2], %s255
          %s257 = smul.u32 64, %s20
          %s259 = ssub.s32 4096, 4096
          %260 = vsyncadd %s253, %s259
          %s261 = smul.addr %s257, 64
          %s262 = scalar_lea.hbm %s0, %s261
          %s263 = sshll.u32 %s256, 4
          %s264 = int_to_ptr.vmem [resolvable:$true] %s263
          %269 = dma.hbm_to_vmem [thread:$0]  %s262, 4096, %s264, %s253, 64, 64, 4
        $region40: #{tpu_custom_call.1} parent=35 // pred_fallthru
          _
      $region36: #{tpu_custom_call.1} parent=5 // pred_fallthru
        _
      %p270 = scmp.le.s32.totalorder 1, %s20
      %p271 = scmp.lt.s32.totalorder %s20, 5
      %p272 = pnand %p270, %p271
      %p273 = pneg %p272
      // Predicated region
      $region41: #{tpu_custom_call.1} parent=5 // pred_check
        _
      $region42: #{tpu_custom_call.1} parent=5 // pred_check_branch
        %275 = sbr.rel (%p272) target = $region44
      $region43: #{tpu_custom_call.1} parent=5 // pred_region
        %s276 = ssub.s32 %s20, 1
        %s277 = sand.u32 %s33, 1
        %s278 = scalar_lea.sflag [#allocation3], %s277
        %s279 = sand.u32 %s33, 1
        %s280 = smul.addr %s279, 256
        %s281 = scalar_lea.vmem [#allocation2], %s280
        // Predicated region
        $region45: #{tpu_custom_call.1} parent=43 // pred_check
          %p282 = pneg %p46
        $region46: #{tpu_custom_call.1} parent=43 // pred_check_branch
          %284 = sbr.rel (%p282) target = $region48
        $region47: #{tpu_custom_call.1} parent=43 // pred_region
          %285 = dma.done %s278, 4096
        $region48: #{tpu_custom_call.1} parent=43 // pred_fallthru
          _
        // Predicated region
        $region49: #{tpu_custom_call.1} parent=43 // pred_check
          %p286 = pneg %p67
        $region50: #{tpu_custom_call.1} parent=43 // pred_check_branch
          %288 = sbr.rel (%p286) target = $region52
        $region51: #{tpu_custom_call.1} parent=43 // pred_region
          %289 = dma.done [#allocation6], 2048
        $region52: #{tpu_custom_call.1} parent=43 // pred_fallthru
          _
        // Predicated region
        $region53: #{tpu_custom_call.1} parent=43 // pred_check
          %p290 = pneg %p88
        $region54: #{tpu_custom_call.1} parent=43 // pred_check_branch
          %292 = sbr.rel (%p290) target = $region56
        $region55: #{tpu_custom_call.1} parent=43 // pred_region
          %293 = dma.done [#allocation6], 7168
        $region56: #{tpu_custom_call.1} parent=43 // pred_fallthru
          _
        // Predicated region
        $region57: #{tpu_custom_call.1} parent=43 // pred_check
          %p294 = pneg %p109
        $region58: #{tpu_custom_call.1} parent=43 // pred_check_branch
          %296 = sbr.rel (%p294) target = $region60
        $region59: #{tpu_custom_call.1} parent=43 // pred_region
          %297 = dma.done [#allocation9], 128
        $region60: #{tpu_custom_call.1} parent=43 // pred_fallthru
          _
        // Predicated region
        $region61: #{tpu_custom_call.1} parent=43 // pred_check
          %p298 = pneg %p130
        $region62: #{tpu_custom_call.1} parent=43 // pred_check_branch
          %300 = sbr.rel (%p298) target = $region64
        $region63: #{tpu_custom_call.1} parent=43 // pred_region
          %301 = dma.done [#allocation9], 1024
        $region64: #{tpu_custom_call.1} parent=43 // pred_fallthru
          _
        %s302 = sand.u32 %s33, 1
        %s303 = scalar_lea.sflag [#allocation3], %s302
        %s304 = sand.u32 %s33, 1
        %s305 = smul.addr %s304, 256
        %s306 = scalar_lea.vmem [#allocation2], %s305
        %p307 = pneg %p46
        %p308 = pneg %p43
        %p309 = pneg %p67
        %p310 = pneg %p64
        %p311 = pneg %p88
        %p312 = pneg %p85
        %p313 = pneg %p109
        %p314 = pneg %p106
        %p315 = pneg %p130
        %p316 = pneg %p127
        %p317 = pneg %p151
        %p318 = pneg %p148
        %p319 = pneg %p177
        %p320 = pneg %p174
        %s321 = sand.u32 %s164, 1
        %s322 = scalar_lea.sflag [#allocation4], %s321
        %s323 = sand.u32 %s164, 1
        %s324 = smul.addr %s323, 256
        %s325 = scalar_lea.vmem [#allocation11], %s324
        %s326 = smul.u32 64, %s25
        %s327 = smul.u32 64, %s25
        %v329 = vld [vmem:[%s281] sm:$0xf]
        %v330 = vld [vmem:[%s281 + $0x4] sm:$0xf]
        %v331 = vld [vmem:[%s281 + $0x8] sm:$0xf]
        %v332 = vld [vmem:[%s281 + $0xc] sm:$0xf]
        %v333 = vld [vmem:[%s281 + $0x10] sm:$0xf]
        %v334 = vld [vmem:[%s281 + $0x14] sm:$0xf]
        %v335 = vld [vmem:[%s281 + $0x18] sm:$0xf]
        %v336 = vld [vmem:[%s281 + $0x1c] sm:$0xf]
        %v337 = vld [vmem:[%s281 + $0x20] sm:$0xf]
        %v338 = vld [vmem:[%s281 + $0x24] sm:$0xf]
        %v339 = vld [vmem:[%s281 + $0x28] sm:$0xf]
        %v340 = vld [vmem:[%s281 + $0x2c] sm:$0xf]
        %v341 = vld [vmem:[%s281 + $0x30] sm:$0xf]
        %v342 = vld [vmem:[%s281 + $0x34] sm:$0xf]
        %v343 = vld [vmem:[%s281 + $0x38] sm:$0xf]
        %v344 = vld [vmem:[%s281 + $0x3c] sm:$0xf]
        %v345 = vld [vmem:[%s281 + $0x40] sm:$0xf]
        %v346 = vld [vmem:[%s281 + $0x44] sm:$0xf]
        %v347 = vld [vmem:[%s281 + $0x48] sm:$0xf]
        %v348 = vld [vmem:[%s281 + $0x4c] sm:$0xf]
        %v349 = vld [vmem:[%s281 + $0x50] sm:$0xf]
        %v350 = vld [vmem:[%s281 + $0x54] sm:$0xf]
        %v351 = vld [vmem:[%s281 + $0x58] sm:$0xf]
        %v352 = vld [vmem:[%s281 + $0x5c] sm:$0xf]
        %v353 = vld [vmem:[%s281 + $0x60] sm:$0xf]
        %v354 = vld [vmem:[%s281 + $0x64] sm:$0xf]
        %v355 = vld [vmem:[%s281 + $0x68] sm:$0xf]
        %v356 = vld [vmem:[%s281 + $0x6c] sm:$0xf]
        %v357 = vld [vmem:[%s281 + $0x70] sm:$0xf]
        %v358 = vld [vmem:[%s281 + $0x74] sm:$0xf]
        %v359 = vld [vmem:[%s281 + $0x78] sm:$0xf]
        %v360 = vld [vmem:[%s281 + $0x7c] sm:$0xf]
        %v361 = vld [vmem:[%s281 + $0x80] sm:$0xf]
        %v362 = vld [vmem:[%s281 + $0x84] sm:$0xf]
        %v363 = vld [vmem:[%s281 + $0x88] sm:$0xf]
        %v364 = vld [vmem:[%s281 + $0x8c] sm:$0xf]
        %v365 = vld [vmem:[%s281 + $0x90] sm:$0xf]
        %v366 = vld [vmem:[%s281 + $0x94] sm:$0xf]
        %v367 = vld [vmem:[%s281 + $0x98] sm:$0xf]
        %v368 = vld [vmem:[%s281 + $0x9c] sm:$0xf]
        %v369 = vld [vmem:[%s281 + $0xa0] sm:$0xf]
        %v370 = vld [vmem:[%s281 + $0xa4] sm:$0xf]
        %v371 = vld [vmem:[%s281 + $0xa8] sm:$0xf]
        %v372 = vld [vmem:[%s281 + $0xac] sm:$0xf]
        %v373 = vld [vmem:[%s281 + $0xb0] sm:$0xf]
        %v374 = vld [vmem:[%s281 + $0xb4] sm:$0xf]
        %v375 = vld [vmem:[%s281 + $0xb8] sm:$0xf]
        %v376 = vld [vmem:[%s281 + $0xbc] sm:$0xf]
        %v377 = vld [vmem:[%s281 + $0xc0] sm:$0xf]
        %v378 = vld [vmem:[%s281 + $0xc4] sm:$0xf]
        %v379 = vld [vmem:[%s281 + $0xc8] sm:$0xf]
        %v380 = vld [vmem:[%s281 + $0xcc] sm:$0xf]
        %v381 = vld [vmem:[%s281 + $0xd0] sm:$0xf]
        %v382 = vld [vmem:[%s281 + $0xd4] sm:$0xf]
        %v383 = vld [vmem:[%s281 + $0xd8] sm:$0xf]
        %v384 = vld [vmem:[%s281 + $0xdc] sm:$0xf]
        %v385 = vld [vmem:[%s281 + $0xe0] sm:$0xf]
        %v386 = vld [vmem:[%s281 + $0xe4] sm:$0xf]
        %v387 = vld [vmem:[%s281 + $0xe8] sm:$0xf]
        %v388 = vld [vmem:[%s281 + $0xec] sm:$0xf]
        %v389 = vld [vmem:[%s281 + $0xf0] sm:$0xf]
        %v390 = vld [vmem:[%s281 + $0xf4] sm:$0xf]
        %v391 = vld [vmem:[%s281 + $0xf8] sm:$0xf]
        %v392 = vld [vmem:[%s281 + $0xfc] sm:$0xf]
        %v393 = vld [vmem:[#allocation5] sm:$0xf]
        %v394 = vld [vmem:[#allocation5 + $0x4] sm:$0xf]
        %v395 = vld [vmem:[#allocation5 + $0x8] sm:$0xf]
        %v396 = vld [vmem:[#allocation5 + $0xc] sm:$0xf]
        %v397 = vld [vmem:[#allocation5 + $0x10] sm:$0xf]
        %v398 = vld [vmem:[#allocation5 + $0x14] sm:$0xf]
        %v399 = vld [vmem:[#allocation5 + $0x18] sm:$0xf]
        %v400 = vld [vmem:[#allocation5 + $0x1c] sm:$0xf]
        %v401 = vld [vmem:[#allocation5 + $0x20] sm:$0xf]
        %v402 = vld [vmem:[#allocation5 + $0x24] sm:$0xf]
        %v403 = vld [vmem:[#allocation5 + $0x28] sm:$0xf]
        %v404 = vld [vmem:[#allocation5 + $0x2c] sm:$0xf]
        %v405 = vld [vmem:[#allocation5 + $0x30] sm:$0xf]
        %v406 = vld [vmem:[#allocation5 + $0x34] sm:$0xf]
        %v407 = vld [vmem:[#allocation5 + $0x38] sm:$0xf]
        %v408 = vld [vmem:[#allocation5 + $0x3c] sm:$0xf]
        %v409 = vld [vmem:[#allocation8] sm:$0x1]
        %v410 = vlaneseq
        %v411 = vshrl.u32 %v410, 7
        %v412 = vsub.s32 0, %v411
        %v413 = vrot.slane %v409, %v412
        %v478 = vunpack.c.l.b16 %v329
        %v479 = vunpack.c.l.b16 %v330
        %v480 = vunpack.c.l.b16 %v331
        %v481 = vunpack.c.l.b16 %v332
        %v482 = vunpack.c.l.b16 %v333
        %v483 = vunpack.c.l.b16 %v334
        %v484 = vunpack.c.l.b16 %v335
        %v485 = vunpack.c.l.b16 %v336
        %v486 = vunpack.c.l.b16 %v337
        %v487 = vunpack.c.l.b16 %v338
        %v488 = vunpack.c.l.b16 %v339
        %v489 = vunpack.c.l.b16 %v340
        %v490 = vunpack.c.l.b16 %v341
        %v491 = vunpack.c.l.b16 %v342
        %v492 = vunpack.c.l.b16 %v343
        %v493 = vunpack.c.l.b16 %v344
        %v494 = vunpack.c.l.b16 %v345
        %v495 = vunpack.c.l.b16 %v346
        %v496 = vunpack.c.l.b16 %v347
        %v497 = vunpack.c.l.b16 %v348
        %v498 = vunpack.c.l.b16 %v349
        %v499 = vunpack.c.l.b16 %v350
        %v500 = vunpack.c.l.b16 %v351
        %v501 = vunpack.c.l.b16 %v352
        %v502 = vunpack.c.l.b16 %v353
        %v503 = vunpack.c.l.b16 %v354
        %v504 = vunpack.c.l.b16 %v355
        %v505 = vunpack.c.l.b16 %v356
        %v506 = vunpack.c.l.b16 %v357
        %v507 = vunpack.c.l.b16 %v358
        %v508 = vunpack.c.l.b16 %v359
        %v509 = vunpack.c.l.b16 %v360
        %v510 = vunpack.c.l.b16 %v361
        %v511 = vunpack.c.l.b16 %v362
        %v512 = vunpack.c.l.b16 %v363
        %v513 = vunpack.c.l.b16 %v364
        %v514 = vunpack.c.l.b16 %v365
        %v515 = vunpack.c.l.b16 %v366
        %v516 = vunpack.c.l.b16 %v367
        %v517 = vunpack.c.l.b16 %v368
        %v518 = vunpack.c.l.b16 %v369
        %v519 = vunpack.c.l.b16 %v370
        %v520 = vunpack.c.l.b16 %v371
        %v521 = vunpack.c.l.b16 %v372
        %v522 = vunpack.c.l.b16 %v373
        %v523 = vunpack.c.l.b16 %v374
        %v524 = vunpack.c.l.b16 %v375
        %v525 = vunpack.c.l.b16 %v376
        %v526 = vunpack.c.l.b16 %v377
        %v527 = vunpack.c.l.b16 %v378
        %v528 = vunpack.c.l.b16 %v379
        %v529 = vunpack.c.l.b16 %v380
        %v530 = vunpack.c.l.b16 %v381
        %v531 = vunpack.c.l.b16 %v382
        %v532 = vunpack.c.l.b16 %v383
        %v533 = vunpack.c.l.b16 %v384
        %v534 = vunpack.c.l.b16 %v385
        %v535 = vunpack.c.l.b16 %v386
        %v536 = vunpack.c.l.b16 %v387
        %v537 = vunpack.c.l.b16 %v388
        %v538 = vunpack.c.l.b16 %v389
        %v539 = vunpack.c.l.b16 %v390
        %v540 = vunpack.c.l.b16 %v391
        %v541 = vunpack.c.l.b16 %v392
        %v542 = vpack.c.b16 %v479, %v478
        %v543 = vpack.c.b16 %v481, %v480
        %v544 = vpack.c.b16 %v483, %v482
        %v545 = vpack.c.b16 %v485, %v484
        %v546 = vpack.c.b16 %v487, %v486
        %v547 = vpack.c.b16 %v489, %v488
        %v548 = vpack.c.b16 %v491, %v490
        %v549 = vpack.c.b16 %v493, %v492
        %v550 = vpack.c.b16 %v495, %v494
        %v551 = vpack.c.b16 %v497, %v496
        %v552 = vpack.c.b16 %v499, %v498
        %v553 = vpack.c.b16 %v501, %v500
        %v554 = vpack.c.b16 %v503, %v502
        %v555 = vpack.c.b16 %v505, %v504
        %v556 = vpack.c.b16 %v507, %v506
        %v557 = vpack.c.b16 %v509, %v508
        %v558 = vpack.c.b16 %v511, %v510
        %v559 = vpack.c.b16 %v513, %v512
        %v560 = vpack.c.b16 %v515, %v514
        %v561 = vpack.c.b16 %v517, %v516
        %v562 = vpack.c.b16 %v519, %v518
        %v563 = vpack.c.b16 %v521, %v520
        %v564 = vpack.c.b16 %v523, %v522
        %v565 = vpack.c.b16 %v525, %v524
        %v566 = vpack.c.b16 %v527, %v526
        %v567 = vpack.c.b16 %v529, %v528
        %v568 = vpack.c.b16 %v531, %v530
        %v569 = vpack.c.b16 %v533, %v532
        %v570 = vpack.c.b16 %v535, %v534
        %v571 = vpack.c.b16 %v537, %v536
        %v572 = vpack.c.b16 %v539, %v538
        %v573 = vpack.c.b16 %v541, %v540
        %v622 = vunpack.c.l.b16 %v393
        %v623 = vunpack.c.l.b16 %v394
        %v624 = vunpack.c.l.b16 %v395
        %v625 = vunpack.c.l.b16 %v396
        %v626 = vunpack.c.l.b16 %v397
        %v627 = vunpack.c.l.b16 %v398
        %v628 = vunpack.c.l.b16 %v399
        %v629 = vunpack.c.l.b16 %v400
        %v630 = vunpack.c.l.b16 %v401
        %v631 = vunpack.c.l.b16 %v402
        %v632 = vunpack.c.l.b16 %v403
        %v633 = vunpack.c.l.b16 %v404
        %v634 = vunpack.c.l.b16 %v405
        %v635 = vunpack.c.l.b16 %v406
        %v636 = vunpack.c.l.b16 %v407
        %v637 = vunpack.c.l.b16 %v408
        %v638 = vpack.c.b16 %v623, %v622
        %v639 = vpack.c.b16 %v625, %v624
        %v640 = vpack.c.b16 %v627, %v626
        %v641 = vpack.c.b16 %v629, %v628
        %v642 = vpack.c.b16 %v631, %v630
        %v643 = vpack.c.b16 %v633, %v632
        %v644 = vpack.c.b16 %v635, %v634
        %v645 = vpack.c.b16 %v637, %v636
        %654 = vmatprep.subr.bf16.mxu0 0
        %655 = vmatpush1.bf16.msra.mxu0 %v645
        %656 = vmatprep.subr.bf16.mxu0 0
        %657 = vmatpush1.bf16.msra.mxu0 %v644
        %658 = vmatprep.subr.bf16.mxu0 0
        %659 = vmatpush1.bf16.msra.mxu0 %v643
        %660 = vmatprep.subr.bf16.mxu0 0
        %661 = vmatpush1.bf16.msra.mxu0 %v642
        %662 = vmatprep.subr.bf16.mxu0 0
        %663 = vmatpush1.bf16.msra.mxu0 %v641
        %664 = vmatprep.subr.bf16.mxu0 0
        %665 = vmatpush1.bf16.msra.mxu0 %v640
        %666 = vmatprep.subr.bf16.mxu0 0
        %667 = vmatpush1.bf16.msra.mxu0 %v639
        %668 = vmatprep.subr.bf16.mxu0 0
        %669 = vmatpush1.bf16.msra.mxu0 %v638
        %670 = vmatprep.subr.bf16.mxu0 0
        %671 = vmatpush2.bf16.msra.mxu0 0
        %672 = vmatprep.subr.bf16.mxu0 0
        %673 = vmatpush2.bf16.msra.mxu0 0
        %674 = vmatprep.subr.bf16.mxu0 0
        %675 = vmatpush2.bf16.msra.mxu0 0
        %676 = vmatprep.subr.bf16.mxu0 0
        %677 = vmatpush2.bf16.msra.mxu0 0
        %678 = vmatprep.subr.bf16.mxu0 0
        %679 = vmatpush2.bf16.msra.mxu0 0
        %680 = vmatprep.subr.bf16.mxu0 0
        %681 = vmatpush2.bf16.msra.mxu0 0
        %682 = vmatprep.subr.bf16.mxu0 0
        %683 = vmatpush2.bf16.msra.mxu0 0
        %684 = vmatprep.subr.bf16.mxu0 0
        %685 = vmatpush2.bf16.msra.mxu0 0
        %686 = vmatprep.mubr.bf16.mxu0 0
        %687 = vmatmul.mubr.bf16.gmra.mxu0 %v542
        %v688 = vpop.f32.mrf.mxu0
        %v689 = vadd.f32 %v413, %v688
        %v690 = vpop.f32.mrf.mxu0
        %v691 = vpop.f32.mrf.mxu0
        %v692 = vadd.f32 %v413, %v691
        %v693 = vpop.f32.mrf.mxu0
        %694 = vmatprep.mubr.bf16.mxu0 0
        %695 = vmatmul.mubr.bf16.gmra.mxu0 %v543
        %v696 = vpop.f32.mrf.mxu0
        %v697 = vadd.f32 %v413, %v696
        %v698 = vpop.f32.mrf.mxu0
        %v699 = vpop.f32.mrf.mxu0
        %v700 = vadd.f32 %v413, %v699
        %v701 = vpop.f32.mrf.mxu0
        %702 = vmatprep.mubr.bf16.mxu0 0
        %703 = vmatmul.mubr.bf16.gmra.mxu0 %v544
        %v704 = vpop.f32.mrf.mxu0
        %v705 = vadd.f32 %v413, %v704
        %v706 = vpop.f32.mrf.mxu0
        %v707 = vpop.f32.mrf.mxu0
        %v708 = vadd.f32 %v413, %v707
        %v709 = vpop.f32.mrf.mxu0
        %710 = vmatprep.mubr.bf16.mxu0 0
        %711 = vmatmul.mubr.bf16.gmra.mxu0 %v545
        %v712 = vpop.f32.mrf.mxu0
        %v713 = vadd.f32 %v413, %v712
        %v714 = vpop.f32.mrf.mxu0
        %v715 = vpop.f32.mrf.mxu0
        %v716 = vadd.f32 %v413, %v715
        %v717 = vpop.f32.mrf.mxu0
        %718 = vmatprep.mubr.bf16.mxu0 0
        %719 = vmatmul.mubr.bf16.gmra.mxu0 %v546
        %v720 = vpop.f32.mrf.mxu0
        %v721 = vadd.f32 %v413, %v720
        %v722 = vpop.f32.mrf.mxu0
        %v723 = vpop.f32.mrf.mxu0
        %v724 = vadd.f32 %v413, %v723
        %v725 = vpop.f32.mrf.mxu0
        %726 = vmatprep.mubr.bf16.mxu0 0
        %727 = vmatmul.mubr.bf16.gmra.mxu0 %v547
        %v728 = vpop.f32.mrf.mxu0
        %v729 = vadd.f32 %v413, %v728
        %v730 = vpop.f32.mrf.mxu0
        %v731 = vpop.f32.mrf.mxu0
        %v732 = vadd.f32 %v413, %v731
        %v733 = vpop.f32.mrf.mxu0
        %734 = vmatprep.mubr.bf16.mxu0 0
        %735 = vmatmul.mubr.bf16.gmra.mxu0 %v548
        %v736 = vpop.f32.mrf.mxu0
        %v737 = vadd.f32 %v413, %v736
        %v738 = vpop.f32.mrf.mxu0
        %v739 = vpop.f32.mrf.mxu0
        %v740 = vadd.f32 %v413, %v739
        %v741 = vpop.f32.mrf.mxu0
        %742 = vmatprep.mubr.bf16.mxu0 0
        %743 = vmatmul.mubr.bf16.gmra.mxu0 %v549
        %v744 = vpop.f32.mrf.mxu0
        %v745 = vadd.f32 %v413, %v744
        %v746 = vpop.f32.mrf.mxu0
        %v747 = vpop.f32.mrf.mxu0
        %v748 = vadd.f32 %v413, %v747
        %v749 = vpop.f32.mrf.mxu0
        %750 = vmatprep.mubr.bf16.mxu0 0
        %751 = vmatmul.mubr.bf16.gmra.mxu0 %v550
        %v752 = vpop.f32.mrf.mxu0
        %v753 = vadd.f32 %v413, %v752
        %v754 = vpop.f32.mrf.mxu0
        %v755 = vpop.f32.mrf.mxu0
        %v756 = vadd.f32 %v413, %v755
        %v757 = vpop.f32.mrf.mxu0
        %758 = vmatprep.mubr.bf16.mxu0 0
        %759 = vmatmul.mubr.bf16.gmra.mxu0 %v551
        %v760 = vpop.f32.mrf.mxu0
        %v761 = vadd.f32 %v413, %v760
        %v762 = vpop.f32.mrf.mxu0
        %v763 = vpop.f32.mrf.mxu0
        %v764 = vadd.f32 %v413, %v763
        %v765 = vpop.f32.mrf.mxu0
        %766 = vmatprep.mubr.bf16.mxu0 0
        %767 = vmatmul.mubr.bf16.gmra.mxu0 %v552
        %v768 = vpop.f32.mrf.mxu0
        %v769 = vadd.f32 %v413, %v768
        %v770 = vpop.f32.mrf.mxu0
        %v771 = vpop.f32.mrf.mxu0
        %v772 = vadd.f32 %v413, %v771
        %v773 = vpop.f32.mrf.mxu0
        %774 = vmatprep.mubr.bf16.mxu0 0
        %775 = vmatmul.mubr.bf16.gmra.mxu0 %v553
        %v776 = vpop.f32.mrf.mxu0
        %v777 = vadd.f32 %v413, %v776
        %v778 = vpop.f32.mrf.mxu0
        %v779 = vpop.f32.mrf.mxu0
        %v780 = vadd.f32 %v413, %v779
        %v781 = vpop.f32.mrf.mxu0
        %782 = vmatprep.mubr.bf16.mxu0 0
        %783 = vmatmul.mubr.bf16.gmra.mxu0 %v554
        %v784 = vpop.f32.mrf.mxu0
        %v785 = vadd.f32 %v413, %v784
        %v786 = vpop.f32.mrf.mxu0
        %v787 = vpop.f32.mrf.mxu0
        %v788 = vadd.f32 %v413, %v787
        %v789 = vpop.f32.mrf.mxu0
        %790 = vmatprep.mubr.bf16.mxu0 0
        %791 = vmatmul.mubr.bf16.gmra.mxu0 %v555
        %v792 = vpop.f32.mrf.mxu0
        %v793 = vadd.f32 %v413, %v792
        %v794 = vpop.f32.mrf.mxu0
        %v795 = vpop.f32.mrf.mxu0
        %v796 = vadd.f32 %v413, %v795
        %v797 = vpop.f32.mrf.mxu0
        %798 = vmatprep.mubr.bf16.mxu0 0
        %799 = vmatmul.mubr.bf16.gmra.mxu0 %v556
        %v800 = vpop.f32.mrf.mxu0
        %v801 = vadd.f32 %v413, %v800
        %v802 = vpop.f32.mrf.mxu0
        %v803 = vpop.f32.mrf.mxu0
        %v804 = vadd.f32 %v413, %v803
        %v805 = vpop.f32.mrf.mxu0
        %806 = vmatprep.mubr.bf16.mxu0 0
        %807 = vmatmul.mubr.bf16.gmra.mxu0 %v557
        %v808 = vpop.f32.mrf.mxu0
        %v809 = vadd.f32 %v413, %v808
        %v810 = vpop.f32.mrf.mxu0
        %v811 = vpop.f32.mrf.mxu0
        %v812 = vadd.f32 %v413, %v811
        %v813 = vpop.f32.mrf.mxu0
        %814 = vmatprep.mubr.bf16.mxu0 0
        %815 = vmatmul.mubr.bf16.gmra.mxu0 %v558
        %v816 = vpop.f32.mrf.mxu0
        %v817 = vadd.f32 %v413, %v816
        %v818 = vpop.f32.mrf.mxu0
        %v819 = vpop.f32.mrf.mxu0
        %v820 = vadd.f32 %v413, %v819
        %v821 = vpop.f32.mrf.mxu0
        %822 = vmatprep.mubr.bf16.mxu0 0
        %823 = vmatmul.mubr.bf16.gmra.mxu0 %v559
        %v824 = vpop.f32.mrf.mxu0
        %v825 = vadd.f32 %v413, %v824
        %v826 = vpop.f32.mrf.mxu0
        %v827 = vpop.f32.mrf.mxu0
        %v828 = vadd.f32 %v413, %v827
        %v829 = vpop.f32.mrf.mxu0
        %830 = vmatprep.mubr.bf16.mxu0 0
        %831 = vmatmul.mubr.bf16.gmra.mxu0 %v560
        %v832 = vpop.f32.mrf.mxu0
        %v833 = vadd.f32 %v413, %v832
        %v834 = vpop.f32.mrf.mxu0
        %v835 = vpop.f32.mrf.mxu0
        %v836 = vadd.f32 %v413, %v835
        %v837 = vpop.f32.mrf.mxu0
        %838 = vmatprep.mubr.bf16.mxu0 0
        %839 = vmatmul.mubr.bf16.gmra.mxu0 %v561
        %v840 = vpop.f32.mrf.mxu0
        %v841 = vadd.f32 %v413, %v840
        %v842 = vpop.f32.mrf.mxu0
        %v843 = vpop.f32.mrf.mxu0
        %v844 = vadd.f32 %v413, %v843
        %v845 = vpop.f32.mrf.mxu0
        %846 = vmatprep.mubr.bf16.mxu0 0
        %847 = vmatmul.mubr.bf16.gmra.mxu0 %v562
        %v848 = vpop.f32.mrf.mxu0
        %v849 = vadd.f32 %v413, %v848
        %v850 = vpop.f32.mrf.mxu0
        %v851 = vpop.f32.mrf.mxu0
        %v852 = vadd.f32 %v413, %v851
        %v853 = vpop.f32.mrf.mxu0
        %854 = vmatprep.mubr.bf16.mxu0 0
        %855 = vmatmul.mubr.bf16.gmra.mxu0 %v563
        %v856 = vpop.f32.mrf.mxu0
        %v857 = vadd.f32 %v413, %v856
        %v858 = vpop.f32.mrf.mxu0
        %v859 = vpop.f32.mrf.mxu0
        %v860 = vadd.f32 %v413, %v859
        %v861 = vpop.f32.mrf.mxu0
        %862 = vmatprep.mubr.bf16.mxu0 0
        %863 = vmatmul.mubr.bf16.gmra.mxu0 %v564
        %v864 = vpop.f32.mrf.mxu0
        %v865 = vadd.f32 %v413, %v864
        %v866 = vpop.f32.mrf.mxu0
        %v867 = vpop.f32.mrf.mxu0
        %v868 = vadd.f32 %v413, %v867
        %v869 = vpop.f32.mrf.mxu0
        %870 = vmatprep.mubr.bf16.mxu0 0
        %871 = vmatmul.mubr.bf16.gmra.mxu0 %v565
        %v872 = vpop.f32.mrf.mxu0
        %v873 = vadd.f32 %v413, %v872
        %v874 = vpop.f32.mrf.mxu0
        %v875 = vpop.f32.mrf.mxu0
        %v876 = vadd.f32 %v413, %v875
        %v877 = vpop.f32.mrf.mxu0
        %878 = vmatprep.mubr.bf16.mxu0 0
        %879 = vmatmul.mubr.bf16.gmra.mxu0 %v566
        %v880 = vpop.f32.mrf.mxu0
        %v881 = vadd.f32 %v413, %v880
        %v882 = vpop.f32.mrf.mxu0
        %v883 = vpop.f32.mrf.mxu0
        %v884 = vadd.f32 %v413, %v883
        %v885 = vpop.f32.mrf.mxu0
        %886 = vmatprep.mubr.bf16.mxu0 0
        %887 = vmatmul.mubr.bf16.gmra.mxu0 %v567
        %v888 = vpop.f32.mrf.mxu0
        %v889 = vadd.f32 %v413, %v888
        %v890 = vpop.f32.mrf.mxu0
        %v891 = vpop.f32.mrf.mxu0
        %v892 = vadd.f32 %v413, %v891
        %v893 = vpop.f32.mrf.mxu0
        %894 = vmatprep.mubr.bf16.mxu0 0
        %895 = vmatmul.mubr.bf16.gmra.mxu0 %v568
        %v896 = vpop.f32.mrf.mxu0
        %v897 = vadd.f32 %v413, %v896
        %v898 = vpop.f32.mrf.mxu0
        %v899 = vpop.f32.mrf.mxu0
        %v900 = vadd.f32 %v413, %v899
        %v901 = vpop.f32.mrf.mxu0
        %902 = vmatprep.mubr.bf16.mxu0 0
        %903 = vmatmul.mubr.bf16.gmra.mxu0 %v569
        %v904 = vpop.f32.mrf.mxu0
        %v905 = vadd.f32 %v413, %v904
        %v906 = vpop.f32.mrf.mxu0
        %v907 = vpop.f32.mrf.mxu0
        %v908 = vadd.f32 %v413, %v907
        %v909 = vpop.f32.mrf.mxu0
        %910 = vmatprep.mubr.bf16.mxu0 0
        %911 = vmatmul.mubr.bf16.gmra.mxu0 %v570
        %v912 = vpop.f32.mrf.mxu0
        %v913 = vadd.f32 %v413, %v912
        %v914 = vpop.f32.mrf.mxu0
        %v915 = vpop.f32.mrf.mxu0
        %v916 = vadd.f32 %v413, %v915
        %v917 = vpop.f32.mrf.mxu0
        %918 = vmatprep.mubr.bf16.mxu0 0
        %919 = vmatmul.mubr.bf16.gmra.mxu0 %v571
        %v920 = vpop.f32.mrf.mxu0
        %v921 = vadd.f32 %v413, %v920
        %v922 = vpop.f32.mrf.mxu0
        %v923 = vpop.f32.mrf.mxu0
        %v924 = vadd.f32 %v413, %v923
        %v925 = vpop.f32.mrf.mxu0
        %926 = vmatprep.mubr.bf16.mxu0 0
        %927 = vmatmul.mubr.bf16.gmra.mxu0 %v572
        %v928 = vpop.f32.mrf.mxu0
        %v929 = vadd.f32 %v413, %v928
        %v930 = vpop.f32.mrf.mxu0
        %v931 = vpop.f32.mrf.mxu0
        %v932 = vadd.f32 %v413, %v931
        %v933 = vpop.f32.mrf.mxu0
        %934 = vmatprep.mubr.bf16.mxu0 0
        %935 = vmatmul.mubr.bf16.gmra.mxu0 %v573
        %v936 = vpop.f32.mrf.mxu0
        %v937 = vadd.f32 %v413, %v936
        %v938 = vpop.f32.mrf.mxu0
        %v939 = vpop.f32.mrf.mxu0
        %v940 = vadd.f32 %v413, %v939
        %v941 = vpop.f32.mrf.mxu0
        %942 = vdwg.mxu0
        %v943 = vmax.f32 %v689, 0.0
        %v944 = vmax.f32 %v692, 0.0
        %v945 = vmax.f32 %v697, 0.0
        %v946 = vmax.f32 %v700, 0.0
        %v947 = vmax.f32 %v705, 0.0
        %v948 = vmax.f32 %v708, 0.0
        %v949 = vmax.f32 %v713, 0.0
        %v950 = vmax.f32 %v716, 0.0
        %v951 = vmax.f32 %v721, 0.0
        %v952 = vmax.f32 %v724, 0.0
        %v953 = vmax.f32 %v729, 0.0
        %v954 = vmax.f32 %v732, 0.0
        %v955 = vmax.f32 %v737, 0.0
        %v956 = vmax.f32 %v740, 0.0
        %v957 = vmax.f32 %v745, 0.0
        %v958 = vmax.f32 %v748, 0.0
        %v959 = vmax.f32 %v753, 0.0
        %v960 = vmax.f32 %v756, 0.0
        %v961 = vmax.f32 %v761, 0.0
        %v962 = vmax.f32 %v764, 0.0
        %v963 = vmax.f32 %v769, 0.0
        %v964 = vmax.f32 %v772, 0.0
        %v965 = vmax.f32 %v777, 0.0
        %v966 = vmax.f32 %v780, 0.0
        %v967 = vmax.f32 %v785, 0.0
        %v968 = vmax.f32 %v788, 0.0
        %v969 = vmax.f32 %v793, 0.0
        %v970 = vmax.f32 %v796, 0.0
        %v971 = vmax.f32 %v801, 0.0
        %v972 = vmax.f32 %v804, 0.0
        %v973 = vmax.f32 %v809, 0.0
        %v974 = vmax.f32 %v812, 0.0
        %v975 = vmax.f32 %v817, 0.0
        %v976 = vmax.f32 %v820, 0.0
        %v977 = vmax.f32 %v825, 0.0
        %v978 = vmax.f32 %v828, 0.0
        %v979 = vmax.f32 %v833, 0.0
        %v980 = vmax.f32 %v836, 0.0
        %v981 = vmax.f32 %v841, 0.0
        %v982 = vmax.f32 %v844, 0.0
        %v983 = vmax.f32 %v849, 0.0
        %v984 = vmax.f32 %v852, 0.0
        %v985 = vmax.f32 %v857, 0.0
        %v986 = vmax.f32 %v860, 0.0
        %v987 = vmax.f32 %v865, 0.0
        %v988 = vmax.f32 %v868, 0.0
        %v989 = vmax.f32 %v873, 0.0
        %v990 = vmax.f32 %v876, 0.0
        %v991 = vmax.f32 %v881, 0.0
        %v992 = vmax.f32 %v884, 0.0
        %v993 = vmax.f32 %v889, 0.0
        %v994 = vmax.f32 %v892, 0.0
        %v995 = vmax.f32 %v897, 0.0
        %v996 = vmax.f32 %v900, 0.0
        %v997 = vmax.f32 %v905, 0.0
        %v998 = vmax.f32 %v908, 0.0
        %v999 = vmax.f32 %v913, 0.0
        %v1000 = vmax.f32 %v916, 0.0
        %v1001 = vmax.f32 %v921, 0.0
        %v1002 = vmax.f32 %v924, 0.0
        %v1003 = vmax.f32 %v929, 0.0
        %v1004 = vmax.f32 %v932, 0.0
        %v1005 = vmax.f32 %v937, 0.0
        %v1006 = vmax.f32 %v940, 0.0
        %v1007 = vpack.c.bf16 %v944, %v943
        %v1008 = vpack.c.bf16 %v946, %v945
        %v1009 = vpack.c.bf16 %v948, %v947
        %v1010 = vpack.c.bf16 %v950, %v949
        %v1011 = vpack.c.bf16 %v952, %v951
        %v1012 = vpack.c.bf16 %v954, %v953
        %v1013 = vpack.c.bf16 %v956, %v955
        %v1014 = vpack.c.bf16 %v958, %v957
        %v1015 = vpack.c.bf16 %v960, %v959
        %v1016 = vpack.c.bf16 %v962, %v961
        %v1017 = vpack.c.bf16 %v964, %v963
        %v1018 = vpack.c.bf16 %v966, %v965
        %v1019 = vpack.c.bf16 %v968, %v967
        %v1020 = vpack.c.bf16 %v970, %v969
        %v1021 = vpack.c.bf16 %v972, %v971
        %v1022 = vpack.c.bf16 %v974, %v973
        %v1023 = vpack.c.bf16 %v976, %v975
        %v1024 = vpack.c.bf16 %v978, %v977
        %v1025 = vpack.c.bf16 %v980, %v979
        %v1026 = vpack.c.bf16 %v982, %v981
        %v1027 = vpack.c.bf16 %v984, %v983
        %v1028 = vpack.c.bf16 %v986, %v985
        %v1029 = vpack.c.bf16 %v988, %v987
        %v1030 = vpack.c.bf16 %v990, %v989
        %v1031 = vpack.c.bf16 %v992, %v991
        %v1032 = vpack.c.bf16 %v994, %v993
        %v1033 = vpack.c.bf16 %v996, %v995
        %v1034 = vpack.c.bf16 %v998, %v997
        %v1035 = vpack.c.bf16 %v1000, %v999
        %v1036 = vpack.c.bf16 %v1002, %v1001
        %v1037 = vpack.c.bf16 %v1004, %v1003
        %v1038 = vpack.c.bf16 %v1006, %v1005
        %v1039 = vld [vmem:[#allocation7] sm:$0xf]
        %v1040 = vld [vmem:[#allocation7 + $0x4] sm:$0xf]
        %v1041 = vld [vmem:[#allocation7 + $0x8] sm:$0xf]
        %v1042 = vld [vmem:[#allocation7 + $0xc] sm:$0xf]
        %v1043 = vld [vmem:[#allocation7 + $0x10] sm:$0xf]
        %v1044 = vld [vmem:[#allocation7 + $0x14] sm:$0xf]
        %v1045 = vld [vmem:[#allocation7 + $0x18] sm:$0xf]
        %v1046 = vld [vmem:[#allocation7 + $0x1c] sm:$0xf]
        %v1047 = vld [vmem:[#allocation7 + $0x20] sm:$0xf]
        %v1048 = vld [vmem:[#allocation7 + $0x24] sm:$0xf]
        %v1049 = vld [vmem:[#allocation7 + $0x28] sm:$0xf]
        %v1050 = vld [vmem:[#allocation7 + $0x2c] sm:$0xf]
        %v1051 = vld [vmem:[#allocation7 + $0x30] sm:$0xf]
        %v1052 = vld [vmem:[#allocation7 + $0x34] sm:$0xf]
        %v1053 = vld [vmem:[#allocation7 + $0x38] sm:$0xf]
        %v1054 = vld [vmem:[#allocation7 + $0x3c] sm:$0xf]
        %v1055 = vld [vmem:[#allocation8 + $0x1] sm:$0x1]
        %v1056 = vlaneseq
        %v1057 = vshrl.u32 %v1056, 7
        %v1058 = vsub.s32 0, %v1057
        %v1059 = vrot.slane %v1055, %v1058
        %v1076 = vunpack.c.l.b16 %v1039
        %v1077 = vunpack.c.l.b16 %v1040
        %v1078 = vunpack.c.l.b16 %v1041
        %v1079 = vunpack.c.l.b16 %v1042
        %v1080 = vunpack.c.l.b16 %v1043
        %v1081 = vunpack.c.l.b16 %v1044
        %v1082 = vunpack.c.l.b16 %v1045
        %v1083 = vunpack.c.l.b16 %v1046
        %v1084 = vunpack.c.l.b16 %v1047
        %v1085 = vunpack.c.l.b16 %v1048
        %v1086 = vunpack.c.l.b16 %v1049
        %v1087 = vunpack.c.l.b16 %v1050
        %v1088 = vunpack.c.l.b16 %v1051
        %v1089 = vunpack.c.l.b16 %v1052
        %v1090 = vunpack.c.l.b16 %v1053
        %v1091 = vunpack.c.l.b16 %v1054
        %v1092 = vpack.c.b16 %v1077, %v1076
        %v1093 = vpack.c.b16 %v1079, %v1078
        %v1094 = vpack.c.b16 %v1081, %v1080
        %v1095 = vpack.c.b16 %v1083, %v1082
        %v1096 = vpack.c.b16 %v1085, %v1084
        %v1097 = vpack.c.b16 %v1087, %v1086
        %v1098 = vpack.c.b16 %v1089, %v1088
        %v1099 = vpack.c.b16 %v1091, %v1090
        %1108 = vmatprep.subr.bf16.mxu0 0
        %1109 = vmatpush1.bf16.msra.mxu0 %v1099
        %1110 = vmatprep.subr.bf16.mxu0 0
        %1111 = vmatpush1.bf16.msra.mxu0 %v1098
        %1112 = vmatprep.subr.bf16.mxu0 0
        %1113 = vmatpush1.bf16.msra.mxu0 %v1097
        %1114 = vmatprep.subr.bf16.mxu0 0
        %1115 = vmatpush1.bf16.msra.mxu0 %v1096
        %1116 = vmatprep.subr.bf16.mxu0 0
        %1117 = vmatpush1.bf16.msra.mxu0 %v1095
        %1118 = vmatprep.subr.bf16.mxu0 0
        %1119 = vmatpush1.bf16.msra.mxu0 %v1094
        %1120 = vmatprep.subr.bf16.mxu0 0
        %1121 = vmatpush1.bf16.msra.mxu0 %v1093
        %1122 = vmatprep.subr.bf16.mxu0 0
        %1123 = vmatpush1.bf16.msra.mxu0 %v1092
        %1124 = vmatprep.subr.bf16.mxu0 0
        %1125 = vmatpush2.bf16.msra.mxu0 0
        %1126 = vmatprep.subr.bf16.mxu0 0
        %1127 = vmatpush2.bf16.msra.mxu0 0
        %1128 = vmatprep.subr.bf16.mxu0 0
        %1129 = vmatpush2.bf16.msra.mxu0 0
        %1130 = vmatprep.subr.bf16.mxu0 0
        %1131 = vmatpush2.bf16.msra.mxu0 0
        %1132 = vmatprep.subr.bf16.mxu0 0
        %1133 = vmatpush2.bf16.msra.mxu0 0
        %1134 = vmatprep.subr.bf16.mxu0 0
        %1135 = vmatpush2.bf16.msra.mxu0 0
        %1136 = vmatprep.subr.bf16.mxu0 0
        %1137 = vmatpush2.bf16.msra.mxu0 0
        %1138 = vmatprep.subr.bf16.mxu0 0
        %1139 = vmatpush2.bf16.msra.mxu0 0
        %1140 = vmatprep.mubr.bf16.mxu0 0
        %1141 = vmatmul.mubr.bf16.gmra.mxu0 %v1007
        %v1142 = vpop.f32.mrf.mxu0
        %v1143 = vadd.f32 %v1059, %v1142
        %v1144 = vpop.f32.mrf.mxu0
        %v1145 = vpop.f32.mrf.mxu0
        %v1146 = vadd.f32 %v1059, %v1145
        %v1147 = vpop.f32.mrf.mxu0
        %1148 = vmatprep.mubr.bf16.mxu0 0
        %1149 = vmatmul.mubr.bf16.gmra.mxu0 %v1008
        %v1150 = vpop.f32.mrf.mxu0
        %v1151 = vadd.f32 %v1059, %v1150
        %v1152 = vpop.f32.mrf.mxu0
        %v1153 = vpop.f32.mrf.mxu0
        %v1154 = vadd.f32 %v1059, %v1153
        %v1155 = vpop.f32.mrf.mxu0
        %1156 = vmatprep.mubr.bf16.mxu0 0
        %1157 = vmatmul.mubr.bf16.gmra.mxu0 %v1009
        %v1158 = vpop.f32.mrf.mxu0
        %v1159 = vadd.f32 %v1059, %v1158
        %v1160 = vpop.f32.mrf.mxu0
        %v1161 = vpop.f32.mrf.mxu0
        %v1162 = vadd.f32 %v1059, %v1161
        %v1163 = vpop.f32.mrf.mxu0
        %1164 = vmatprep.mubr.bf16.mxu0 0
        %1165 = vmatmul.mubr.bf16.gmra.mxu0 %v1010
        %v1166 = vpop.f32.mrf.mxu0
        %v1167 = vadd.f32 %v1059, %v1166
        %v1168 = vpop.f32.mrf.mxu0
        %v1169 = vpop.f32.mrf.mxu0
        %v1170 = vadd.f32 %v1059, %v1169
        %v1171 = vpop.f32.mrf.mxu0
        %1172 = vmatprep.mubr.bf16.mxu0 0
        %1173 = vmatmul.mubr.bf16.gmra.mxu0 %v1011
        %v1174 = vpop.f32.mrf.mxu0
        %v1175 = vadd.f32 %v1059, %v1174
        %v1176 = vpop.f32.mrf.mxu0
        %v1177 = vpop.f32.mrf.mxu0
        %v1178 = vadd.f32 %v1059, %v1177
        %v1179 = vpop.f32.mrf.mxu0
        %1180 = vmatprep.mubr.bf16.mxu0 0
        %1181 = vmatmul.mubr.bf16.gmra.mxu0 %v1012
        %v1182 = vpop.f32.mrf.mxu0
        %v1183 = vadd.f32 %v1059, %v1182
        %v1184 = vpop.f32.mrf.mxu0
        %v1185 = vpop.f32.mrf.mxu0
        %v1186 = vadd.f32 %v1059, %v1185
        %v1187 = vpop.f32.mrf.mxu0
        %1188 = vmatprep.mubr.bf16.mxu0 0
        %1189 = vmatmul.mubr.bf16.gmra.mxu0 %v1013
        %v1190 = vpop.f32.mrf.mxu0
        %v1191 = vadd.f32 %v1059, %v1190
        %v1192 = vpop.f32.mrf.mxu0
        %v1193 = vpop.f32.mrf.mxu0
        %v1194 = vadd.f32 %v1059, %v1193
        %v1195 = vpop.f32.mrf.mxu0
        %1196 = vmatprep.mubr.bf16.mxu0 0
        %1197 = vmatmul.mubr.bf16.gmra.mxu0 %v1014
        %v1198 = vpop.f32.mrf.mxu0
        %v1199 = vadd.f32 %v1059, %v1198
        %v1200 = vpop.f32.mrf.mxu0
        %v1201 = vpop.f32.mrf.mxu0
        %v1202 = vadd.f32 %v1059, %v1201
        %v1203 = vpop.f32.mrf.mxu0
        %1204 = vmatprep.mubr.bf16.mxu0 0
        %1205 = vmatmul.mubr.bf16.gmra.mxu0 %v1015
        %v1206 = vpop.f32.mrf.mxu0
        %v1207 = vadd.f32 %v1059, %v1206
        %v1208 = vpop.f32.mrf.mxu0
        %v1209 = vpop.f32.mrf.mxu0
        %v1210 = vadd.f32 %v1059, %v1209
        %v1211 = vpop.f32.mrf.mxu0
        %1212 = vmatprep.mubr.bf16.mxu0 0
        %1213 = vmatmul.mubr.bf16.gmra.mxu0 %v1016
        %v1214 = vpop.f32.mrf.mxu0
        %v1215 = vadd.f32 %v1059, %v1214
        %v1216 = vpop.f32.mrf.mxu0
        %v1217 = vpop.f32.mrf.mxu0
        %v1218 = vadd.f32 %v1059, %v1217
        %v1219 = vpop.f32.mrf.mxu0
        %1220 = vmatprep.mubr.bf16.mxu0 0
        %1221 = vmatmul.mubr.bf16.gmra.mxu0 %v1017
        %v1222 = vpop.f32.mrf.mxu0
        %v1223 = vadd.f32 %v1059, %v1222
        %v1224 = vpop.f32.mrf.mxu0
        %v1225 = vpop.f32.mrf.mxu0
        %v1226 = vadd.f32 %v1059, %v1225
        %v1227 = vpop.f32.mrf.mxu0
        %1228 = vmatprep.mubr.bf16.mxu0 0
        %1229 = vmatmul.mubr.bf16.gmra.mxu0 %v1018
        %v1230 = vpop.f32.mrf.mxu0
        %v1231 = vadd.f32 %v1059, %v1230
        %v1232 = vpop.f32.mrf.mxu0
        %v1233 = vpop.f32.mrf.mxu0
        %v1234 = vadd.f32 %v1059, %v1233
        %v1235 = vpop.f32.mrf.mxu0
        %1236 = vmatprep.mubr.bf16.mxu0 0
        %1237 = vmatmul.mubr.bf16.gmra.mxu0 %v1019
        %v1238 = vpop.f32.mrf.mxu0
        %v1239 = vadd.f32 %v1059, %v1238
        %v1240 = vpop.f32.mrf.mxu0
        %v1241 = vpop.f32.mrf.mxu0
        %v1242 = vadd.f32 %v1059, %v1241
        %v1243 = vpop.f32.mrf.mxu0
        %1244 = vmatprep.mubr.bf16.mxu0 0
        %1245 = vmatmul.mubr.bf16.gmra.mxu0 %v1020
        %v1246 = vpop.f32.mrf.mxu0
        %v1247 = vadd.f32 %v1059, %v1246
        %v1248 = vpop.f32.mrf.mxu0
        %v1249 = vpop.f32.mrf.mxu0
        %v1250 = vadd.f32 %v1059, %v1249
        %v1251 = vpop.f32.mrf.mxu0
        %1252 = vmatprep.mubr.bf16.mxu0 0
        %1253 = vmatmul.mubr.bf16.gmra.mxu0 %v1021
        %v1254 = vpop.f32.mrf.mxu0
        %v1255 = vadd.f32 %v1059, %v1254
        %v1256 = vpop.f32.mrf.mxu0
        %v1257 = vpop.f32.mrf.mxu0
        %v1258 = vadd.f32 %v1059, %v1257
        %v1259 = vpop.f32.mrf.mxu0
        %1260 = vmatprep.mubr.bf16.mxu0 0
        %1261 = vmatmul.mubr.bf16.gmra.mxu0 %v1022
        %v1262 = vpop.f32.mrf.mxu0
        %v1263 = vadd.f32 %v1059, %v1262
        %v1264 = vpop.f32.mrf.mxu0
        %v1265 = vpop.f32.mrf.mxu0
        %v1266 = vadd.f32 %v1059, %v1265
        %v1267 = vpop.f32.mrf.mxu0
        %1268 = vmatprep.mubr.bf16.mxu0 0
        %1269 = vmatmul.mubr.bf16.gmra.mxu0 %v1023
        %v1270 = vpop.f32.mrf.mxu0
        %v1271 = vadd.f32 %v1059, %v1270
        %v1272 = vpop.f32.mrf.mxu0
        %v1273 = vpop.f32.mrf.mxu0
        %v1274 = vadd.f32 %v1059, %v1273
        %v1275 = vpop.f32.mrf.mxu0
        %1276 = vmatprep.mubr.bf16.mxu0 0
        %1277 = vmatmul.mubr.bf16.gmra.mxu0 %v1024
        %v1278 = vpop.f32.mrf.mxu0
        %v1279 = vadd.f32 %v1059, %v1278
        %v1280 = vpop.f32.mrf.mxu0
        %v1281 = vpop.f32.mrf.mxu0
        %v1282 = vadd.f32 %v1059, %v1281
        %v1283 = vpop.f32.mrf.mxu0
        %1284 = vmatprep.mubr.bf16.mxu0 0
        %1285 = vmatmul.mubr.bf16.gmra.mxu0 %v1025
        %v1286 = vpop.f32.mrf.mxu0
        %v1287 = vadd.f32 %v1059, %v1286
        %v1288 = vpop.f32.mrf.mxu0
        %v1289 = vpop.f32.mrf.mxu0
        %v1290 = vadd.f32 %v1059, %v1289
        %v1291 = vpop.f32.mrf.mxu0
        %1292 = vmatprep.mubr.bf16.mxu0 0
        %1293 = vmatmul.mubr.bf16.gmra.mxu0 %v1026
        %v1294 = vpop.f32.mrf.mxu0
        %v1295 = vadd.f32 %v1059, %v1294
        %v1296 = vpop.f32.mrf.mxu0
        %v1297 = vpop.f32.mrf.mxu0
        %v1298 = vadd.f32 %v1059, %v1297
        %v1299 = vpop.f32.mrf.mxu0
        %1300 = vmatprep.mubr.bf16.mxu0 0
        %1301 = vmatmul.mubr.bf16.gmra.mxu0 %v1027
        %v1302 = vpop.f32.mrf.mxu0
        %v1303 = vadd.f32 %v1059, %v1302
        %v1304 = vpop.f32.mrf.mxu0
        %v1305 = vpop.f32.mrf.mxu0
        %v1306 = vadd.f32 %v1059, %v1305
        %v1307 = vpop.f32.mrf.mxu0
        %1308 = vmatprep.mubr.bf16.mxu0 0
        %1309 = vmatmul.mubr.bf16.gmra.mxu0 %v1028
        %v1310 = vpop.f32.mrf.mxu0
        %v1311 = vadd.f32 %v1059, %v1310
        %v1312 = vpop.f32.mrf.mxu0
        %v1313 = vpop.f32.mrf.mxu0
        %v1314 = vadd.f32 %v1059, %v1313
        %v1315 = vpop.f32.mrf.mxu0
        %1316 = vmatprep.mubr.bf16.mxu0 0
        %1317 = vmatmul.mubr.bf16.gmra.mxu0 %v1029
        %v1318 = vpop.f32.mrf.mxu0
        %v1319 = vadd.f32 %v1059, %v1318
        %v1320 = vpop.f32.mrf.mxu0
        %v1321 = vpop.f32.mrf.mxu0
        %v1322 = vadd.f32 %v1059, %v1321
        %v1323 = vpop.f32.mrf.mxu0
        %1324 = vmatprep.mubr.bf16.mxu0 0
        %1325 = vmatmul.mubr.bf16.gmra.mxu0 %v1030
        %v1326 = vpop.f32.mrf.mxu0
        %v1327 = vadd.f32 %v1059, %v1326
        %v1328 = vpop.f32.mrf.mxu0
        %v1329 = vpop.f32.mrf.mxu0
        %v1330 = vadd.f32 %v1059, %v1329
        %v1331 = vpop.f32.mrf.mxu0
        %1332 = vmatprep.mubr.bf16.mxu0 0
        %1333 = vmatmul.mubr.bf16.gmra.mxu0 %v1031
        %v1334 = vpop.f32.mrf.mxu0
        %v1335 = vadd.f32 %v1059, %v1334
        %v1336 = vpop.f32.mrf.mxu0
        %v1337 = vpop.f32.mrf.mxu0
        %v1338 = vadd.f32 %v1059, %v1337
        %v1339 = vpop.f32.mrf.mxu0
        %1340 = vmatprep.mubr.bf16.mxu0 0
        %1341 = vmatmul.mubr.bf16.gmra.mxu0 %v1032
        %v1342 = vpop.f32.mrf.mxu0
        %v1343 = vadd.f32 %v1059, %v1342
        %v1344 = vpop.f32.mrf.mxu0
        %v1345 = vpop.f32.mrf.mxu0
        %v1346 = vadd.f32 %v1059, %v1345
        %v1347 = vpop.f32.mrf.mxu0
        %1348 = vmatprep.mubr.bf16.mxu0 0
        %1349 = vmatmul.mubr.bf16.gmra.mxu0 %v1033
        %v1350 = vpop.f32.mrf.mxu0
        %v1351 = vadd.f32 %v1059, %v1350
        %v1352 = vpop.f32.mrf.mxu0
        %v1353 = vpop.f32.mrf.mxu0
        %v1354 = vadd.f32 %v1059, %v1353
        %v1355 = vpop.f32.mrf.mxu0
        %1356 = vmatprep.mubr.bf16.mxu0 0
        %1357 = vmatmul.mubr.bf16.gmra.mxu0 %v1034
        %v1358 = vpop.f32.mrf.mxu0
        %v1359 = vadd.f32 %v1059, %v1358
        %v1360 = vpop.f32.mrf.mxu0
        %v1361 = vpop.f32.mrf.mxu0
        %v1362 = vadd.f32 %v1059, %v1361
        %v1363 = vpop.f32.mrf.mxu0
        %1364 = vmatprep.mubr.bf16.mxu0 0
        %1365 = vmatmul.mubr.bf16.gmra.mxu0 %v1035
        %v1366 = vpop.f32.mrf.mxu0
        %v1367 = vadd.f32 %v1059, %v1366
        %v1368 = vpop.f32.mrf.mxu0
        %v1369 = vpop.f32.mrf.mxu0
        %v1370 = vadd.f32 %v1059, %v1369
        %v1371 = vpop.f32.mrf.mxu0
        %1372 = vmatprep.mubr.bf16.mxu0 0
        %1373 = vmatmul.mubr.bf16.gmra.mxu0 %v1036
        %v1374 = vpop.f32.mrf.mxu0
        %v1375 = vadd.f32 %v1059, %v1374
        %v1376 = vpop.f32.mrf.mxu0
        %v1377 = vpop.f32.mrf.mxu0
        %v1378 = vadd.f32 %v1059, %v1377
        %v1379 = vpop.f32.mrf.mxu0
        %1380 = vmatprep.mubr.bf16.mxu0 0
        %1381 = vmatmul.mubr.bf16.gmra.mxu0 %v1037
        %v1382 = vpop.f32.mrf.mxu0
        %v1383 = vadd.f32 %v1059, %v1382
        %v1384 = vpop.f32.mrf.mxu0
        %v1385 = vpop.f32.mrf.mxu0
        %v1386 = vadd.f32 %v1059, %v1385
        %v1387 = vpop.f32.mrf.mxu0
        %1388 = vmatprep.mubr.bf16.mxu0 0
        %1389 = vmatmul.mubr.bf16.gmra.mxu0 %v1038
        %v1390 = vpop.f32.mrf.mxu0
        %v1391 = vadd.f32 %v1059, %v1390
        %v1392 = vpop.f32.mrf.mxu0
        %v1393 = vpop.f32.mrf.mxu0
        %v1394 = vadd.f32 %v1059, %v1393
        %v1395 = vpop.f32.mrf.mxu0
        %1396 = vdwg.mxu0
        %v1397 = vmax.f32 %v1143, 0.0
        %v1398 = vmax.f32 %v1146, 0.0
        %v1399 = vmax.f32 %v1151, 0.0
        %v1400 = vmax.f32 %v1154, 0.0
        %v1401 = vmax.f32 %v1159, 0.0
        %v1402 = vmax.f32 %v1162, 0.0
        %v1403 = vmax.f32 %v1167, 0.0
        %v1404 = vmax.f32 %v1170, 0.0
        %v1405 = vmax.f32 %v1175, 0.0
        %v1406 = vmax.f32 %v1178, 0.0
        %v1407 = vmax.f32 %v1183, 0.0
        %v1408 = vmax.f32 %v1186, 0.0
        %v1409 = vmax.f32 %v1191, 0.0
        %v1410 = vmax.f32 %v1194, 0.0
        %v1411 = vmax.f32 %v1199, 0.0
        %v1412 = vmax.f32 %v1202, 0.0
        %v1413 = vmax.f32 %v1207, 0.0
        %v1414 = vmax.f32 %v1210, 0.0
        %v1415 = vmax.f32 %v1215, 0.0
        %v1416 = vmax.f32 %v1218, 0.0
        %v1417 = vmax.f32 %v1223, 0.0
        %v1418 = vmax.f32 %v1226, 0.0
        %v1419 = vmax.f32 %v1231, 0.0
        %v1420 = vmax.f32 %v1234, 0.0
        %v1421 = vmax.f32 %v1239, 0.0
        %v1422 = vmax.f32 %v1242, 0.0
        %v1423 = vmax.f32 %v1247, 0.0
        %v1424 = vmax.f32 %v1250, 0.0
        %v1425 = vmax.f32 %v1255, 0.0
        %v1426 = vmax.f32 %v1258, 0.0
        %v1427 = vmax.f32 %v1263, 0.0
        %v1428 = vmax.f32 %v1266, 0.0
        %v1429 = vmax.f32 %v1271, 0.0
        %v1430 = vmax.f32 %v1274, 0.0
        %v1431 = vmax.f32 %v1279, 0.0
        %v1432 = vmax.f32 %v1282, 0.0
        %v1433 = vmax.f32 %v1287, 0.0
        %v1434 = vmax.f32 %v1290, 0.0
        %v1435 = vmax.f32 %v1295, 0.0
        %v1436 = vmax.f32 %v1298, 0.0
        %v1437 = vmax.f32 %v1303, 0.0
        %v1438 = vmax.f32 %v1306, 0.0
        %v1439 = vmax.f32 %v1311, 0.0
        %v1440 = vmax.f32 %v1314, 0.0
        %v1441 = vmax.f32 %v1319, 0.0
        %v1442 = vmax.f32 %v1322, 0.0
        %v1443 = vmax.f32 %v1327, 0.0
        %v1444 = vmax.f32 %v1330, 0.0
        %v1445 = vmax.f32 %v1335, 0.0
        %v1446 = vmax.f32 %v1338, 0.0
        %v1447 = vmax.f32 %v1343, 0.0
        %v1448 = vmax.f32 %v1346, 0.0
        %v1449 = vmax.f32 %v1351, 0.0
        %v1450 = vmax.f32 %v1354, 0.0
        %v1451 = vmax.f32 %v1359, 0.0
        %v1452 = vmax.f32 %v1362, 0.0
        %v1453 = vmax.f32 %v1367, 0.0
        %v1454 = vmax.f32 %v1370, 0.0
        %v1455 = vmax.f32 %v1375, 0.0
        %v1456 = vmax.f32 %v1378, 0.0
        %v1457 = vmax.f32 %v1383, 0.0
        %v1458 = vmax.f32 %v1386, 0.0
        %v1459 = vmax.f32 %v1391, 0.0
        %v1460 = vmax.f32 %v1394, 0.0
        %v1461 = vpack.c.bf16 %v1398, %v1397
        %v1462 = vpack.c.bf16 %v1400, %v1399
        %v1463 = vpack.c.bf16 %v1402, %v1401
        %v1464 = vpack.c.bf16 %v1404, %v1403
        %v1465 = vpack.c.bf16 %v1406, %v1405
        %v1466 = vpack.c.bf16 %v1408, %v1407
        %v1467 = vpack.c.bf16 %v1410, %v1409
        %v1468 = vpack.c.bf16 %v1412, %v1411
        %v1469 = vpack.c.bf16 %v1414, %v1413
        %v1470 = vpack.c.bf16 %v1416, %v1415
        %v1471 = vpack.c.bf16 %v1418, %v1417
        %v1472 = vpack.c.bf16 %v1420, %v1419
        %v1473 = vpack.c.bf16 %v1422, %v1421
        %v1474 = vpack.c.bf16 %v1424, %v1423
        %v1475 = vpack.c.bf16 %v1426, %v1425
        %v1476 = vpack.c.bf16 %v1428, %v1427
        %v1477 = vpack.c.bf16 %v1430, %v1429
        %v1478 = vpack.c.bf16 %v1432, %v1431
        %v1479 = vpack.c.bf16 %v1434, %v1433
        %v1480 = vpack.c.bf16 %v1436, %v1435
        %v1481 = vpack.c.bf16 %v1438, %v1437
        %v1482 = vpack.c.bf16 %v1440, %v1439
        %v1483 = vpack.c.bf16 %v1442, %v1441
        %v1484 = vpack.c.bf16 %v1444, %v1443
        %v1485 = vpack.c.bf16 %v1446, %v1445
        %v1486 = vpack.c.bf16 %v1448, %v1447
        %v1487 = vpack.c.bf16 %v1450, %v1449
        %v1488 = vpack.c.bf16 %v1452, %v1451
        %v1489 = vpack.c.bf16 %v1454, %v1453
        %v1490 = vpack.c.bf16 %v1456, %v1455
        %v1491 = vpack.c.bf16 %v1458, %v1457
        %v1492 = vpack.c.bf16 %v1460, %v1459
        %s1493 = scalar_lea.vmem [#allocation7], 64
        %v1494 = vld [vmem:[%s1493] sm:$0xf]
        %v1495 = vld [vmem:[%s1493 + $0x4] sm:$0xf]
        %v1496 = vld [vmem:[%s1493 + $0x8] sm:$0xf]
        %v1497 = vld [vmem:[%s1493 + $0xc] sm:$0xf]
        %v1498 = vld [vmem:[%s1493 + $0x10] sm:$0xf]
        %v1499 = vld [vmem:[%s1493 + $0x14] sm:$0xf]
        %v1500 = vld [vmem:[%s1493 + $0x18] sm:$0xf]
        %v1501 = vld [vmem:[%s1493 + $0x1c] sm:$0xf]
        %v1502 = vld [vmem:[%s1493 + $0x20] sm:$0xf]
        %v1503 = vld [vmem:[%s1493 + $0x24] sm:$0xf]
        %v1504 = vld [vmem:[%s1493 + $0x28] sm:$0xf]
        %v1505 = vld [vmem:[%s1493 + $0x2c] sm:$0xf]
        %v1506 = vld [vmem:[%s1493 + $0x30] sm:$0xf]
        %v1507 = vld [vmem:[%s1493 + $0x34] sm:$0xf]
        %v1508 = vld [vmem:[%s1493 + $0x38] sm:$0xf]
        %v1509 = vld [vmem:[%s1493 + $0x3c] sm:$0xf]
        %v1510 = vld [vmem:[#allocation8 + $0x2] sm:$0x1]
        %v1511 = vlaneseq
        %v1512 = vshrl.u32 %v1511, 7
        %v1513 = vsub.s32 0, %v1512
        %v1514 = vrot.slane %v1510, %v1513
        %v1531 = vunpack.c.l.b16 %v1494
        %v1532 = vunpack.c.l.b16 %v1495
        %v1533 = vunpack.c.l.b16 %v1496
        %v1534 = vunpack.c.l.b16 %v1497
        %v1535 = vunpack.c.l.b16 %v1498
        %v1536 = vunpack.c.l.b16 %v1499
        %v1537 = vunpack.c.l.b16 %v1500
        %v1538 = vunpack.c.l.b16 %v1501
        %v1539 = vunpack.c.l.b16 %v1502
        %v1540 = vunpack.c.l.b16 %v1503
        %v1541 = vunpack.c.l.b16 %v1504
        %v1542 = vunpack.c.l.b16 %v1505
        %v1543 = vunpack.c.l.b16 %v1506
        %v1544 = vunpack.c.l.b16 %v1507
        %v1545 = vunpack.c.l.b16 %v1508
        %v1546 = vunpack.c.l.b16 %v1509
        %v1547 = vpack.c.b16 %v1532, %v1531
        %v1548 = vpack.c.b16 %v1534, %v1533
        %v1549 = vpack.c.b16 %v1536, %v1535
        %v1550 = vpack.c.b16 %v1538, %v1537
        %v1551 = vpack.c.b16 %v1540, %v1539
        %v1552 = vpack.c.b16 %v1542, %v1541
        %v1553 = vpack.c.b16 %v1544, %v1543
        %v1554 = vpack.c.b16 %v1546, %v1545
        %1563 = vmatprep.subr.bf16.mxu0 0
        %1564 = vmatpush1.bf16.msra.mxu0 %v1554
        %1565 = vmatprep.subr.bf16.mxu0 0
        %1566 = vmatpush1.bf16.msra.mxu0 %v1553
        %1567 = vmatprep.subr.bf16.mxu0 0
        %1568 = vmatpush1.bf16.msra.mxu0 %v1552
        %1569 = vmatprep.subr.bf16.mxu0 0
        %1570 = vmatpush1.bf16.msra.mxu0 %v1551
        %1571 = vmatprep.subr.bf16.mxu0 0
        %1572 = vmatpush1.bf16.msra.mxu0 %v1550
        %1573 = vmatprep.subr.bf16.mxu0 0
        %1574 = vmatpush1.bf16.msra.mxu0 %v1549
        %1575 = vmatprep.subr.bf16.mxu0 0
        %1576 = vmatpush1.bf16.msra.mxu0 %v1548
        %1577 = vmatprep.subr.bf16.mxu0 0
        %1578 = vmatpush1.bf16.msra.mxu0 %v1547
        %1579 = vmatprep.subr.bf16.mxu0 0
        %1580 = vmatpush2.bf16.msra.mxu0 0
        %1581 = vmatprep.subr.bf16.mxu0 0
        %1582 = vmatpush2.bf16.msra.mxu0 0
        %1583 = vmatprep.subr.bf16.mxu0 0
        %1584 = vmatpush2.bf16.msra.mxu0 0
        %1585 = vmatprep.subr.bf16.mxu0 0
        %1586 = vmatpush2.bf16.msra.mxu0 0
        %1587 = vmatprep.subr.bf16.mxu0 0
        %1588 = vmatpush2.bf16.msra.mxu0 0
        %1589 = vmatprep.subr.bf16.mxu0 0
        %1590 = vmatpush2.bf16.msra.mxu0 0
        %1591 = vmatprep.subr.bf16.mxu0 0
        %1592 = vmatpush2.bf16.msra.mxu0 0
        %1593 = vmatprep.subr.bf16.mxu0 0
        %1594 = vmatpush2.bf16.msra.mxu0 0
        %1595 = vmatprep.mubr.bf16.mxu0 0
        %1596 = vmatmul.mubr.bf16.gmra.mxu0 %v1461
        %v1597 = vpop.f32.mrf.mxu0
        %v1598 = vadd.f32 %v1514, %v1597
        %v1599 = vpop.f32.mrf.mxu0
        %v1600 = vpop.f32.mrf.mxu0
        %v1601 = vadd.f32 %v1514, %v1600
        %v1602 = vpop.f32.mrf.mxu0
        %1603 = vmatprep.mubr.bf16.mxu0 0
        %1604 = vmatmul.mubr.bf16.gmra.mxu0 %v1462
        %v1605 = vpop.f32.mrf.mxu0
        %v1606 = vadd.f32 %v1514, %v1605
        %v1607 = vpop.f32.mrf.mxu0
        %v1608 = vpop.f32.mrf.mxu0
        %v1609 = vadd.f32 %v1514, %v1608
        %v1610 = vpop.f32.mrf.mxu0
        %1611 = vmatprep.mubr.bf16.mxu0 0
        %1612 = vmatmul.mubr.bf16.gmra.mxu0 %v1463
        %v1613 = vpop.f32.mrf.mxu0
        %v1614 = vadd.f32 %v1514, %v1613
        %v1615 = vpop.f32.mrf.mxu0
        %v1616 = vpop.f32.mrf.mxu0
        %v1617 = vadd.f32 %v1514, %v1616
        %v1618 = vpop.f32.mrf.mxu0
        %1619 = vmatprep.mubr.bf16.mxu0 0
        %1620 = vmatmul.mubr.bf16.gmra.mxu0 %v1464
        %v1621 = vpop.f32.mrf.mxu0
        %v1622 = vadd.f32 %v1514, %v1621
        %v1623 = vpop.f32.mrf.mxu0
        %v1624 = vpop.f32.mrf.mxu0
        %v1625 = vadd.f32 %v1514, %v1624
        %v1626 = vpop.f32.mrf.mxu0
        %1627 = vmatprep.mubr.bf16.mxu0 0
        %1628 = vmatmul.mubr.bf16.gmra.mxu0 %v1465
        %v1629 = vpop.f32.mrf.mxu0
        %v1630 = vadd.f32 %v1514, %v1629
        %v1631 = vpop.f32.mrf.mxu0
        %v1632 = vpop.f32.mrf.mxu0
        %v1633 = vadd.f32 %v1514, %v1632
        %v1634 = vpop.f32.mrf.mxu0
        %1635 = vmatprep.mubr.bf16.mxu0 0
        %1636 = vmatmul.mubr.bf16.gmra.mxu0 %v1466
        %v1637 = vpop.f32.mrf.mxu0
        %v1638 = vadd.f32 %v1514, %v1637
        %v1639 = vpop.f32.mrf.mxu0
        %v1640 = vpop.f32.mrf.mxu0
        %v1641 = vadd.f32 %v1514, %v1640
        %v1642 = vpop.f32.mrf.mxu0
        %1643 = vmatprep.mubr.bf16.mxu0 0
        %1644 = vmatmul.mubr.bf16.gmra.mxu0 %v1467
        %v1645 = vpop.f32.mrf.mxu0
        %v1646 = vadd.f32 %v1514, %v1645
        %v1647 = vpop.f32.mrf.mxu0
        %v1648 = vpop.f32.mrf.mxu0
        %v1649 = vadd.f32 %v1514, %v1648
        %v1650 = vpop.f32.mrf.mxu0
        %1651 = vmatprep.mubr.bf16.mxu0 0
        %1652 = vmatmul.mubr.bf16.gmra.mxu0 %v1468
        %v1653 = vpop.f32.mrf.mxu0
        %v1654 = vadd.f32 %v1514, %v1653
        %v1655 = vpop.f32.mrf.mxu0
        %v1656 = vpop.f32.mrf.mxu0
        %v1657 = vadd.f32 %v1514, %v1656
        %v1658 = vpop.f32.mrf.mxu0
        %1659 = vmatprep.mubr.bf16.mxu0 0
        %1660 = vmatmul.mubr.bf16.gmra.mxu0 %v1469
        %v1661 = vpop.f32.mrf.mxu0
        %v1662 = vadd.f32 %v1514, %v1661
        %v1663 = vpop.f32.mrf.mxu0
        %v1664 = vpop.f32.mrf.mxu0
        %v1665 = vadd.f32 %v1514, %v1664
        %v1666 = vpop.f32.mrf.mxu0
        %1667 = vmatprep.mubr.bf16.mxu0 0
        %1668 = vmatmul.mubr.bf16.gmra.mxu0 %v1470
        %v1669 = vpop.f32.mrf.mxu0
        %v1670 = vadd.f32 %v1514, %v1669
        %v1671 = vpop.f32.mrf.mxu0
        %v1672 = vpop.f32.mrf.mxu0
        %v1673 = vadd.f32 %v1514, %v1672
        %v1674 = vpop.f32.mrf.mxu0
        %1675 = vmatprep.mubr.bf16.mxu0 0
        %1676 = vmatmul.mubr.bf16.gmra.mxu0 %v1471
        %v1677 = vpop.f32.mrf.mxu0
        %v1678 = vadd.f32 %v1514, %v1677
        %v1679 = vpop.f32.mrf.mxu0
        %v1680 = vpop.f32.mrf.mxu0
        %v1681 = vadd.f32 %v1514, %v1680
        %v1682 = vpop.f32.mrf.mxu0
        %1683 = vmatprep.mubr.bf16.mxu0 0
        %1684 = vmatmul.mubr.bf16.gmra.mxu0 %v1472
        %v1685 = vpop.f32.mrf.mxu0
        %v1686 = vadd.f32 %v1514, %v1685
        %v1687 = vpop.f32.mrf.mxu0
        %v1688 = vpop.f32.mrf.mxu0
        %v1689 = vadd.f32 %v1514, %v1688
        %v1690 = vpop.f32.mrf.mxu0
        %1691 = vmatprep.mubr.bf16.mxu0 0
        %1692 = vmatmul.mubr.bf16.gmra.mxu0 %v1473
        %v1693 = vpop.f32.mrf.mxu0
        %v1694 = vadd.f32 %v1514, %v1693
        %v1695 = vpop.f32.mrf.mxu0
        %v1696 = vpop.f32.mrf.mxu0
        %v1697 = vadd.f32 %v1514, %v1696
        %v1698 = vpop.f32.mrf.mxu0
        %1699 = vmatprep.mubr.bf16.mxu0 0
        %1700 = vmatmul.mubr.bf16.gmra.mxu0 %v1474
        %v1701 = vpop.f32.mrf.mxu0
        %v1702 = vadd.f32 %v1514, %v1701
        %v1703 = vpop.f32.mrf.mxu0
        %v1704 = vpop.f32.mrf.mxu0
        %v1705 = vadd.f32 %v1514, %v1704
        %v1706 = vpop.f32.mrf.mxu0
        %1707 = vmatprep.mubr.bf16.mxu0 0
        %1708 = vmatmul.mubr.bf16.gmra.mxu0 %v1475
        %v1709 = vpop.f32.mrf.mxu0
        %v1710 = vadd.f32 %v1514, %v1709
        %v1711 = vpop.f32.mrf.mxu0
        %v1712 = vpop.f32.mrf.mxu0
        %v1713 = vadd.f32 %v1514, %v1712
        %v1714 = vpop.f32.mrf.mxu0
        %1715 = vmatprep.mubr.bf16.mxu0 0
        %1716 = vmatmul.mubr.bf16.gmra.mxu0 %v1476
        %v1717 = vpop.f32.mrf.mxu0
        %v1718 = vadd.f32 %v1514, %v1717
        %v1719 = vpop.f32.mrf.mxu0
        %v1720 = vpop.f32.mrf.mxu0
        %v1721 = vadd.f32 %v1514, %v1720
        %v1722 = vpop.f32.mrf.mxu0
        %1723 = vmatprep.mubr.bf16.mxu0 0
        %1724 = vmatmul.mubr.bf16.gmra.mxu0 %v1477
        %v1725 = vpop.f32.mrf.mxu0
        %v1726 = vadd.f32 %v1514, %v1725
        %v1727 = vpop.f32.mrf.mxu0
        %v1728 = vpop.f32.mrf.mxu0
        %v1729 = vadd.f32 %v1514, %v1728
        %v1730 = vpop.f32.mrf.mxu0
        %1731 = vmatprep.mubr.bf16.mxu0 0
        %1732 = vmatmul.mubr.bf16.gmra.mxu0 %v1478
        %v1733 = vpop.f32.mrf.mxu0
        %v1734 = vadd.f32 %v1514, %v1733
        %v1735 = vpop.f32.mrf.mxu0
        %v1736 = vpop.f32.mrf.mxu0
        %v1737 = vadd.f32 %v1514, %v1736
        %v1738 = vpop.f32.mrf.mxu0
        %1739 = vmatprep.mubr.bf16.mxu0 0
        %1740 = vmatmul.mubr.bf16.gmra.mxu0 %v1479
        %v1741 = vpop.f32.mrf.mxu0
        %v1742 = vadd.f32 %v1514, %v1741
        %v1743 = vpop.f32.mrf.mxu0
        %v1744 = vpop.f32.mrf.mxu0
        %v1745 = vadd.f32 %v1514, %v1744
        %v1746 = vpop.f32.mrf.mxu0
        %1747 = vmatprep.mubr.bf16.mxu0 0
        %1748 = vmatmul.mubr.bf16.gmra.mxu0 %v1480
        %v1749 = vpop.f32.mrf.mxu0
        %v1750 = vadd.f32 %v1514, %v1749
        %v1751 = vpop.f32.mrf.mxu0
        %v1752 = vpop.f32.mrf.mxu0
        %v1753 = vadd.f32 %v1514, %v1752
        %v1754 = vpop.f32.mrf.mxu0
        %1755 = vmatprep.mubr.bf16.mxu0 0
        %1756 = vmatmul.mubr.bf16.gmra.mxu0 %v1481
        %v1757 = vpop.f32.mrf.mxu0
        %v1758 = vadd.f32 %v1514, %v1757
        %v1759 = vpop.f32.mrf.mxu0
        %v1760 = vpop.f32.mrf.mxu0
        %v1761 = vadd.f32 %v1514, %v1760
        %v1762 = vpop.f32.mrf.mxu0
        %1763 = vmatprep.mubr.bf16.mxu0 0
        %1764 = vmatmul.mubr.bf16.gmra.mxu0 %v1482
        %v1765 = vpop.f32.mrf.mxu0
        %v1766 = vadd.f32 %v1514, %v1765
        %v1767 = vpop.f32.mrf.mxu0
        %v1768 = vpop.f32.mrf.mxu0
        %v1769 = vadd.f32 %v1514, %v1768
        %v1770 = vpop.f32.mrf.mxu0
        %1771 = vmatprep.mubr.bf16.mxu0 0
        %1772 = vmatmul.mubr.bf16.gmra.mxu0 %v1483
        %v1773 = vpop.f32.mrf.mxu0
        %v1774 = vadd.f32 %v1514, %v1773
        %v1775 = vpop.f32.mrf.mxu0
        %v1776 = vpop.f32.mrf.mxu0
        %v1777 = vadd.f32 %v1514, %v1776
        %v1778 = vpop.f32.mrf.mxu0
        %1779 = vmatprep.mubr.bf16.mxu0 0
        %1780 = vmatmul.mubr.bf16.gmra.mxu0 %v1484
        %v1781 = vpop.f32.mrf.mxu0
        %v1782 = vadd.f32 %v1514, %v1781
        %v1783 = vpop.f32.mrf.mxu0
        %v1784 = vpop.f32.mrf.mxu0
        %v1785 = vadd.f32 %v1514, %v1784
        %v1786 = vpop.f32.mrf.mxu0
        %1787 = vmatprep.mubr.bf16.mxu0 0
        %1788 = vmatmul.mubr.bf16.gmra.mxu0 %v1485
        %v1789 = vpop.f32.mrf.mxu0
        %v1790 = vadd.f32 %v1514, %v1789
        %v1791 = vpop.f32.mrf.mxu0
        %v1792 = vpop.f32.mrf.mxu0
        %v1793 = vadd.f32 %v1514, %v1792
        %v1794 = vpop.f32.mrf.mxu0
        %1795 = vmatprep.mubr.bf16.mxu0 0
        %1796 = vmatmul.mubr.bf16.gmra.mxu0 %v1486
        %v1797 = vpop.f32.mrf.mxu0
        %v1798 = vadd.f32 %v1514, %v1797
        %v1799 = vpop.f32.mrf.mxu0
        %v1800 = vpop.f32.mrf.mxu0
        %v1801 = vadd.f32 %v1514, %v1800
        %v1802 = vpop.f32.mrf.mxu0
        %1803 = vmatprep.mubr.bf16.mxu0 0
        %1804 = vmatmul.mubr.bf16.gmra.mxu0 %v1487
        %v1805 = vpop.f32.mrf.mxu0
        %v1806 = vadd.f32 %v1514, %v1805
        %v1807 = vpop.f32.mrf.mxu0
        %v1808 = vpop.f32.mrf.mxu0
        %v1809 = vadd.f32 %v1514, %v1808
        %v1810 = vpop.f32.mrf.mxu0
        %1811 = vmatprep.mubr.bf16.mxu0 0
        %1812 = vmatmul.mubr.bf16.gmra.mxu0 %v1488
        %v1813 = vpop.f32.mrf.mxu0
        %v1814 = vadd.f32 %v1514, %v1813
        %v1815 = vpop.f32.mrf.mxu0
        %v1816 = vpop.f32.mrf.mxu0
        %v1817 = vadd.f32 %v1514, %v1816
        %v1818 = vpop.f32.mrf.mxu0
        %1819 = vmatprep.mubr.bf16.mxu0 0
        %1820 = vmatmul.mubr.bf16.gmra.mxu0 %v1489
        %v1821 = vpop.f32.mrf.mxu0
        %v1822 = vadd.f32 %v1514, %v1821
        %v1823 = vpop.f32.mrf.mxu0
        %v1824 = vpop.f32.mrf.mxu0
        %v1825 = vadd.f32 %v1514, %v1824
        %v1826 = vpop.f32.mrf.mxu0
        %1827 = vmatprep.mubr.bf16.mxu0 0
        %1828 = vmatmul.mubr.bf16.gmra.mxu0 %v1490
        %v1829 = vpop.f32.mrf.mxu0
        %v1830 = vadd.f32 %v1514, %v1829
        %v1831 = vpop.f32.mrf.mxu0
        %v1832 = vpop.f32.mrf.mxu0
        %v1833 = vadd.f32 %v1514, %v1832
        %v1834 = vpop.f32.mrf.mxu0
        %1835 = vmatprep.mubr.bf16.mxu0 0
        %1836 = vmatmul.mubr.bf16.gmra.mxu0 %v1491
        %v1837 = vpop.f32.mrf.mxu0
        %v1838 = vadd.f32 %v1514, %v1837
        %v1839 = vpop.f32.mrf.mxu0
        %v1840 = vpop.f32.mrf.mxu0
        %v1841 = vadd.f32 %v1514, %v1840
        %v1842 = vpop.f32.mrf.mxu0
        %1843 = vmatprep.mubr.bf16.mxu0 0
        %1844 = vmatmul.mubr.bf16.gmra.mxu0 %v1492
        %v1845 = vpop.f32.mrf.mxu0
        %v1846 = vadd.f32 %v1514, %v1845
        %v1847 = vpop.f32.mrf.mxu0
        %v1848 = vpop.f32.mrf.mxu0
        %v1849 = vadd.f32 %v1514, %v1848
        %v1850 = vpop.f32.mrf.mxu0
        %1851 = vdwg.mxu0
        %v1852 = vmax.f32 %v1598, 0.0
        %v1853 = vmax.f32 %v1601, 0.0
        %v1854 = vmax.f32 %v1606, 0.0
        %v1855 = vmax.f32 %v1609, 0.0
        %v1856 = vmax.f32 %v1614, 0.0
        %v1857 = vmax.f32 %v1617, 0.0
        %v1858 = vmax.f32 %v1622, 0.0
        %v1859 = vmax.f32 %v1625, 0.0
        %v1860 = vmax.f32 %v1630, 0.0
        %v1861 = vmax.f32 %v1633, 0.0
        %v1862 = vmax.f32 %v1638, 0.0
        %v1863 = vmax.f32 %v1641, 0.0
        %v1864 = vmax.f32 %v1646, 0.0
        %v1865 = vmax.f32 %v1649, 0.0
        %v1866 = vmax.f32 %v1654, 0.0
        %v1867 = vmax.f32 %v1657, 0.0
        %v1868 = vmax.f32 %v1662, 0.0
        %v1869 = vmax.f32 %v1665, 0.0
        %v1870 = vmax.f32 %v1670, 0.0
        %v1871 = vmax.f32 %v1673, 0.0
        %v1872 = vmax.f32 %v1678, 0.0
        %v1873 = vmax.f32 %v1681, 0.0
        %v1874 = vmax.f32 %v1686, 0.0
        %v1875 = vmax.f32 %v1689, 0.0
        %v1876 = vmax.f32 %v1694, 0.0
        %v1877 = vmax.f32 %v1697, 0.0
        %v1878 = vmax.f32 %v1702, 0.0
        %v1879 = vmax.f32 %v1705, 0.0
        %v1880 = vmax.f32 %v1710, 0.0
        %v1881 = vmax.f32 %v1713, 0.0
        %v1882 = vmax.f32 %v1718, 0.0
        %v1883 = vmax.f32 %v1721, 0.0
        %v1884 = vmax.f32 %v1726, 0.0
        %v1885 = vmax.f32 %v1729, 0.0
        %v1886 = vmax.f32 %v1734, 0.0
        %v1887 = vmax.f32 %v1737, 0.0
        %v1888 = vmax.f32 %v1742, 0.0
        %v1889 = vmax.f32 %v1745, 0.0
        %v1890 = vmax.f32 %v1750, 0.0
        %v1891 = vmax.f32 %v1753, 0.0
        %v1892 = vmax.f32 %v1758, 0.0
        %v1893 = vmax.f32 %v1761, 0.0
        %v1894 = vmax.f32 %v1766, 0.0
        %v1895 = vmax.f32 %v1769, 0.0
        %v1896 = vmax.f32 %v1774, 0.0
        %v1897 = vmax.f32 %v1777, 0.0
        %v1898 = vmax.f32 %v1782, 0.0
        %v1899 = vmax.f32 %v1785, 0.0
        %v1900 = vmax.f32 %v1790, 0.0
        %v1901 = vmax.f32 %v1793, 0.0
        %v1902 = vmax.f32 %v1798, 0.0
        %v1903 = vmax.f32 %v1801, 0.0
        %v1904 = vmax.f32 %v1806, 0.0
        %v1905 = vmax.f32 %v1809, 0.0
        %v1906 = vmax.f32 %v1814, 0.0
        %v1907 = vmax.f32 %v1817, 0.0
        %v1908 = vmax.f32 %v1822, 0.0
        %v1909 = vmax.f32 %v1825, 0.0
        %v1910 = vmax.f32 %v1830, 0.0
        %v1911 = vmax.f32 %v1833, 0.0
        %v1912 = vmax.f32 %v1838, 0.0
        %v1913 = vmax.f32 %v1841, 0.0
        %v1914 = vmax.f32 %v1846, 0.0
        %v1915 = vmax.f32 %v1849, 0.0
        %v1916 = vpack.c.bf16 %v1853, %v1852
        %v1917 = vpack.c.bf16 %v1855, %v1854
        %v1918 = vpack.c.bf16 %v1857, %v1856
        %v1919 = vpack.c.bf16 %v1859, %v1858
        %v1920 = vpack.c.bf16 %v1861, %v1860
        %v1921 = vpack.c.bf16 %v1863, %v1862
        %v1922 = vpack.c.bf16 %v1865, %v1864
        %v1923 = vpack.c.bf16 %v1867, %v1866
        %v1924 = vpack.c.bf16 %v1869, %v1868
        %v1925 = vpack.c.bf16 %v1871, %v1870
        %v1926 = vpack.c.bf16 %v1873, %v1872
        %v1927 = vpack.c.bf16 %v1875, %v1874
        %v1928 = vpack.c.bf16 %v1877, %v1876
        %v1929 = vpack.c.bf16 %v1879, %v1878
        %v1930 = vpack.c.bf16 %v1881, %v1880
        %v1931 = vpack.c.bf16 %v1883, %v1882
        %v1932 = vpack.c.bf16 %v1885, %v1884
        %v1933 = vpack.c.bf16 %v1887, %v1886
        %v1934 = vpack.c.bf16 %v1889, %v1888
        %v1935 = vpack.c.bf16 %v1891, %v1890
        %v1936 = vpack.c.bf16 %v1893, %v1892
        %v1937 = vpack.c.bf16 %v1895, %v1894
        %v1938 = vpack.c.bf16 %v1897, %v1896
        %v1939 = vpack.c.bf16 %v1899, %v1898
        %v1940 = vpack.c.bf16 %v1901, %v1900
        %v1941 = vpack.c.bf16 %v1903, %v1902
        %v1942 = vpack.c.bf16 %v1905, %v1904
        %v1943 = vpack.c.bf16 %v1907, %v1906
        %v1944 = vpack.c.bf16 %v1909, %v1908
        %v1945 = vpack.c.bf16 %v1911, %v1910
        %v1946 = vpack.c.bf16 %v1913, %v1912
        %v1947 = vpack.c.bf16 %v1915, %v1914
        %s1948 = scalar_lea.vmem [#allocation7], 128
        %v1949 = vld [vmem:[%s1948] sm:$0xf]
        %v1950 = vld [vmem:[%s1948 + $0x4] sm:$0xf]
        %v1951 = vld [vmem:[%s1948 + $0x8] sm:$0xf]
        %v1952 = vld [vmem:[%s1948 + $0xc] sm:$0xf]
        %v1953 = vld [vmem:[%s1948 + $0x10] sm:$0xf]
        %v1954 = vld [vmem:[%s1948 + $0x14] sm:$0xf]
        %v1955 = vld [vmem:[%s1948 + $0x18] sm:$0xf]
        %v1956 = vld [vmem:[%s1948 + $0x1c] sm:$0xf]
        %v1957 = vld [vmem:[%s1948 + $0x20] sm:$0xf]
        %v1958 = vld [vmem:[%s1948 + $0x24] sm:$0xf]
        %v1959 = vld [vmem:[%s1948 + $0x28] sm:$0xf]
        %v1960 = vld [vmem:[%s1948 + $0x2c] sm:$0xf]
        %v1961 = vld [vmem:[%s1948 + $0x30] sm:$0xf]
        %v1962 = vld [vmem:[%s1948 + $0x34] sm:$0xf]
        %v1963 = vld [vmem:[%s1948 + $0x38] sm:$0xf]
        %v1964 = vld [vmem:[%s1948 + $0x3c] sm:$0xf]
        %v1965 = vld [vmem:[#allocation8 + $0x3] sm:$0x1]
        %v1966 = vlaneseq
        %v1967 = vshrl.u32 %v1966, 7
        %v1968 = vsub.s32 0, %v1967
        %v1969 = vrot.slane %v1965, %v1968
        %v1986 = vunpack.c.l.b16 %v1949
        %v1987 = vunpack.c.l.b16 %v1950
        %v1988 = vunpack.c.l.b16 %v1951
        %v1989 = vunpack.c.l.b16 %v1952
        %v1990 = vunpack.c.l.b16 %v1953
        %v1991 = vunpack.c.l.b16 %v1954
        %v1992 = vunpack.c.l.b16 %v1955
        %v1993 = vunpack.c.l.b16 %v1956
        %v1994 = vunpack.c.l.b16 %v1957
        %v1995 = vunpack.c.l.b16 %v1958
        %v1996 = vunpack.c.l.b16 %v1959
        %v1997 = vunpack.c.l.b16 %v1960
        %v1998 = vunpack.c.l.b16 %v1961
        %v1999 = vunpack.c.l.b16 %v1962
        %v2000 = vunpack.c.l.b16 %v1963
        %v2001 = vunpack.c.l.b16 %v1964
        %v2002 = vpack.c.b16 %v1987, %v1986
        %v2003 = vpack.c.b16 %v1989, %v1988
        %v2004 = vpack.c.b16 %v1991, %v1990
        %v2005 = vpack.c.b16 %v1993, %v1992
        %v2006 = vpack.c.b16 %v1995, %v1994
        %v2007 = vpack.c.b16 %v1997, %v1996
        %v2008 = vpack.c.b16 %v1999, %v1998
        %v2009 = vpack.c.b16 %v2001, %v2000
        %2018 = vmatprep.subr.bf16.mxu0 0
        %2019 = vmatpush1.bf16.msra.mxu0 %v2009
        %2020 = vmatprep.subr.bf16.mxu0 0
        %2021 = vmatpush1.bf16.msra.mxu0 %v2008
        %2022 = vmatprep.subr.bf16.mxu0 0
        %2023 = vmatpush1.bf16.msra.mxu0 %v2007
        %2024 = vmatprep.subr.bf16.mxu0 0
        %2025 = vmatpush1.bf16.msra.mxu0 %v2006
        %2026 = vmatprep.subr.bf16.mxu0 0
        %2027 = vmatpush1.bf16.msra.mxu0 %v2005
        %2028 = vmatprep.subr.bf16.mxu0 0
        %2029 = vmatpush1.bf16.msra.mxu0 %v2004
        %2030 = vmatprep.subr.bf16.mxu0 0
        %2031 = vmatpush1.bf16.msra.mxu0 %v2003
        %2032 = vmatprep.subr.bf16.mxu0 0
        %2033 = vmatpush1.bf16.msra.mxu0 %v2002
        %2034 = vmatprep.subr.bf16.mxu0 0
        %2035 = vmatpush2.bf16.msra.mxu0 0
        %2036 = vmatprep.subr.bf16.mxu0 0
        %2037 = vmatpush2.bf16.msra.mxu0 0
        %2038 = vmatprep.subr.bf16.mxu0 0
        %2039 = vmatpush2.bf16.msra.mxu0 0
        %2040 = vmatprep.subr.bf16.mxu0 0
        %2041 = vmatpush2.bf16.msra.mxu0 0
        %2042 = vmatprep.subr.bf16.mxu0 0
        %2043 = vmatpush2.bf16.msra.mxu0 0
        %2044 = vmatprep.subr.bf16.mxu0 0
        %2045 = vmatpush2.bf16.msra.mxu0 0
        %2046 = vmatprep.subr.bf16.mxu0 0
        %2047 = vmatpush2.bf16.msra.mxu0 0
        %2048 = vmatprep.subr.bf16.mxu0 0
        %2049 = vmatpush2.bf16.msra.mxu0 0
        %2050 = vmatprep.mubr.bf16.mxu0 0
        %2051 = vmatmul.mubr.bf16.gmra.mxu0 %v1916
        %v2052 = vpop.f32.mrf.mxu0
        %v2053 = vadd.f32 %v1969, %v2052
        %v2054 = vpop.f32.mrf.mxu0
        %v2055 = vpop.f32.mrf.mxu0
        %v2056 = vadd.f32 %v1969, %v2055
        %v2057 = vpop.f32.mrf.mxu0
        %2058 = vmatprep.mubr.bf16.mxu0 0
        %2059 = vmatmul.mubr.bf16.gmra.mxu0 %v1917
        %v2060 = vpop.f32.mrf.mxu0
        %v2061 = vadd.f32 %v1969, %v2060
        %v2062 = vpop.f32.mrf.mxu0
        %v2063 = vpop.f32.mrf.mxu0
        %v2064 = vadd.f32 %v1969, %v2063
        %v2065 = vpop.f32.mrf.mxu0
        %2066 = vmatprep.mubr.bf16.mxu0 0
        %2067 = vmatmul.mubr.bf16.gmra.mxu0 %v1918
        %v2068 = vpop.f32.mrf.mxu0
        %v2069 = vadd.f32 %v1969, %v2068
        %v2070 = vpop.f32.mrf.mxu0
        %v2071 = vpop.f32.mrf.mxu0
        %v2072 = vadd.f32 %v1969, %v2071
        %v2073 = vpop.f32.mrf.mxu0
        %2074 = vmatprep.mubr.bf16.mxu0 0
        %2075 = vmatmul.mubr.bf16.gmra.mxu0 %v1919
        %v2076 = vpop.f32.mrf.mxu0
        %v2077 = vadd.f32 %v1969, %v2076
        %v2078 = vpop.f32.mrf.mxu0
        %v2079 = vpop.f32.mrf.mxu0
        %v2080 = vadd.f32 %v1969, %v2079
        %v2081 = vpop.f32.mrf.mxu0
        %2082 = vmatprep.mubr.bf16.mxu0 0
        %2083 = vmatmul.mubr.bf16.gmra.mxu0 %v1920
        %v2084 = vpop.f32.mrf.mxu0
        %v2085 = vadd.f32 %v1969, %v2084
        %v2086 = vpop.f32.mrf.mxu0
        %v2087 = vpop.f32.mrf.mxu0
        %v2088 = vadd.f32 %v1969, %v2087
        %v2089 = vpop.f32.mrf.mxu0
        %2090 = vmatprep.mubr.bf16.mxu0 0
        %2091 = vmatmul.mubr.bf16.gmra.mxu0 %v1921
        %v2092 = vpop.f32.mrf.mxu0
        %v2093 = vadd.f32 %v1969, %v2092
        %v2094 = vpop.f32.mrf.mxu0
        %v2095 = vpop.f32.mrf.mxu0
        %v2096 = vadd.f32 %v1969, %v2095
        %v2097 = vpop.f32.mrf.mxu0
        %2098 = vmatprep.mubr.bf16.mxu0 0
        %2099 = vmatmul.mubr.bf16.gmra.mxu0 %v1922
        %v2100 = vpop.f32.mrf.mxu0
        %v2101 = vadd.f32 %v1969, %v2100
        %v2102 = vpop.f32.mrf.mxu0
        %v2103 = vpop.f32.mrf.mxu0
        %v2104 = vadd.f32 %v1969, %v2103
        %v2105 = vpop.f32.mrf.mxu0
        %2106 = vmatprep.mubr.bf16.mxu0 0
        %2107 = vmatmul.mubr.bf16.gmra.mxu0 %v1923
        %v2108 = vpop.f32.mrf.mxu0
        %v2109 = vadd.f32 %v1969, %v2108
        %v2110 = vpop.f32.mrf.mxu0
        %v2111 = vpop.f32.mrf.mxu0
        %v2112 = vadd.f32 %v1969, %v2111
        %v2113 = vpop.f32.mrf.mxu0
        %2114 = vmatprep.mubr.bf16.mxu0 0
        %2115 = vmatmul.mubr.bf16.gmra.mxu0 %v1924
        %v2116 = vpop.f32.mrf.mxu0
        %v2117 = vadd.f32 %v1969, %v2116
        %v2118 = vpop.f32.mrf.mxu0
        %v2119 = vpop.f32.mrf.mxu0
        %v2120 = vadd.f32 %v1969, %v2119
        %v2121 = vpop.f32.mrf.mxu0
        %2122 = vmatprep.mubr.bf16.mxu0 0
        %2123 = vmatmul.mubr.bf16.gmra.mxu0 %v1925
        %v2124 = vpop.f32.mrf.mxu0
        %v2125 = vadd.f32 %v1969, %v2124
        %v2126 = vpop.f32.mrf.mxu0
        %v2127 = vpop.f32.mrf.mxu0
        %v2128 = vadd.f32 %v1969, %v2127
        %v2129 = vpop.f32.mrf.mxu0
        %2130 = vmatprep.mubr.bf16.mxu0 0
        %2131 = vmatmul.mubr.bf16.gmra.mxu0 %v1926
        %v2132 = vpop.f32.mrf.mxu0
        %v2133 = vadd.f32 %v1969, %v2132
        %v2134 = vpop.f32.mrf.mxu0
        %v2135 = vpop.f32.mrf.mxu0
        %v2136 = vadd.f32 %v1969, %v2135
        %v2137 = vpop.f32.mrf.mxu0
        %2138 = vmatprep.mubr.bf16.mxu0 0
        %2139 = vmatmul.mubr.bf16.gmra.mxu0 %v1927
        %v2140 = vpop.f32.mrf.mxu0
        %v2141 = vadd.f32 %v1969, %v2140
        %v2142 = vpop.f32.mrf.mxu0
        %v2143 = vpop.f32.mrf.mxu0
        %v2144 = vadd.f32 %v1969, %v2143
        %v2145 = vpop.f32.mrf.mxu0
        %2146 = vmatprep.mubr.bf16.mxu0 0
        %2147 = vmatmul.mubr.bf16.gmra.mxu0 %v1928
        %v2148 = vpop.f32.mrf.mxu0
        %v2149 = vadd.f32 %v1969, %v2148
        %v2150 = vpop.f32.mrf.mxu0
        %v2151 = vpop.f32.mrf.mxu0
        %v2152 = vadd.f32 %v1969, %v2151
        %v2153 = vpop.f32.mrf.mxu0
        %2154 = vmatprep.mubr.bf16.mxu0 0
        %2155 = vmatmul.mubr.bf16.gmra.mxu0 %v1929
        %v2156 = vpop.f32.mrf.mxu0
        %v2157 = vadd.f32 %v1969, %v2156
        %v2158 = vpop.f32.mrf.mxu0
        %v2159 = vpop.f32.mrf.mxu0
        %v2160 = vadd.f32 %v1969, %v2159
        %v2161 = vpop.f32.mrf.mxu0
        %2162 = vmatprep.mubr.bf16.mxu0 0
        %2163 = vmatmul.mubr.bf16.gmra.mxu0 %v1930
        %v2164 = vpop.f32.mrf.mxu0
        %v2165 = vadd.f32 %v1969, %v2164
        %v2166 = vpop.f32.mrf.mxu0
        %v2167 = vpop.f32.mrf.mxu0
        %v2168 = vadd.f32 %v1969, %v2167
        %v2169 = vpop.f32.mrf.mxu0
        %2170 = vmatprep.mubr.bf16.mxu0 0
        %2171 = vmatmul.mubr.bf16.gmra.mxu0 %v1931
        %v2172 = vpop.f32.mrf.mxu0
        %v2173 = vadd.f32 %v1969, %v2172
        %v2174 = vpop.f32.mrf.mxu0
        %v2175 = vpop.f32.mrf.mxu0
        %v2176 = vadd.f32 %v1969, %v2175
        %v2177 = vpop.f32.mrf.mxu0
        %2178 = vmatprep.mubr.bf16.mxu0 0
        %2179 = vmatmul.mubr.bf16.gmra.mxu0 %v1932
        %v2180 = vpop.f32.mrf.mxu0
        %v2181 = vadd.f32 %v1969, %v2180
        %v2182 = vpop.f32.mrf.mxu0
        %v2183 = vpop.f32.mrf.mxu0
        %v2184 = vadd.f32 %v1969, %v2183
        %v2185 = vpop.f32.mrf.mxu0
        %2186 = vmatprep.mubr.bf16.mxu0 0
        %2187 = vmatmul.mubr.bf16.gmra.mxu0 %v1933
        %v2188 = vpop.f32.mrf.mxu0
        %v2189 = vadd.f32 %v1969, %v2188
        %v2190 = vpop.f32.mrf.mxu0
        %v2191 = vpop.f32.mrf.mxu0
        %v2192 = vadd.f32 %v1969, %v2191
        %v2193 = vpop.f32.mrf.mxu0
        %2194 = vmatprep.mubr.bf16.mxu0 0
        %2195 = vmatmul.mubr.bf16.gmra.mxu0 %v1934
        %v2196 = vpop.f32.mrf.mxu0
        %v2197 = vadd.f32 %v1969, %v2196
        %v2198 = vpop.f32.mrf.mxu0
        %v2199 = vpop.f32.mrf.mxu0
        %v2200 = vadd.f32 %v1969, %v2199
        %v2201 = vpop.f32.mrf.mxu0
        %2202 = vmatprep.mubr.bf16.mxu0 0
        %2203 = vmatmul.mubr.bf16.gmra.mxu0 %v1935
        %v2204 = vpop.f32.mrf.mxu0
        %v2205 = vadd.f32 %v1969, %v2204
        %v2206 = vpop.f32.mrf.mxu0
        %v2207 = vpop.f32.mrf.mxu0
        %v2208 = vadd.f32 %v1969, %v2207
        %v2209 = vpop.f32.mrf.mxu0
        %2210 = vmatprep.mubr.bf16.mxu0 0
        %2211 = vmatmul.mubr.bf16.gmra.mxu0 %v1936
        %v2212 = vpop.f32.mrf.mxu0
        %v2213 = vadd.f32 %v1969, %v2212
        %v2214 = vpop.f32.mrf.mxu0
        %v2215 = vpop.f32.mrf.mxu0
        %v2216 = vadd.f32 %v1969, %v2215
        %v2217 = vpop.f32.mrf.mxu0
        %2218 = vmatprep.mubr.bf16.mxu0 0
        %2219 = vmatmul.mubr.bf16.gmra.mxu0 %v1937
        %v2220 = vpop.f32.mrf.mxu0
        %v2221 = vadd.f32 %v1969, %v2220
        %v2222 = vpop.f32.mrf.mxu0
        %v2223 = vpop.f32.mrf.mxu0
        %v2224 = vadd.f32 %v1969, %v2223
        %v2225 = vpop.f32.mrf.mxu0
        %2226 = vmatprep.mubr.bf16.mxu0 0
        %2227 = vmatmul.mubr.bf16.gmra.mxu0 %v1938
        %v2228 = vpop.f32.mrf.mxu0
        %v2229 = vadd.f32 %v1969, %v2228
        %v2230 = vpop.f32.mrf.mxu0
        %v2231 = vpop.f32.mrf.mxu0
        %v2232 = vadd.f32 %v1969, %v2231
        %v2233 = vpop.f32.mrf.mxu0
        %2234 = vmatprep.mubr.bf16.mxu0 0
        %2235 = vmatmul.mubr.bf16.gmra.mxu0 %v1939
        %v2236 = vpop.f32.mrf.mxu0
        %v2237 = vadd.f32 %v1969, %v2236
        %v2238 = vpop.f32.mrf.mxu0
        %v2239 = vpop.f32.mrf.mxu0
        %v2240 = vadd.f32 %v1969, %v2239
        %v2241 = vpop.f32.mrf.mxu0
        %2242 = vmatprep.mubr.bf16.mxu0 0
        %2243 = vmatmul.mubr.bf16.gmra.mxu0 %v1940
        %v2244 = vpop.f32.mrf.mxu0
        %v2245 = vadd.f32 %v1969, %v2244
        %v2246 = vpop.f32.mrf.mxu0
        %v2247 = vpop.f32.mrf.mxu0
        %v2248 = vadd.f32 %v1969, %v2247
        %v2249 = vpop.f32.mrf.mxu0
        %2250 = vmatprep.mubr.bf16.mxu0 0
        %2251 = vmatmul.mubr.bf16.gmra.mxu0 %v1941
        %v2252 = vpop.f32.mrf.mxu0
        %v2253 = vadd.f32 %v1969, %v2252
        %v2254 = vpop.f32.mrf.mxu0
        %v2255 = vpop.f32.mrf.mxu0
        %v2256 = vadd.f32 %v1969, %v2255
        %v2257 = vpop.f32.mrf.mxu0
        %2258 = vmatprep.mubr.bf16.mxu0 0
        %2259 = vmatmul.mubr.bf16.gmra.mxu0 %v1942
        %v2260 = vpop.f32.mrf.mxu0
        %v2261 = vadd.f32 %v1969, %v2260
        %v2262 = vpop.f32.mrf.mxu0
        %v2263 = vpop.f32.mrf.mxu0
        %v2264 = vadd.f32 %v1969, %v2263
        %v2265 = vpop.f32.mrf.mxu0
        %2266 = vmatprep.mubr.bf16.mxu0 0
        %2267 = vmatmul.mubr.bf16.gmra.mxu0 %v1943
        %v2268 = vpop.f32.mrf.mxu0
        %v2269 = vadd.f32 %v1969, %v2268
        %v2270 = vpop.f32.mrf.mxu0
        %v2271 = vpop.f32.mrf.mxu0
        %v2272 = vadd.f32 %v1969, %v2271
        %v2273 = vpop.f32.mrf.mxu0
        %2274 = vmatprep.mubr.bf16.mxu0 0
        %2275 = vmatmul.mubr.bf16.gmra.mxu0 %v1944
        %v2276 = vpop.f32.mrf.mxu0
        %v2277 = vadd.f32 %v1969, %v2276
        %v2278 = vpop.f32.mrf.mxu0
        %v2279 = vpop.f32.mrf.mxu0
        %v2280 = vadd.f32 %v1969, %v2279
        %v2281 = vpop.f32.mrf.mxu0
        %2282 = vmatprep.mubr.bf16.mxu0 0
        %2283 = vmatmul.mubr.bf16.gmra.mxu0 %v1945
        %v2284 = vpop.f32.mrf.mxu0
        %v2285 = vadd.f32 %v1969, %v2284
        %v2286 = vpop.f32.mrf.mxu0
        %v2287 = vpop.f32.mrf.mxu0
        %v2288 = vadd.f32 %v1969, %v2287
        %v2289 = vpop.f32.mrf.mxu0
        %2290 = vmatprep.mubr.bf16.mxu0 0
        %2291 = vmatmul.mubr.bf16.gmra.mxu0 %v1946
        %v2292 = vpop.f32.mrf.mxu0
        %v2293 = vadd.f32 %v1969, %v2292
        %v2294 = vpop.f32.mrf.mxu0
        %v2295 = vpop.f32.mrf.mxu0
        %v2296 = vadd.f32 %v1969, %v2295
        %v2297 = vpop.f32.mrf.mxu0
        %2298 = vmatprep.mubr.bf16.mxu0 0
        %2299 = vmatmul.mubr.bf16.gmra.mxu0 %v1947
        %v2300 = vpop.f32.mrf.mxu0
        %v2301 = vadd.f32 %v1969, %v2300
        %v2302 = vpop.f32.mrf.mxu0
        %v2303 = vpop.f32.mrf.mxu0
        %v2304 = vadd.f32 %v1969, %v2303
        %v2305 = vpop.f32.mrf.mxu0
        %2306 = vdwg.mxu0
        %v2307 = vmax.f32 %v2053, 0.0
        %v2308 = vmax.f32 %v2056, 0.0
        %v2309 = vmax.f32 %v2061, 0.0
        %v2310 = vmax.f32 %v2064, 0.0
        %v2311 = vmax.f32 %v2069, 0.0
        %v2312 = vmax.f32 %v2072, 0.0
        %v2313 = vmax.f32 %v2077, 0.0
        %v2314 = vmax.f32 %v2080, 0.0
        %v2315 = vmax.f32 %v2085, 0.0
        %v2316 = vmax.f32 %v2088, 0.0
        %v2317 = vmax.f32 %v2093, 0.0
        %v2318 = vmax.f32 %v2096, 0.0
        %v2319 = vmax.f32 %v2101, 0.0
        %v2320 = vmax.f32 %v2104, 0.0
        %v2321 = vmax.f32 %v2109, 0.0
        %v2322 = vmax.f32 %v2112, 0.0
        %v2323 = vmax.f32 %v2117, 0.0
        %v2324 = vmax.f32 %v2120, 0.0
        %v2325 = vmax.f32 %v2125, 0.0
        %v2326 = vmax.f32 %v2128, 0.0
        %v2327 = vmax.f32 %v2133, 0.0
        %v2328 = vmax.f32 %v2136, 0.0
        %v2329 = vmax.f32 %v2141, 0.0
        %v2330 = vmax.f32 %v2144, 0.0
        %v2331 = vmax.f32 %v2149, 0.0
        %v2332 = vmax.f32 %v2152, 0.0
        %v2333 = vmax.f32 %v2157, 0.0
        %v2334 = vmax.f32 %v2160, 0.0
        %v2335 = vmax.f32 %v2165, 0.0
        %v2336 = vmax.f32 %v2168, 0.0
        %v2337 = vmax.f32 %v2173, 0.0
        %v2338 = vmax.f32 %v2176, 0.0
        %v2339 = vmax.f32 %v2181, 0.0
        %v2340 = vmax.f32 %v2184, 0.0
        %v2341 = vmax.f32 %v2189, 0.0
        %v2342 = vmax.f32 %v2192, 0.0
        %v2343 = vmax.f32 %v2197, 0.0
        %v2344 = vmax.f32 %v2200, 0.0
        %v2345 = vmax.f32 %v2205, 0.0
        %v2346 = vmax.f32 %v2208, 0.0
        %v2347 = vmax.f32 %v2213, 0.0
        %v2348 = vmax.f32 %v2216, 0.0
        %v2349 = vmax.f32 %v2221, 0.0
        %v2350 = vmax.f32 %v2224, 0.0
        %v2351 = vmax.f32 %v2229, 0.0
        %v2352 = vmax.f32 %v2232, 0.0
        %v2353 = vmax.f32 %v2237, 0.0
        %v2354 = vmax.f32 %v2240, 0.0
        %v2355 = vmax.f32 %v2245, 0.0
        %v2356 = vmax.f32 %v2248, 0.0
        %v2357 = vmax.f32 %v2253, 0.0
        %v2358 = vmax.f32 %v2256, 0.0
        %v2359 = vmax.f32 %v2261, 0.0
        %v2360 = vmax.f32 %v2264, 0.0
        %v2361 = vmax.f32 %v2269, 0.0
        %v2362 = vmax.f32 %v2272, 0.0
        %v2363 = vmax.f32 %v2277, 0.0
        %v2364 = vmax.f32 %v2280, 0.0
        %v2365 = vmax.f32 %v2285, 0.0
        %v2366 = vmax.f32 %v2288, 0.0
        %v2367 = vmax.f32 %v2293, 0.0
        %v2368 = vmax.f32 %v2296, 0.0
        %v2369 = vmax.f32 %v2301, 0.0
        %v2370 = vmax.f32 %v2304, 0.0
        %v2371 = vpack.c.bf16 %v2308, %v2307
        %v2372 = vpack.c.bf16 %v2310, %v2309
        %v2373 = vpack.c.bf16 %v2312, %v2311
        %v2374 = vpack.c.bf16 %v2314, %v2313
        %v2375 = vpack.c.bf16 %v2316, %v2315
        %v2376 = vpack.c.bf16 %v2318, %v2317
        %v2377 = vpack.c.bf16 %v2320, %v2319
        %v2378 = vpack.c.bf16 %v2322, %v2321
        %v2379 = vpack.c.bf16 %v2324, %v2323
        %v2380 = vpack.c.bf16 %v2326, %v2325
        %v2381 = vpack.c.bf16 %v2328, %v2327
        %v2382 = vpack.c.bf16 %v2330, %v2329
        %v2383 = vpack.c.bf16 %v2332, %v2331
        %v2384 = vpack.c.bf16 %v2334, %v2333
        %v2385 = vpack.c.bf16 %v2336, %v2335
        %v2386 = vpack.c.bf16 %v2338, %v2337
        %v2387 = vpack.c.bf16 %v2340, %v2339
        %v2388 = vpack.c.bf16 %v2342, %v2341
        %v2389 = vpack.c.bf16 %v2344, %v2343
        %v2390 = vpack.c.bf16 %v2346, %v2345
        %v2391 = vpack.c.bf16 %v2348, %v2347
        %v2392 = vpack.c.bf16 %v2350, %v2349
        %v2393 = vpack.c.bf16 %v2352, %v2351
        %v2394 = vpack.c.bf16 %v2354, %v2353
        %v2395 = vpack.c.bf16 %v2356, %v2355
        %v2396 = vpack.c.bf16 %v2358, %v2357
        %v2397 = vpack.c.bf16 %v2360, %v2359
        %v2398 = vpack.c.bf16 %v2362, %v2361
        %v2399 = vpack.c.bf16 %v2364, %v2363
        %v2400 = vpack.c.bf16 %v2366, %v2365
        %v2401 = vpack.c.bf16 %v2368, %v2367
        %v2402 = vpack.c.bf16 %v2370, %v2369
        %s2403 = scalar_lea.vmem [#allocation7], 192
        %v2404 = vld [vmem:[%s2403] sm:$0xf]
        %v2405 = vld [vmem:[%s2403 + $0x4] sm:$0xf]
        %v2406 = vld [vmem:[%s2403 + $0x8] sm:$0xf]
        %v2407 = vld [vmem:[%s2403 + $0xc] sm:$0xf]
        %v2408 = vld [vmem:[%s2403 + $0x10] sm:$0xf]
        %v2409 = vld [vmem:[%s2403 + $0x14] sm:$0xf]
        %v2410 = vld [vmem:[%s2403 + $0x18] sm:$0xf]
        %v2411 = vld [vmem:[%s2403 + $0x1c] sm:$0xf]
        %v2412 = vld [vmem:[%s2403 + $0x20] sm:$0xf]
        %v2413 = vld [vmem:[%s2403 + $0x24] sm:$0xf]
        %v2414 = vld [vmem:[%s2403 + $0x28] sm:$0xf]
        %v2415 = vld [vmem:[%s2403 + $0x2c] sm:$0xf]
        %v2416 = vld [vmem:[%s2403 + $0x30] sm:$0xf]
        %v2417 = vld [vmem:[%s2403 + $0x34] sm:$0xf]
        %v2418 = vld [vmem:[%s2403 + $0x38] sm:$0xf]
        %v2419 = vld [vmem:[%s2403 + $0x3c] sm:$0xf]
        %v2420 = vld [vmem:[#allocation8 + $0x4] sm:$0x1]
        %v2421 = vlaneseq
        %v2422 = vshrl.u32 %v2421, 7
        %v2423 = vsub.s32 0, %v2422
        %v2424 = vrot.slane %v2420, %v2423
        %v2441 = vunpack.c.l.b16 %v2404
        %v2442 = vunpack.c.l.b16 %v2405
        %v2443 = vunpack.c.l.b16 %v2406
        %v2444 = vunpack.c.l.b16 %v2407
        %v2445 = vunpack.c.l.b16 %v2408
        %v2446 = vunpack.c.l.b16 %v2409
        %v2447 = vunpack.c.l.b16 %v2410
        %v2448 = vunpack.c.l.b16 %v2411
        %v2449 = vunpack.c.l.b16 %v2412
        %v2450 = vunpack.c.l.b16 %v2413
        %v2451 = vunpack.c.l.b16 %v2414
        %v2452 = vunpack.c.l.b16 %v2415
        %v2453 = vunpack.c.l.b16 %v2416
        %v2454 = vunpack.c.l.b16 %v2417
        %v2455 = vunpack.c.l.b16 %v2418
        %v2456 = vunpack.c.l.b16 %v2419
        %v2457 = vpack.c.b16 %v2442, %v2441
        %v2458 = vpack.c.b16 %v2444, %v2443
        %v2459 = vpack.c.b16 %v2446, %v2445
        %v2460 = vpack.c.b16 %v2448, %v2447
        %v2461 = vpack.c.b16 %v2450, %v2449
        %v2462 = vpack.c.b16 %v2452, %v2451
        %v2463 = vpack.c.b16 %v2454, %v2453
        %v2464 = vpack.c.b16 %v2456, %v2455
        %2473 = vmatprep.subr.bf16.mxu0 0
        %2474 = vmatpush1.bf16.msra.mxu0 %v2464
        %2475 = vmatprep.subr.bf16.mxu0 0
        %2476 = vmatpush1.bf16.msra.mxu0 %v2463
        %2477 = vmatprep.subr.bf16.mxu0 0
        %2478 = vmatpush1.bf16.msra.mxu0 %v2462
        %2479 = vmatprep.subr.bf16.mxu0 0
        %2480 = vmatpush1.bf16.msra.mxu0 %v2461
        %2481 = vmatprep.subr.bf16.mxu0 0
        %2482 = vmatpush1.bf16.msra.mxu0 %v2460
        %2483 = vmatprep.subr.bf16.mxu0 0
        %2484 = vmatpush1.bf16.msra.mxu0 %v2459
        %2485 = vmatprep.subr.bf16.mxu0 0
        %2486 = vmatpush1.bf16.msra.mxu0 %v2458
        %2487 = vmatprep.subr.bf16.mxu0 0
        %2488 = vmatpush1.bf16.msra.mxu0 %v2457
        %2489 = vmatprep.subr.bf16.mxu0 0
        %2490 = vmatpush2.bf16.msra.mxu0 0
        %2491 = vmatprep.subr.bf16.mxu0 0
        %2492 = vmatpush2.bf16.msra.mxu0 0
        %2493 = vmatprep.subr.bf16.mxu0 0
        %2494 = vmatpush2.bf16.msra.mxu0 0
        %2495 = vmatprep.subr.bf16.mxu0 0
        %2496 = vmatpush2.bf16.msra.mxu0 0
        %2497 = vmatprep.subr.bf16.mxu0 0
        %2498 = vmatpush2.bf16.msra.mxu0 0
        %2499 = vmatprep.subr.bf16.mxu0 0
        %2500 = vmatpush2.bf16.msra.mxu0 0
        %2501 = vmatprep.subr.bf16.mxu0 0
        %2502 = vmatpush2.bf16.msra.mxu0 0
        %2503 = vmatprep.subr.bf16.mxu0 0
        %2504 = vmatpush2.bf16.msra.mxu0 0
        %2505 = vmatprep.mubr.bf16.mxu0 0
        %2506 = vmatmul.mubr.bf16.gmra.mxu0 %v2371
        %v2507 = vpop.f32.mrf.mxu0
        %v2508 = vadd.f32 %v2424, %v2507
        %v2509 = vpop.f32.mrf.mxu0
        %v2510 = vpop.f32.mrf.mxu0
        %v2511 = vadd.f32 %v2424, %v2510
        %v2512 = vpop.f32.mrf.mxu0
        %2513 = vmatprep.mubr.bf16.mxu0 0
        %2514 = vmatmul.mubr.bf16.gmra.mxu0 %v2372
        %v2515 = vpop.f32.mrf.mxu0
        %v2516 = vadd.f32 %v2424, %v2515
        %v2517 = vpop.f32.mrf.mxu0
        %v2518 = vpop.f32.mrf.mxu0
        %v2519 = vadd.f32 %v2424, %v2518
        %v2520 = vpop.f32.mrf.mxu0
        %2521 = vmatprep.mubr.bf16.mxu0 0
        %2522 = vmatmul.mubr.bf16.gmra.mxu0 %v2373
        %v2523 = vpop.f32.mrf.mxu0
        %v2524 = vadd.f32 %v2424, %v2523
        %v2525 = vpop.f32.mrf.mxu0
        %v2526 = vpop.f32.mrf.mxu0
        %v2527 = vadd.f32 %v2424, %v2526
        %v2528 = vpop.f32.mrf.mxu0
        %2529 = vmatprep.mubr.bf16.mxu0 0
        %2530 = vmatmul.mubr.bf16.gmra.mxu0 %v2374
        %v2531 = vpop.f32.mrf.mxu0
        %v2532 = vadd.f32 %v2424, %v2531
        %v2533 = vpop.f32.mrf.mxu0
        %v2534 = vpop.f32.mrf.mxu0
        %v2535 = vadd.f32 %v2424, %v2534
        %v2536 = vpop.f32.mrf.mxu0
        %2537 = vmatprep.mubr.bf16.mxu0 0
        %2538 = vmatmul.mubr.bf16.gmra.mxu0 %v2375
        %v2539 = vpop.f32.mrf.mxu0
        %v2540 = vadd.f32 %v2424, %v2539
        %v2541 = vpop.f32.mrf.mxu0
        %v2542 = vpop.f32.mrf.mxu0
        %v2543 = vadd.f32 %v2424, %v2542
        %v2544 = vpop.f32.mrf.mxu0
        %2545 = vmatprep.mubr.bf16.mxu0 0
        %2546 = vmatmul.mubr.bf16.gmra.mxu0 %v2376
        %v2547 = vpop.f32.mrf.mxu0
        %v2548 = vadd.f32 %v2424, %v2547
        %v2549 = vpop.f32.mrf.mxu0
        %v2550 = vpop.f32.mrf.mxu0
        %v2551 = vadd.f32 %v2424, %v2550
        %v2552 = vpop.f32.mrf.mxu0
        %2553 = vmatprep.mubr.bf16.mxu0 0
        %2554 = vmatmul.mubr.bf16.gmra.mxu0 %v2377
        %v2555 = vpop.f32.mrf.mxu0
        %v2556 = vadd.f32 %v2424, %v2555
        %v2557 = vpop.f32.mrf.mxu0
        %v2558 = vpop.f32.mrf.mxu0
        %v2559 = vadd.f32 %v2424, %v2558
        %v2560 = vpop.f32.mrf.mxu0
        %2561 = vmatprep.mubr.bf16.mxu0 0
        %2562 = vmatmul.mubr.bf16.gmra.mxu0 %v2378
        %v2563 = vpop.f32.mrf.mxu0
        %v2564 = vadd.f32 %v2424, %v2563
        %v2565 = vpop.f32.mrf.mxu0
        %v2566 = vpop.f32.mrf.mxu0
        %v2567 = vadd.f32 %v2424, %v2566
        %v2568 = vpop.f32.mrf.mxu0
        %2569 = vmatprep.mubr.bf16.mxu0 0
        %2570 = vmatmul.mubr.bf16.gmra.mxu0 %v2379
        %v2571 = vpop.f32.mrf.mxu0
        %v2572 = vadd.f32 %v2424, %v2571
        %v2573 = vpop.f32.mrf.mxu0
        %v2574 = vpop.f32.mrf.mxu0
        %v2575 = vadd.f32 %v2424, %v2574
        %v2576 = vpop.f32.mrf.mxu0
        %2577 = vmatprep.mubr.bf16.mxu0 0
        %2578 = vmatmul.mubr.bf16.gmra.mxu0 %v2380
        %v2579 = vpop.f32.mrf.mxu0
        %v2580 = vadd.f32 %v2424, %v2579
        %v2581 = vpop.f32.mrf.mxu0
        %v2582 = vpop.f32.mrf.mxu0
        %v2583 = vadd.f32 %v2424, %v2582
        %v2584 = vpop.f32.mrf.mxu0
        %2585 = vmatprep.mubr.bf16.mxu0 0
        %2586 = vmatmul.mubr.bf16.gmra.mxu0 %v2381
        %v2587 = vpop.f32.mrf.mxu0
        %v2588 = vadd.f32 %v2424, %v2587
        %v2589 = vpop.f32.mrf.mxu0
        %v2590 = vpop.f32.mrf.mxu0
        %v2591 = vadd.f32 %v2424, %v2590
        %v2592 = vpop.f32.mrf.mxu0
        %2593 = vmatprep.mubr.bf16.mxu0 0
        %2594 = vmatmul.mubr.bf16.gmra.mxu0 %v2382
        %v2595 = vpop.f32.mrf.mxu0
        %v2596 = vadd.f32 %v2424, %v2595
        %v2597 = vpop.f32.mrf.mxu0
        %v2598 = vpop.f32.mrf.mxu0
        %v2599 = vadd.f32 %v2424, %v2598
        %v2600 = vpop.f32.mrf.mxu0
        %2601 = vmatprep.mubr.bf16.mxu0 0
        %2602 = vmatmul.mubr.bf16.gmra.mxu0 %v2383
        %v2603 = vpop.f32.mrf.mxu0
        %v2604 = vadd.f32 %v2424, %v2603
        %v2605 = vpop.f32.mrf.mxu0
        %v2606 = vpop.f32.mrf.mxu0
        %v2607 = vadd.f32 %v2424, %v2606
        %v2608 = vpop.f32.mrf.mxu0
        %2609 = vmatprep.mubr.bf16.mxu0 0
        %2610 = vmatmul.mubr.bf16.gmra.mxu0 %v2384
        %v2611 = vpop.f32.mrf.mxu0
        %v2612 = vadd.f32 %v2424, %v2611
        %v2613 = vpop.f32.mrf.mxu0
        %v2614 = vpop.f32.mrf.mxu0
        %v2615 = vadd.f32 %v2424, %v2614
        %v2616 = vpop.f32.mrf.mxu0
        %2617 = vmatprep.mubr.bf16.mxu0 0
        %2618 = vmatmul.mubr.bf16.gmra.mxu0 %v2385
        %v2619 = vpop.f32.mrf.mxu0
        %v2620 = vadd.f32 %v2424, %v2619
        %v2621 = vpop.f32.mrf.mxu0
        %v2622 = vpop.f32.mrf.mxu0
        %v2623 = vadd.f32 %v2424, %v2622
        %v2624 = vpop.f32.mrf.mxu0
        %2625 = vmatprep.mubr.bf16.mxu0 0
        %2626 = vmatmul.mubr.bf16.gmra.mxu0 %v2386
        %v2627 = vpop.f32.mrf.mxu0
        %v2628 = vadd.f32 %v2424, %v2627
        %v2629 = vpop.f32.mrf.mxu0
        %v2630 = vpop.f32.mrf.mxu0
        %v2631 = vadd.f32 %v2424, %v2630
        %v2632 = vpop.f32.mrf.mxu0
        %2633 = vmatprep.mubr.bf16.mxu0 0
        %2634 = vmatmul.mubr.bf16.gmra.mxu0 %v2387
        %v2635 = vpop.f32.mrf.mxu0
        %v2636 = vadd.f32 %v2424, %v2635
        %v2637 = vpop.f32.mrf.mxu0
        %v2638 = vpop.f32.mrf.mxu0
        %v2639 = vadd.f32 %v2424, %v2638
        %v2640 = vpop.f32.mrf.mxu0
        %2641 = vmatprep.mubr.bf16.mxu0 0
        %2642 = vmatmul.mubr.bf16.gmra.mxu0 %v2388
        %v2643 = vpop.f32.mrf.mxu0
        %v2644 = vadd.f32 %v2424, %v2643
        %v2645 = vpop.f32.mrf.mxu0
        %v2646 = vpop.f32.mrf.mxu0
        %v2647 = vadd.f32 %v2424, %v2646
        %v2648 = vpop.f32.mrf.mxu0
        %2649 = vmatprep.mubr.bf16.mxu0 0
        %2650 = vmatmul.mubr.bf16.gmra.mxu0 %v2389
        %v2651 = vpop.f32.mrf.mxu0
        %v2652 = vadd.f32 %v2424, %v2651
        %v2653 = vpop.f32.mrf.mxu0
        %v2654 = vpop.f32.mrf.mxu0
        %v2655 = vadd.f32 %v2424, %v2654
        %v2656 = vpop.f32.mrf.mxu0
        %2657 = vmatprep.mubr.bf16.mxu0 0
        %2658 = vmatmul.mubr.bf16.gmra.mxu0 %v2390
        %v2659 = vpop.f32.mrf.mxu0
        %v2660 = vadd.f32 %v2424, %v2659
        %v2661 = vpop.f32.mrf.mxu0
        %v2662 = vpop.f32.mrf.mxu0
        %v2663 = vadd.f32 %v2424, %v2662
        %v2664 = vpop.f32.mrf.mxu0
        %2665 = vmatprep.mubr.bf16.mxu0 0
        %2666 = vmatmul.mubr.bf16.gmra.mxu0 %v2391
        %v2667 = vpop.f32.mrf.mxu0
        %v2668 = vadd.f32 %v2424, %v2667
        %v2669 = vpop.f32.mrf.mxu0
        %v2670 = vpop.f32.mrf.mxu0
        %v2671 = vadd.f32 %v2424, %v2670
        %v2672 = vpop.f32.mrf.mxu0
        %2673 = vmatprep.mubr.bf16.mxu0 0
        %2674 = vmatmul.mubr.bf16.gmra.mxu0 %v2392
        %v2675 = vpop.f32.mrf.mxu0
        %v2676 = vadd.f32 %v2424, %v2675
        %v2677 = vpop.f32.mrf.mxu0
        %v2678 = vpop.f32.mrf.mxu0
        %v2679 = vadd.f32 %v2424, %v2678
        %v2680 = vpop.f32.mrf.mxu0
        %2681 = vmatprep.mubr.bf16.mxu0 0
        %2682 = vmatmul.mubr.bf16.gmra.mxu0 %v2393
        %v2683 = vpop.f32.mrf.mxu0
        %v2684 = vadd.f32 %v2424, %v2683
        %v2685 = vpop.f32.mrf.mxu0
        %v2686 = vpop.f32.mrf.mxu0
        %v2687 = vadd.f32 %v2424, %v2686
        %v2688 = vpop.f32.mrf.mxu0
        %2689 = vmatprep.mubr.bf16.mxu0 0
        %2690 = vmatmul.mubr.bf16.gmra.mxu0 %v2394
        %v2691 = vpop.f32.mrf.mxu0
        %v2692 = vadd.f32 %v2424, %v2691
        %v2693 = vpop.f32.mrf.mxu0
        %v2694 = vpop.f32.mrf.mxu0
        %v2695 = vadd.f32 %v2424, %v2694
        %v2696 = vpop.f32.mrf.mxu0
        %2697 = vmatprep.mubr.bf16.mxu0 0
        %2698 = vmatmul.mubr.bf16.gmra.mxu0 %v2395
        %v2699 = vpop.f32.mrf.mxu0
        %v2700 = vadd.f32 %v2424, %v2699
        %v2701 = vpop.f32.mrf.mxu0
        %v2702 = vpop.f32.mrf.mxu0
        %v2703 = vadd.f32 %v2424, %v2702
        %v2704 = vpop.f32.mrf.mxu0
        %2705 = vmatprep.mubr.bf16.mxu0 0
        %2706 = vmatmul.mubr.bf16.gmra.mxu0 %v2396
        %v2707 = vpop.f32.mrf.mxu0
        %v2708 = vadd.f32 %v2424, %v2707
        %v2709 = vpop.f32.mrf.mxu0
        %v2710 = vpop.f32.mrf.mxu0
        %v2711 = vadd.f32 %v2424, %v2710
        %v2712 = vpop.f32.mrf.mxu0
        %2713 = vmatprep.mubr.bf16.mxu0 0
        %2714 = vmatmul.mubr.bf16.gmra.mxu0 %v2397
        %v2715 = vpop.f32.mrf.mxu0
        %v2716 = vadd.f32 %v2424, %v2715
        %v2717 = vpop.f32.mrf.mxu0
        %v2718 = vpop.f32.mrf.mxu0
        %v2719 = vadd.f32 %v2424, %v2718
        %v2720 = vpop.f32.mrf.mxu0
        %2721 = vmatprep.mubr.bf16.mxu0 0
        %2722 = vmatmul.mubr.bf16.gmra.mxu0 %v2398
        %v2723 = vpop.f32.mrf.mxu0
        %v2724 = vadd.f32 %v2424, %v2723
        %v2725 = vpop.f32.mrf.mxu0
        %v2726 = vpop.f32.mrf.mxu0
        %v2727 = vadd.f32 %v2424, %v2726
        %v2728 = vpop.f32.mrf.mxu0
        %2729 = vmatprep.mubr.bf16.mxu0 0
        %2730 = vmatmul.mubr.bf16.gmra.mxu0 %v2399
        %v2731 = vpop.f32.mrf.mxu0
        %v2732 = vadd.f32 %v2424, %v2731
        %v2733 = vpop.f32.mrf.mxu0
        %v2734 = vpop.f32.mrf.mxu0
        %v2735 = vadd.f32 %v2424, %v2734
        %v2736 = vpop.f32.mrf.mxu0
        %2737 = vmatprep.mubr.bf16.mxu0 0
        %2738 = vmatmul.mubr.bf16.gmra.mxu0 %v2400
        %v2739 = vpop.f32.mrf.mxu0
        %v2740 = vadd.f32 %v2424, %v2739
        %v2741 = vpop.f32.mrf.mxu0
        %v2742 = vpop.f32.mrf.mxu0
        %v2743 = vadd.f32 %v2424, %v2742
        %v2744 = vpop.f32.mrf.mxu0
        %2745 = vmatprep.mubr.bf16.mxu0 0
        %2746 = vmatmul.mubr.bf16.gmra.mxu0 %v2401
        %v2747 = vpop.f32.mrf.mxu0
        %v2748 = vadd.f32 %v2424, %v2747
        %v2749 = vpop.f32.mrf.mxu0
        %v2750 = vpop.f32.mrf.mxu0
        %v2751 = vadd.f32 %v2424, %v2750
        %v2752 = vpop.f32.mrf.mxu0
        %2753 = vmatprep.mubr.bf16.mxu0 0
        %2754 = vmatmul.mubr.bf16.gmra.mxu0 %v2402
        %v2755 = vpop.f32.mrf.mxu0
        %v2756 = vadd.f32 %v2424, %v2755
        %v2757 = vpop.f32.mrf.mxu0
        %v2758 = vpop.f32.mrf.mxu0
        %v2759 = vadd.f32 %v2424, %v2758
        %v2760 = vpop.f32.mrf.mxu0
        %2761 = vdwg.mxu0
        %v2762 = vmax.f32 %v2508, 0.0
        %v2763 = vmax.f32 %v2511, 0.0
        %v2764 = vmax.f32 %v2516, 0.0
        %v2765 = vmax.f32 %v2519, 0.0
        %v2766 = vmax.f32 %v2524, 0.0
        %v2767 = vmax.f32 %v2527, 0.0
        %v2768 = vmax.f32 %v2532, 0.0
        %v2769 = vmax.f32 %v2535, 0.0
        %v2770 = vmax.f32 %v2540, 0.0
        %v2771 = vmax.f32 %v2543, 0.0
        %v2772 = vmax.f32 %v2548, 0.0
        %v2773 = vmax.f32 %v2551, 0.0
        %v2774 = vmax.f32 %v2556, 0.0
        %v2775 = vmax.f32 %v2559, 0.0
        %v2776 = vmax.f32 %v2564, 0.0
        %v2777 = vmax.f32 %v2567, 0.0
        %v2778 = vmax.f32 %v2572, 0.0
        %v2779 = vmax.f32 %v2575, 0.0
        %v2780 = vmax.f32 %v2580, 0.0
        %v2781 = vmax.f32 %v2583, 0.0
        %v2782 = vmax.f32 %v2588, 0.0
        %v2783 = vmax.f32 %v2591, 0.0
        %v2784 = vmax.f32 %v2596, 0.0
        %v2785 = vmax.f32 %v2599, 0.0
        %v2786 = vmax.f32 %v2604, 0.0
        %v2787 = vmax.f32 %v2607, 0.0
        %v2788 = vmax.f32 %v2612, 0.0
        %v2789 = vmax.f32 %v2615, 0.0
        %v2790 = vmax.f32 %v2620, 0.0
        %v2791 = vmax.f32 %v2623, 0.0
        %v2792 = vmax.f32 %v2628, 0.0
        %v2793 = vmax.f32 %v2631, 0.0
        %v2794 = vmax.f32 %v2636, 0.0
        %v2795 = vmax.f32 %v2639, 0.0
        %v2796 = vmax.f32 %v2644, 0.0
        %v2797 = vmax.f32 %v2647, 0.0
        %v2798 = vmax.f32 %v2652, 0.0
        %v2799 = vmax.f32 %v2655, 0.0
        %v2800 = vmax.f32 %v2660, 0.0
        %v2801 = vmax.f32 %v2663, 0.0
        %v2802 = vmax.f32 %v2668, 0.0
        %v2803 = vmax.f32 %v2671, 0.0
        %v2804 = vmax.f32 %v2676, 0.0
        %v2805 = vmax.f32 %v2679, 0.0
        %v2806 = vmax.f32 %v2684, 0.0
        %v2807 = vmax.f32 %v2687, 0.0
        %v2808 = vmax.f32 %v2692, 0.0
        %v2809 = vmax.f32 %v2695, 0.0
        %v2810 = vmax.f32 %v2700, 0.0
        %v2811 = vmax.f32 %v2703, 0.0
        %v2812 = vmax.f32 %v2708, 0.0
        %v2813 = vmax.f32 %v2711, 0.0
        %v2814 = vmax.f32 %v2716, 0.0
        %v2815 = vmax.f32 %v2719, 0.0
        %v2816 = vmax.f32 %v2724, 0.0
        %v2817 = vmax.f32 %v2727, 0.0
        %v2818 = vmax.f32 %v2732, 0.0
        %v2819 = vmax.f32 %v2735, 0.0
        %v2820 = vmax.f32 %v2740, 0.0
        %v2821 = vmax.f32 %v2743, 0.0
        %v2822 = vmax.f32 %v2748, 0.0
        %v2823 = vmax.f32 %v2751, 0.0
        %v2824 = vmax.f32 %v2756, 0.0
        %v2825 = vmax.f32 %v2759, 0.0
        %v2826 = vpack.c.bf16 %v2763, %v2762
        %v2827 = vpack.c.bf16 %v2765, %v2764
        %v2828 = vpack.c.bf16 %v2767, %v2766
        %v2829 = vpack.c.bf16 %v2769, %v2768
        %v2830 = vpack.c.bf16 %v2771, %v2770
        %v2831 = vpack.c.bf16 %v2773, %v2772
        %v2832 = vpack.c.bf16 %v2775, %v2774
        %v2833 = vpack.c.bf16 %v2777, %v2776
        %v2834 = vpack.c.bf16 %v2779, %v2778
        %v2835 = vpack.c.bf16 %v2781, %v2780
        %v2836 = vpack.c.bf16 %v2783, %v2782
        %v2837 = vpack.c.bf16 %v2785, %v2784
        %v2838 = vpack.c.bf16 %v2787, %v2786
        %v2839 = vpack.c.bf16 %v2789, %v2788
        %v2840 = vpack.c.bf16 %v2791, %v2790
        %v2841 = vpack.c.bf16 %v2793, %v2792
        %v2842 = vpack.c.bf16 %v2795, %v2794
        %v2843 = vpack.c.bf16 %v2797, %v2796
        %v2844 = vpack.c.bf16 %v2799, %v2798
        %v2845 = vpack.c.bf16 %v2801, %v2800
        %v2846 = vpack.c.bf16 %v2803, %v2802
        %v2847 = vpack.c.bf16 %v2805, %v2804
        %v2848 = vpack.c.bf16 %v2807, %v2806
        %v2849 = vpack.c.bf16 %v2809, %v2808
        %v2850 = vpack.c.bf16 %v2811, %v2810
        %v2851 = vpack.c.bf16 %v2813, %v2812
        %v2852 = vpack.c.bf16 %v2815, %v2814
        %v2853 = vpack.c.bf16 %v2817, %v2816
        %v2854 = vpack.c.bf16 %v2819, %v2818
        %v2855 = vpack.c.bf16 %v2821, %v2820
        %v2856 = vpack.c.bf16 %v2823, %v2822
        %v2857 = vpack.c.bf16 %v2825, %v2824
        %s2858 = scalar_lea.vmem [#allocation7], 256
        %v2859 = vld [vmem:[%s2858] sm:$0xf]
        %v2860 = vld [vmem:[%s2858 + $0x4] sm:$0xf]
        %v2861 = vld [vmem:[%s2858 + $0x8] sm:$0xf]
        %v2862 = vld [vmem:[%s2858 + $0xc] sm:$0xf]
        %v2863 = vld [vmem:[%s2858 + $0x10] sm:$0xf]
        %v2864 = vld [vmem:[%s2858 + $0x14] sm:$0xf]
        %v2865 = vld [vmem:[%s2858 + $0x18] sm:$0xf]
        %v2866 = vld [vmem:[%s2858 + $0x1c] sm:$0xf]
        %v2867 = vld [vmem:[%s2858 + $0x20] sm:$0xf]
        %v2868 = vld [vmem:[%s2858 + $0x24] sm:$0xf]
        %v2869 = vld [vmem:[%s2858 + $0x28] sm:$0xf]
        %v2870 = vld [vmem:[%s2858 + $0x2c] sm:$0xf]
        %v2871 = vld [vmem:[%s2858 + $0x30] sm:$0xf]
        %v2872 = vld [vmem:[%s2858 + $0x34] sm:$0xf]
        %v2873 = vld [vmem:[%s2858 + $0x38] sm:$0xf]
        %v2874 = vld [vmem:[%s2858 + $0x3c] sm:$0xf]
        %v2875 = vld [vmem:[#allocation8 + $0x5] sm:$0x1]
        %v2876 = vlaneseq
        %v2877 = vshrl.u32 %v2876, 7
        %v2878 = vsub.s32 0, %v2877
        %v2879 = vrot.slane %v2875, %v2878
        %v2896 = vunpack.c.l.b16 %v2859
        %v2897 = vunpack.c.l.b16 %v2860
        %v2898 = vunpack.c.l.b16 %v2861
        %v2899 = vunpack.c.l.b16 %v2862
        %v2900 = vunpack.c.l.b16 %v2863
        %v2901 = vunpack.c.l.b16 %v2864
        %v2902 = vunpack.c.l.b16 %v2865
        %v2903 = vunpack.c.l.b16 %v2866
        %v2904 = vunpack.c.l.b16 %v2867
        %v2905 = vunpack.c.l.b16 %v2868
        %v2906 = vunpack.c.l.b16 %v2869
        %v2907 = vunpack.c.l.b16 %v2870
        %v2908 = vunpack.c.l.b16 %v2871
        %v2909 = vunpack.c.l.b16 %v2872
        %v2910 = vunpack.c.l.b16 %v2873
        %v2911 = vunpack.c.l.b16 %v2874
        %v2912 = vpack.c.b16 %v2897, %v2896
        %v2913 = vpack.c.b16 %v2899, %v2898
        %v2914 = vpack.c.b16 %v2901, %v2900
        %v2915 = vpack.c.b16 %v2903, %v2902
        %v2916 = vpack.c.b16 %v2905, %v2904
        %v2917 = vpack.c.b16 %v2907, %v2906
        %v2918 = vpack.c.b16 %v2909, %v2908
        %v2919 = vpack.c.b16 %v2911, %v2910
        %2928 = vmatprep.subr.bf16.mxu0 0
        %2929 = vmatpush1.bf16.msra.mxu0 %v2919
        %2930 = vmatprep.subr.bf16.mxu0 0
        %2931 = vmatpush1.bf16.msra.mxu0 %v2918
        %2932 = vmatprep.subr.bf16.mxu0 0
        %2933 = vmatpush1.bf16.msra.mxu0 %v2917
        %2934 = vmatprep.subr.bf16.mxu0 0
        %2935 = vmatpush1.bf16.msra.mxu0 %v2916
        %2936 = vmatprep.subr.bf16.mxu0 0
        %2937 = vmatpush1.bf16.msra.mxu0 %v2915
        %2938 = vmatprep.subr.bf16.mxu0 0
        %2939 = vmatpush1.bf16.msra.mxu0 %v2914
        %2940 = vmatprep.subr.bf16.mxu0 0
        %2941 = vmatpush1.bf16.msra.mxu0 %v2913
        %2942 = vmatprep.subr.bf16.mxu0 0
        %2943 = vmatpush1.bf16.msra.mxu0 %v2912
        %2944 = vmatprep.subr.bf16.mxu0 0
        %2945 = vmatpush2.bf16.msra.mxu0 0
        %2946 = vmatprep.subr.bf16.mxu0 0
        %2947 = vmatpush2.bf16.msra.mxu0 0
        %2948 = vmatprep.subr.bf16.mxu0 0
        %2949 = vmatpush2.bf16.msra.mxu0 0
        %2950 = vmatprep.subr.bf16.mxu0 0
        %2951 = vmatpush2.bf16.msra.mxu0 0
        %2952 = vmatprep.subr.bf16.mxu0 0
        %2953 = vmatpush2.bf16.msra.mxu0 0
        %2954 = vmatprep.subr.bf16.mxu0 0
        %2955 = vmatpush2.bf16.msra.mxu0 0
        %2956 = vmatprep.subr.bf16.mxu0 0
        %2957 = vmatpush2.bf16.msra.mxu0 0
        %2958 = vmatprep.subr.bf16.mxu0 0
        %2959 = vmatpush2.bf16.msra.mxu0 0
        %2960 = vmatprep.mubr.bf16.mxu0 0
        %2961 = vmatmul.mubr.bf16.gmra.mxu0 %v2826
        %v2962 = vpop.f32.mrf.mxu0
        %v2963 = vadd.f32 %v2879, %v2962
        %v2964 = vpop.f32.mrf.mxu0
        %v2965 = vpop.f32.mrf.mxu0
        %v2966 = vadd.f32 %v2879, %v2965
        %v2967 = vpop.f32.mrf.mxu0
        %2968 = vmatprep.mubr.bf16.mxu0 0
        %2969 = vmatmul.mubr.bf16.gmra.mxu0 %v2827
        %v2970 = vpop.f32.mrf.mxu0
        %v2971 = vadd.f32 %v2879, %v2970
        %v2972 = vpop.f32.mrf.mxu0
        %v2973 = vpop.f32.mrf.mxu0
        %v2974 = vadd.f32 %v2879, %v2973
        %v2975 = vpop.f32.mrf.mxu0
        %2976 = vmatprep.mubr.bf16.mxu0 0
        %2977 = vmatmul.mubr.bf16.gmra.mxu0 %v2828
        %v2978 = vpop.f32.mrf.mxu0
        %v2979 = vadd.f32 %v2879, %v2978
        %v2980 = vpop.f32.mrf.mxu0
        %v2981 = vpop.f32.mrf.mxu0
        %v2982 = vadd.f32 %v2879, %v2981
        %v2983 = vpop.f32.mrf.mxu0
        %2984 = vmatprep.mubr.bf16.mxu0 0
        %2985 = vmatmul.mubr.bf16.gmra.mxu0 %v2829
        %v2986 = vpop.f32.mrf.mxu0
        %v2987 = vadd.f32 %v2879, %v2986
        %v2988 = vpop.f32.mrf.mxu0
        %v2989 = vpop.f32.mrf.mxu0
        %v2990 = vadd.f32 %v2879, %v2989
        %v2991 = vpop.f32.mrf.mxu0
        %2992 = vmatprep.mubr.bf16.mxu0 0
        %2993 = vmatmul.mubr.bf16.gmra.mxu0 %v2830
        %v2994 = vpop.f32.mrf.mxu0
        %v2995 = vadd.f32 %v2879, %v2994
        %v2996 = vpop.f32.mrf.mxu0
        %v2997 = vpop.f32.mrf.mxu0
        %v2998 = vadd.f32 %v2879, %v2997
        %v2999 = vpop.f32.mrf.mxu0
        %3000 = vmatprep.mubr.bf16.mxu0 0
        %3001 = vmatmul.mubr.bf16.gmra.mxu0 %v2831
        %v3002 = vpop.f32.mrf.mxu0
        %v3003 = vadd.f32 %v2879, %v3002
        %v3004 = vpop.f32.mrf.mxu0
        %v3005 = vpop.f32.mrf.mxu0
        %v3006 = vadd.f32 %v2879, %v3005
        %v3007 = vpop.f32.mrf.mxu0
        %3008 = vmatprep.mubr.bf16.mxu0 0
        %3009 = vmatmul.mubr.bf16.gmra.mxu0 %v2832
        %v3010 = vpop.f32.mrf.mxu0
        %v3011 = vadd.f32 %v2879, %v3010
        %v3012 = vpop.f32.mrf.mxu0
        %v3013 = vpop.f32.mrf.mxu0
        %v3014 = vadd.f32 %v2879, %v3013
        %v3015 = vpop.f32.mrf.mxu0
        %3016 = vmatprep.mubr.bf16.mxu0 0
        %3017 = vmatmul.mubr.bf16.gmra.mxu0 %v2833
        %v3018 = vpop.f32.mrf.mxu0
        %v3019 = vadd.f32 %v2879, %v3018
        %v3020 = vpop.f32.mrf.mxu0
        %v3021 = vpop.f32.mrf.mxu0
        %v3022 = vadd.f32 %v2879, %v3021
        %v3023 = vpop.f32.mrf.mxu0
        %3024 = vmatprep.mubr.bf16.mxu0 0
        %3025 = vmatmul.mubr.bf16.gmra.mxu0 %v2834
        %v3026 = vpop.f32.mrf.mxu0
        %v3027 = vadd.f32 %v2879, %v3026
        %v3028 = vpop.f32.mrf.mxu0
        %v3029 = vpop.f32.mrf.mxu0
        %v3030 = vadd.f32 %v2879, %v3029
        %v3031 = vpop.f32.mrf.mxu0
        %3032 = vmatprep.mubr.bf16.mxu0 0
        %3033 = vmatmul.mubr.bf16.gmra.mxu0 %v2835
        %v3034 = vpop.f32.mrf.mxu0
        %v3035 = vadd.f32 %v2879, %v3034
        %v3036 = vpop.f32.mrf.mxu0
        %v3037 = vpop.f32.mrf.mxu0
        %v3038 = vadd.f32 %v2879, %v3037
        %v3039 = vpop.f32.mrf.mxu0
        %3040 = vmatprep.mubr.bf16.mxu0 0
        %3041 = vmatmul.mubr.bf16.gmra.mxu0 %v2836
        %v3042 = vpop.f32.mrf.mxu0
        %v3043 = vadd.f32 %v2879, %v3042
        %v3044 = vpop.f32.mrf.mxu0
        %v3045 = vpop.f32.mrf.mxu0
        %v3046 = vadd.f32 %v2879, %v3045
        %v3047 = vpop.f32.mrf.mxu0
        %3048 = vmatprep.mubr.bf16.mxu0 0
        %3049 = vmatmul.mubr.bf16.gmra.mxu0 %v2837
        %v3050 = vpop.f32.mrf.mxu0
        %v3051 = vadd.f32 %v2879, %v3050
        %v3052 = vpop.f32.mrf.mxu0
        %v3053 = vpop.f32.mrf.mxu0
        %v3054 = vadd.f32 %v2879, %v3053
        %v3055 = vpop.f32.mrf.mxu0
        %3056 = vmatprep.mubr.bf16.mxu0 0
        %3057 = vmatmul.mubr.bf16.gmra.mxu0 %v2838
        %v3058 = vpop.f32.mrf.mxu0
        %v3059 = vadd.f32 %v2879, %v3058
        %v3060 = vpop.f32.mrf.mxu0
        %v3061 = vpop.f32.mrf.mxu0
        %v3062 = vadd.f32 %v2879, %v3061
        %v3063 = vpop.f32.mrf.mxu0
        %3064 = vmatprep.mubr.bf16.mxu0 0
        %3065 = vmatmul.mubr.bf16.gmra.mxu0 %v2839
        %v3066 = vpop.f32.mrf.mxu0
        %v3067 = vadd.f32 %v2879, %v3066
        %v3068 = vpop.f32.mrf.mxu0
        %v3069 = vpop.f32.mrf.mxu0
        %v3070 = vadd.f32 %v2879, %v3069
        %v3071 = vpop.f32.mrf.mxu0
        %3072 = vmatprep.mubr.bf16.mxu0 0
        %3073 = vmatmul.mubr.bf16.gmra.mxu0 %v2840
        %v3074 = vpop.f32.mrf.mxu0
        %v3075 = vadd.f32 %v2879, %v3074
        %v3076 = vpop.f32.mrf.mxu0
        %v3077 = vpop.f32.mrf.mxu0
        %v3078 = vadd.f32 %v2879, %v3077
        %v3079 = vpop.f32.mrf.mxu0
        %3080 = vmatprep.mubr.bf16.mxu0 0
        %3081 = vmatmul.mubr.bf16.gmra.mxu0 %v2841
        %v3082 = vpop.f32.mrf.mxu0
        %v3083 = vadd.f32 %v2879, %v3082
        %v3084 = vpop.f32.mrf.mxu0
        %v3085 = vpop.f32.mrf.mxu0
        %v3086 = vadd.f32 %v2879, %v3085
        %v3087 = vpop.f32.mrf.mxu0
        %3088 = vmatprep.mubr.bf16.mxu0 0
        %3089 = vmatmul.mubr.bf16.gmra.mxu0 %v2842
        %v3090 = vpop.f32.mrf.mxu0
        %v3091 = vadd.f32 %v2879, %v3090
        %v3092 = vpop.f32.mrf.mxu0
        %v3093 = vpop.f32.mrf.mxu0
        %v3094 = vadd.f32 %v2879, %v3093
        %v3095 = vpop.f32.mrf.mxu0
        %3096 = vmatprep.mubr.bf16.mxu0 0
        %3097 = vmatmul.mubr.bf16.gmra.mxu0 %v2843
        %v3098 = vpop.f32.mrf.mxu0
        %v3099 = vadd.f32 %v2879, %v3098
        %v3100 = vpop.f32.mrf.mxu0
        %v3101 = vpop.f32.mrf.mxu0
        %v3102 = vadd.f32 %v2879, %v3101
        %v3103 = vpop.f32.mrf.mxu0
        %3104 = vmatprep.mubr.bf16.mxu0 0
        %3105 = vmatmul.mubr.bf16.gmra.mxu0 %v2844
        %v3106 = vpop.f32.mrf.mxu0
        %v3107 = vadd.f32 %v2879, %v3106
        %v3108 = vpop.f32.mrf.mxu0
        %v3109 = vpop.f32.mrf.mxu0
        %v3110 = vadd.f32 %v2879, %v3109
        %v3111 = vpop.f32.mrf.mxu0
        %3112 = vmatprep.mubr.bf16.mxu0 0
        %3113 = vmatmul.mubr.bf16.gmra.mxu0 %v2845
        %v3114 = vpop.f32.mrf.mxu0
        %v3115 = vadd.f32 %v2879, %v3114
        %v3116 = vpop.f32.mrf.mxu0
        %v3117 = vpop.f32.mrf.mxu0
        %v3118 = vadd.f32 %v2879, %v3117
        %v3119 = vpop.f32.mrf.mxu0
        %3120 = vmatprep.mubr.bf16.mxu0 0
        %3121 = vmatmul.mubr.bf16.gmra.mxu0 %v2846
        %v3122 = vpop.f32.mrf.mxu0
        %v3123 = vadd.f32 %v2879, %v3122
        %v3124 = vpop.f32.mrf.mxu0
        %v3125 = vpop.f32.mrf.mxu0
        %v3126 = vadd.f32 %v2879, %v3125
        %v3127 = vpop.f32.mrf.mxu0
        %3128 = vmatprep.mubr.bf16.mxu0 0
        %3129 = vmatmul.mubr.bf16.gmra.mxu0 %v2847
        %v3130 = vpop.f32.mrf.mxu0
        %v3131 = vadd.f32 %v2879, %v3130
        %v3132 = vpop.f32.mrf.mxu0
        %v3133 = vpop.f32.mrf.mxu0
        %v3134 = vadd.f32 %v2879, %v3133
        %v3135 = vpop.f32.mrf.mxu0
        %3136 = vmatprep.mubr.bf16.mxu0 0
        %3137 = vmatmul.mubr.bf16.gmra.mxu0 %v2848
        %v3138 = vpop.f32.mrf.mxu0
        %v3139 = vadd.f32 %v2879, %v3138
        %v3140 = vpop.f32.mrf.mxu0
        %v3141 = vpop.f32.mrf.mxu0
        %v3142 = vadd.f32 %v2879, %v3141
        %v3143 = vpop.f32.mrf.mxu0
        %3144 = vmatprep.mubr.bf16.mxu0 0
        %3145 = vmatmul.mubr.bf16.gmra.mxu0 %v2849
        %v3146 = vpop.f32.mrf.mxu0
        %v3147 = vadd.f32 %v2879, %v3146
        %v3148 = vpop.f32.mrf.mxu0
        %v3149 = vpop.f32.mrf.mxu0
        %v3150 = vadd.f32 %v2879, %v3149
        %v3151 = vpop.f32.mrf.mxu0
        %3152 = vmatprep.mubr.bf16.mxu0 0
        %3153 = vmatmul.mubr.bf16.gmra.mxu0 %v2850
        %v3154 = vpop.f32.mrf.mxu0
        %v3155 = vadd.f32 %v2879, %v3154
        %v3156 = vpop.f32.mrf.mxu0
        %v3157 = vpop.f32.mrf.mxu0
        %v3158 = vadd.f32 %v2879, %v3157
        %v3159 = vpop.f32.mrf.mxu0
        %3160 = vmatprep.mubr.bf16.mxu0 0
        %3161 = vmatmul.mubr.bf16.gmra.mxu0 %v2851
        %v3162 = vpop.f32.mrf.mxu0
        %v3163 = vadd.f32 %v2879, %v3162
        %v3164 = vpop.f32.mrf.mxu0
        %v3165 = vpop.f32.mrf.mxu0
        %v3166 = vadd.f32 %v2879, %v3165
        %v3167 = vpop.f32.mrf.mxu0
        %3168 = vmatprep.mubr.bf16.mxu0 0
        %3169 = vmatmul.mubr.bf16.gmra.mxu0 %v2852
        %v3170 = vpop.f32.mrf.mxu0
        %v3171 = vadd.f32 %v2879, %v3170
        %v3172 = vpop.f32.mrf.mxu0
        %v3173 = vpop.f32.mrf.mxu0
        %v3174 = vadd.f32 %v2879, %v3173
        %v3175 = vpop.f32.mrf.mxu0
        %3176 = vmatprep.mubr.bf16.mxu0 0
        %3177 = vmatmul.mubr.bf16.gmra.mxu0 %v2853
        %v3178 = vpop.f32.mrf.mxu0
        %v3179 = vadd.f32 %v2879, %v3178
        %v3180 = vpop.f32.mrf.mxu0
        %v3181 = vpop.f32.mrf.mxu0
        %v3182 = vadd.f32 %v2879, %v3181
        %v3183 = vpop.f32.mrf.mxu0
        %3184 = vmatprep.mubr.bf16.mxu0 0
        %3185 = vmatmul.mubr.bf16.gmra.mxu0 %v2854
        %v3186 = vpop.f32.mrf.mxu0
        %v3187 = vadd.f32 %v2879, %v3186
        %v3188 = vpop.f32.mrf.mxu0
        %v3189 = vpop.f32.mrf.mxu0
        %v3190 = vadd.f32 %v2879, %v3189
        %v3191 = vpop.f32.mrf.mxu0
        %3192 = vmatprep.mubr.bf16.mxu0 0
        %3193 = vmatmul.mubr.bf16.gmra.mxu0 %v2855
        %v3194 = vpop.f32.mrf.mxu0
        %v3195 = vadd.f32 %v2879, %v3194
        %v3196 = vpop.f32.mrf.mxu0
        %v3197 = vpop.f32.mrf.mxu0
        %v3198 = vadd.f32 %v2879, %v3197
        %v3199 = vpop.f32.mrf.mxu0
        %3200 = vmatprep.mubr.bf16.mxu0 0
        %3201 = vmatmul.mubr.bf16.gmra.mxu0 %v2856
        %v3202 = vpop.f32.mrf.mxu0
        %v3203 = vadd.f32 %v2879, %v3202
        %v3204 = vpop.f32.mrf.mxu0
        %v3205 = vpop.f32.mrf.mxu0
        %v3206 = vadd.f32 %v2879, %v3205
        %v3207 = vpop.f32.mrf.mxu0
        %3208 = vmatprep.mubr.bf16.mxu0 0
        %3209 = vmatmul.mubr.bf16.gmra.mxu0 %v2857
        %v3210 = vpop.f32.mrf.mxu0
        %v3211 = vadd.f32 %v2879, %v3210
        %v3212 = vpop.f32.mrf.mxu0
        %v3213 = vpop.f32.mrf.mxu0
        %v3214 = vadd.f32 %v2879, %v3213
        %v3215 = vpop.f32.mrf.mxu0
        %3216 = vdwg.mxu0
        %s3217 = scalar_lea.vmem [#allocation5], 64
        %v3218 = vld [vmem:[%s3217] sm:$0xf]
        %v3219 = vld [vmem:[%s3217 + $0x4] sm:$0xf]
        %v3220 = vld [vmem:[%s3217 + $0x8] sm:$0xf]
        %v3221 = vld [vmem:[%s3217 + $0xc] sm:$0xf]
        %v3222 = vld [vmem:[%s3217 + $0x10] sm:$0xf]
        %v3223 = vld [vmem:[%s3217 + $0x14] sm:$0xf]
        %v3224 = vld [vmem:[%s3217 + $0x18] sm:$0xf]
        %v3225 = vld [vmem:[%s3217 + $0x1c] sm:$0xf]
        %v3226 = vld [vmem:[%s3217 + $0x20] sm:$0xf]
        %v3227 = vld [vmem:[%s3217 + $0x24] sm:$0xf]
        %v3228 = vld [vmem:[%s3217 + $0x28] sm:$0xf]
        %v3229 = vld [vmem:[%s3217 + $0x2c] sm:$0xf]
        %v3230 = vld [vmem:[%s3217 + $0x30] sm:$0xf]
        %v3231 = vld [vmem:[%s3217 + $0x34] sm:$0xf]
        %v3232 = vld [vmem:[%s3217 + $0x38] sm:$0xf]
        %v3233 = vld [vmem:[%s3217 + $0x3c] sm:$0xf]
        %v3250 = vunpack.c.l.b16 %v3218
        %v3251 = vunpack.c.l.b16 %v3219
        %v3252 = vunpack.c.l.b16 %v3220
        %v3253 = vunpack.c.l.b16 %v3221
        %v3254 = vunpack.c.l.b16 %v3222
        %v3255 = vunpack.c.l.b16 %v3223
        %v3256 = vunpack.c.l.b16 %v3224
        %v3257 = vunpack.c.l.b16 %v3225
        %v3258 = vunpack.c.l.b16 %v3226
        %v3259 = vunpack.c.l.b16 %v3227
        %v3260 = vunpack.c.l.b16 %v3228
        %v3261 = vunpack.c.l.b16 %v3229
        %v3262 = vunpack.c.l.b16 %v3230
        %v3263 = vunpack.c.l.b16 %v3231
        %v3264 = vunpack.c.l.b16 %v3232
        %v3265 = vunpack.c.l.b16 %v3233
        %v3266 = vpack.c.b16 %v3251, %v3250
        %v3267 = vpack.c.b16 %v3253, %v3252
        %v3268 = vpack.c.b16 %v3255, %v3254
        %v3269 = vpack.c.b16 %v3257, %v3256
        %v3270 = vpack.c.b16 %v3259, %v3258
        %v3271 = vpack.c.b16 %v3261, %v3260
        %v3272 = vpack.c.b16 %v3263, %v3262
        %v3273 = vpack.c.b16 %v3265, %v3264
        %3282 = vmatprep.subr.bf16.mxu0 0
        %3283 = vmatpush1.bf16.msra.mxu0 %v3273
        %3284 = vmatprep.subr.bf16.mxu0 0
        %3285 = vmatpush1.bf16.msra.mxu0 %v3272
        %3286 = vmatprep.subr.bf16.mxu0 0
        %3287 = vmatpush1.bf16.msra.mxu0 %v3271
        %3288 = vmatprep.subr.bf16.mxu0 0
        %3289 = vmatpush1.bf16.msra.mxu0 %v3270
        %3290 = vmatprep.subr.bf16.mxu0 0
        %3291 = vmatpush1.bf16.msra.mxu0 %v3269
        %3292 = vmatprep.subr.bf16.mxu0 0
        %3293 = vmatpush1.bf16.msra.mxu0 %v3268
        %3294 = vmatprep.subr.bf16.mxu0 0
        %3295 = vmatpush1.bf16.msra.mxu0 %v3267
        %3296 = vmatprep.subr.bf16.mxu0 0
        %3297 = vmatpush1.bf16.msra.mxu0 %v3266
        %3298 = vmatprep.subr.bf16.mxu0 0
        %3299 = vmatpush2.bf16.msra.mxu0 0
        %3300 = vmatprep.subr.bf16.mxu0 0
        %3301 = vmatpush2.bf16.msra.mxu0 0
        %3302 = vmatprep.subr.bf16.mxu0 0
        %3303 = vmatpush2.bf16.msra.mxu0 0
        %3304 = vmatprep.subr.bf16.mxu0 0
        %3305 = vmatpush2.bf16.msra.mxu0 0
        %3306 = vmatprep.subr.bf16.mxu0 0
        %3307 = vmatpush2.bf16.msra.mxu0 0
        %3308 = vmatprep.subr.bf16.mxu0 0
        %3309 = vmatpush2.bf16.msra.mxu0 0
        %3310 = vmatprep.subr.bf16.mxu0 0
        %3311 = vmatpush2.bf16.msra.mxu0 0
        %3312 = vmatprep.subr.bf16.mxu0 0
        %3313 = vmatpush2.bf16.msra.mxu0 0
        %3314 = vmatprep.mubr.bf16.mxu0 0
        %3315 = vmatmul.mubr.bf16.gmra.mxu0 %v542
        %v3316 = vpop.f32.mrf.mxu0
        %v3317 = vadd.f32 0.0, %v3316
        %v3318 = vpop.f32.mrf.mxu0
        %v3319 = vpop.f32.mrf.mxu0
        %v3320 = vadd.f32 0.0, %v3319
        %v3321 = vpop.f32.mrf.mxu0
        %3322 = vmatprep.mubr.bf16.mxu0 0
        %3323 = vmatmul.mubr.bf16.gmra.mxu0 %v543
        %v3324 = vpop.f32.mrf.mxu0
        %v3325 = vadd.f32 0.0, %v3324
        %v3326 = vpop.f32.mrf.mxu0
        %v3327 = vpop.f32.mrf.mxu0
        %v3328 = vadd.f32 0.0, %v3327
        %v3329 = vpop.f32.mrf.mxu0
        %3330 = vmatprep.mubr.bf16.mxu0 0
        %3331 = vmatmul.mubr.bf16.gmra.mxu0 %v544
        %v3332 = vpop.f32.mrf.mxu0
        %v3333 = vadd.f32 0.0, %v3332
        %v3334 = vpop.f32.mrf.mxu0
        %v3335 = vpop.f32.mrf.mxu0
        %v3336 = vadd.f32 0.0, %v3335
        %v3337 = vpop.f32.mrf.mxu0
        %3338 = vmatprep.mubr.bf16.mxu0 0
        %3339 = vmatmul.mubr.bf16.gmra.mxu0 %v545
        %v3340 = vpop.f32.mrf.mxu0
        %v3341 = vadd.f32 0.0, %v3340
        %v3342 = vpop.f32.mrf.mxu0
        %v3343 = vpop.f32.mrf.mxu0
        %v3344 = vadd.f32 0.0, %v3343
        %v3345 = vpop.f32.mrf.mxu0
        %3346 = vmatprep.mubr.bf16.mxu0 0
        %3347 = vmatmul.mubr.bf16.gmra.mxu0 %v546
        %v3348 = vpop.f32.mrf.mxu0
        %v3349 = vadd.f32 0.0, %v3348
        %v3350 = vpop.f32.mrf.mxu0
        %v3351 = vpop.f32.mrf.mxu0
        %v3352 = vadd.f32 0.0, %v3351
        %v3353 = vpop.f32.mrf.mxu0
        %3354 = vmatprep.mubr.bf16.mxu0 0
        %3355 = vmatmul.mubr.bf16.gmra.mxu0 %v547
        %v3356 = vpop.f32.mrf.mxu0
        %v3357 = vadd.f32 0.0, %v3356
        %v3358 = vpop.f32.mrf.mxu0
        %v3359 = vpop.f32.mrf.mxu0
        %v3360 = vadd.f32 0.0, %v3359
        %v3361 = vpop.f32.mrf.mxu0
        %3362 = vmatprep.mubr.bf16.mxu0 0
        %3363 = vmatmul.mubr.bf16.gmra.mxu0 %v548
        %v3364 = vpop.f32.mrf.mxu0
        %v3365 = vadd.f32 0.0, %v3364
        %v3366 = vpop.f32.mrf.mxu0
        %v3367 = vpop.f32.mrf.mxu0
        %v3368 = vadd.f32 0.0, %v3367
        %v3369 = vpop.f32.mrf.mxu0
        %3370 = vmatprep.mubr.bf16.mxu0 0
        %3371 = vmatmul.mubr.bf16.gmra.mxu0 %v549
        %v3372 = vpop.f32.mrf.mxu0
        %v3373 = vadd.f32 0.0, %v3372
        %v3374 = vpop.f32.mrf.mxu0
        %v3375 = vpop.f32.mrf.mxu0
        %v3376 = vadd.f32 0.0, %v3375
        %v3377 = vpop.f32.mrf.mxu0
        %3378 = vmatprep.mubr.bf16.mxu0 0
        %3379 = vmatmul.mubr.bf16.gmra.mxu0 %v550
        %v3380 = vpop.f32.mrf.mxu0
        %v3381 = vadd.f32 0.0, %v3380
        %v3382 = vpop.f32.mrf.mxu0
        %v3383 = vpop.f32.mrf.mxu0
        %v3384 = vadd.f32 0.0, %v3383
        %v3385 = vpop.f32.mrf.mxu0
        %3386 = vmatprep.mubr.bf16.mxu0 0
        %3387 = vmatmul.mubr.bf16.gmra.mxu0 %v551
        %v3388 = vpop.f32.mrf.mxu0
        %v3389 = vadd.f32 0.0, %v3388
        %v3390 = vpop.f32.mrf.mxu0
        %v3391 = vpop.f32.mrf.mxu0
        %v3392 = vadd.f32 0.0, %v3391
        %v3393 = vpop.f32.mrf.mxu0
        %3394 = vmatprep.mubr.bf16.mxu0 0
        %3395 = vmatmul.mubr.bf16.gmra.mxu0 %v552
        %v3396 = vpop.f32.mrf.mxu0
        %v3397 = vadd.f32 0.0, %v3396
        %v3398 = vpop.f32.mrf.mxu0
        %v3399 = vpop.f32.mrf.mxu0
        %v3400 = vadd.f32 0.0, %v3399
        %v3401 = vpop.f32.mrf.mxu0
        %3402 = vmatprep.mubr.bf16.mxu0 0
        %3403 = vmatmul.mubr.bf16.gmra.mxu0 %v553
        %v3404 = vpop.f32.mrf.mxu0
        %v3405 = vadd.f32 0.0, %v3404
        %v3406 = vpop.f32.mrf.mxu0
        %v3407 = vpop.f32.mrf.mxu0
        %v3408 = vadd.f32 0.0, %v3407
        %v3409 = vpop.f32.mrf.mxu0
        %3410 = vmatprep.mubr.bf16.mxu0 0
        %3411 = vmatmul.mubr.bf16.gmra.mxu0 %v554
        %v3412 = vpop.f32.mrf.mxu0
        %v3413 = vadd.f32 0.0, %v3412
        %v3414 = vpop.f32.mrf.mxu0
        %v3415 = vpop.f32.mrf.mxu0
        %v3416 = vadd.f32 0.0, %v3415
        %v3417 = vpop.f32.mrf.mxu0
        %3418 = vmatprep.mubr.bf16.mxu0 0
        %3419 = vmatmul.mubr.bf16.gmra.mxu0 %v555
        %v3420 = vpop.f32.mrf.mxu0
        %v3421 = vadd.f32 0.0, %v3420
        %v3422 = vpop.f32.mrf.mxu0
        %v3423 = vpop.f32.mrf.mxu0
        %v3424 = vadd.f32 0.0, %v3423
        %v3425 = vpop.f32.mrf.mxu0
        %3426 = vmatprep.mubr.bf16.mxu0 0
        %3427 = vmatmul.mubr.bf16.gmra.mxu0 %v556
        %v3428 = vpop.f32.mrf.mxu0
        %v3429 = vadd.f32 0.0, %v3428
        %v3430 = vpop.f32.mrf.mxu0
        %v3431 = vpop.f32.mrf.mxu0
        %v3432 = vadd.f32 0.0, %v3431
        %v3433 = vpop.f32.mrf.mxu0
        %3434 = vmatprep.mubr.bf16.mxu0 0
        %3435 = vmatmul.mubr.bf16.gmra.mxu0 %v557
        %v3436 = vpop.f32.mrf.mxu0
        %v3437 = vadd.f32 0.0, %v3436
        %v3438 = vpop.f32.mrf.mxu0
        %v3439 = vpop.f32.mrf.mxu0
        %v3440 = vadd.f32 0.0, %v3439
        %v3441 = vpop.f32.mrf.mxu0
        %3442 = vmatprep.mubr.bf16.mxu0 0
        %3443 = vmatmul.mubr.bf16.gmra.mxu0 %v558
        %v3444 = vpop.f32.mrf.mxu0
        %v3445 = vadd.f32 0.0, %v3444
        %v3446 = vpop.f32.mrf.mxu0
        %v3447 = vpop.f32.mrf.mxu0
        %v3448 = vadd.f32 0.0, %v3447
        %v3449 = vpop.f32.mrf.mxu0
        %3450 = vmatprep.mubr.bf16.mxu0 0
        %3451 = vmatmul.mubr.bf16.gmra.mxu0 %v559
        %v3452 = vpop.f32.mrf.mxu0
        %v3453 = vadd.f32 0.0, %v3452
        %v3454 = vpop.f32.mrf.mxu0
        %v3455 = vpop.f32.mrf.mxu0
        %v3456 = vadd.f32 0.0, %v3455
        %v3457 = vpop.f32.mrf.mxu0
        %3458 = vmatprep.mubr.bf16.mxu0 0
        %3459 = vmatmul.mubr.bf16.gmra.mxu0 %v560
        %v3460 = vpop.f32.mrf.mxu0
        %v3461 = vadd.f32 0.0, %v3460
        %v3462 = vpop.f32.mrf.mxu0
        %v3463 = vpop.f32.mrf.mxu0
        %v3464 = vadd.f32 0.0, %v3463
        %v3465 = vpop.f32.mrf.mxu0
        %3466 = vmatprep.mubr.bf16.mxu0 0
        %3467 = vmatmul.mubr.bf16.gmra.mxu0 %v561
        %v3468 = vpop.f32.mrf.mxu0
        %v3469 = vadd.f32 0.0, %v3468
        %v3470 = vpop.f32.mrf.mxu0
        %v3471 = vpop.f32.mrf.mxu0
        %v3472 = vadd.f32 0.0, %v3471
        %v3473 = vpop.f32.mrf.mxu0
        %3474 = vmatprep.mubr.bf16.mxu0 0
        %3475 = vmatmul.mubr.bf16.gmra.mxu0 %v562
        %v3476 = vpop.f32.mrf.mxu0
        %v3477 = vadd.f32 0.0, %v3476
        %v3478 = vpop.f32.mrf.mxu0
        %v3479 = vpop.f32.mrf.mxu0
        %v3480 = vadd.f32 0.0, %v3479
        %v3481 = vpop.f32.mrf.mxu0
        %3482 = vmatprep.mubr.bf16.mxu0 0
        %3483 = vmatmul.mubr.bf16.gmra.mxu0 %v563
        %v3484 = vpop.f32.mrf.mxu0
        %v3485 = vadd.f32 0.0, %v3484
        %v3486 = vpop.f32.mrf.mxu0
        %v3487 = vpop.f32.mrf.mxu0
        %v3488 = vadd.f32 0.0, %v3487
        %v3489 = vpop.f32.mrf.mxu0
        %3490 = vmatprep.mubr.bf16.mxu0 0
        %3491 = vmatmul.mubr.bf16.gmra.mxu0 %v564
        %v3492 = vpop.f32.mrf.mxu0
        %v3493 = vadd.f32 0.0, %v3492
        %v3494 = vpop.f32.mrf.mxu0
        %v3495 = vpop.f32.mrf.mxu0
        %v3496 = vadd.f32 0.0, %v3495
        %v3497 = vpop.f32.mrf.mxu0
        %3498 = vmatprep.mubr.bf16.mxu0 0
        %3499 = vmatmul.mubr.bf16.gmra.mxu0 %v565
        %v3500 = vpop.f32.mrf.mxu0
        %v3501 = vadd.f32 0.0, %v3500
        %v3502 = vpop.f32.mrf.mxu0
        %v3503 = vpop.f32.mrf.mxu0
        %v3504 = vadd.f32 0.0, %v3503
        %v3505 = vpop.f32.mrf.mxu0
        %3506 = vmatprep.mubr.bf16.mxu0 0
        %3507 = vmatmul.mubr.bf16.gmra.mxu0 %v566
        %v3508 = vpop.f32.mrf.mxu0
        %v3509 = vadd.f32 0.0, %v3508
        %v3510 = vpop.f32.mrf.mxu0
        %v3511 = vpop.f32.mrf.mxu0
        %v3512 = vadd.f32 0.0, %v3511
        %v3513 = vpop.f32.mrf.mxu0
        %3514 = vmatprep.mubr.bf16.mxu0 0
        %3515 = vmatmul.mubr.bf16.gmra.mxu0 %v567
        %v3516 = vpop.f32.mrf.mxu0
        %v3517 = vadd.f32 0.0, %v3516
        %v3518 = vpop.f32.mrf.mxu0
        %v3519 = vpop.f32.mrf.mxu0
        %v3520 = vadd.f32 0.0, %v3519
        %v3521 = vpop.f32.mrf.mxu0
        %3522 = vmatprep.mubr.bf16.mxu0 0
        %3523 = vmatmul.mubr.bf16.gmra.mxu0 %v568
        %v3524 = vpop.f32.mrf.mxu0
        %v3525 = vadd.f32 0.0, %v3524
        %v3526 = vpop.f32.mrf.mxu0
        %v3527 = vpop.f32.mrf.mxu0
        %v3528 = vadd.f32 0.0, %v3527
        %v3529 = vpop.f32.mrf.mxu0
        %3530 = vmatprep.mubr.bf16.mxu0 0
        %3531 = vmatmul.mubr.bf16.gmra.mxu0 %v569
        %v3532 = vpop.f32.mrf.mxu0
        %v3533 = vadd.f32 0.0, %v3532
        %v3534 = vpop.f32.mrf.mxu0
        %v3535 = vpop.f32.mrf.mxu0
        %v3536 = vadd.f32 0.0, %v3535
        %v3537 = vpop.f32.mrf.mxu0
        %3538 = vmatprep.mubr.bf16.mxu0 0
        %3539 = vmatmul.mubr.bf16.gmra.mxu0 %v570
        %v3540 = vpop.f32.mrf.mxu0
        %v3541 = vadd.f32 0.0, %v3540
        %v3542 = vpop.f32.mrf.mxu0
        %v3543 = vpop.f32.mrf.mxu0
        %v3544 = vadd.f32 0.0, %v3543
        %v3545 = vpop.f32.mrf.mxu0
        %3546 = vmatprep.mubr.bf16.mxu0 0
        %3547 = vmatmul.mubr.bf16.gmra.mxu0 %v571
        %v3548 = vpop.f32.mrf.mxu0
        %v3549 = vadd.f32 0.0, %v3548
        %v3550 = vpop.f32.mrf.mxu0
        %v3551 = vpop.f32.mrf.mxu0
        %v3552 = vadd.f32 0.0, %v3551
        %v3553 = vpop.f32.mrf.mxu0
        %3554 = vmatprep.mubr.bf16.mxu0 0
        %3555 = vmatmul.mubr.bf16.gmra.mxu0 %v572
        %v3556 = vpop.f32.mrf.mxu0
        %v3557 = vadd.f32 0.0, %v3556
        %v3558 = vpop.f32.mrf.mxu0
        %v3559 = vpop.f32.mrf.mxu0
        %v3560 = vadd.f32 0.0, %v3559
        %v3561 = vpop.f32.mrf.mxu0
        %3562 = vmatprep.mubr.bf16.mxu0 0
        %3563 = vmatmul.mubr.bf16.gmra.mxu0 %v573
        %v3564 = vpop.f32.mrf.mxu0
        %v3565 = vadd.f32 0.0, %v3564
        %v3566 = vpop.f32.mrf.mxu0
        %v3567 = vpop.f32.mrf.mxu0
        %v3568 = vadd.f32 0.0, %v3567
        %v3569 = vpop.f32.mrf.mxu0
        %3570 = vdwg.mxu0
        %v3571 = vadd.f32 %v2963, %v3317
        %v3572 = vadd.f32 %v2966, %v3320
        %v3573 = vadd.f32 %v2971, %v3325
        %v3574 = vadd.f32 %v2974, %v3328
        %v3575 = vadd.f32 %v2979, %v3333
        %v3576 = vadd.f32 %v2982, %v3336
        %v3577 = vadd.f32 %v2987, %v3341
        %v3578 = vadd.f32 %v2990, %v3344
        %v3579 = vadd.f32 %v2995, %v3349
        %v3580 = vadd.f32 %v2998, %v3352
        %v3581 = vadd.f32 %v3003, %v3357
        %v3582 = vadd.f32 %v3006, %v3360
        %v3583 = vadd.f32 %v3011, %v3365
        %v3584 = vadd.f32 %v3014, %v3368
        %v3585 = vadd.f32 %v3019, %v3373
        %v3586 = vadd.f32 %v3022, %v3376
        %v3587 = vadd.f32 %v3027, %v3381
        %v3588 = vadd.f32 %v3030, %v3384
        %v3589 = vadd.f32 %v3035, %v3389
        %v3590 = vadd.f32 %v3038, %v3392
        %v3591 = vadd.f32 %v3043, %v3397
        %v3592 = vadd.f32 %v3046, %v3400
        %v3593 = vadd.f32 %v3051, %v3405
        %v3594 = vadd.f32 %v3054, %v3408
        %v3595 = vadd.f32 %v3059, %v3413
        %v3596 = vadd.f32 %v3062, %v3416
        %v3597 = vadd.f32 %v3067, %v3421
        %v3598 = vadd.f32 %v3070, %v3424
        %v3599 = vadd.f32 %v3075, %v3429
        %v3600 = vadd.f32 %v3078, %v3432
        %v3601 = vadd.f32 %v3083, %v3437
        %v3602 = vadd.f32 %v3086, %v3440
        %v3603 = vadd.f32 %v3091, %v3445
        %v3604 = vadd.f32 %v3094, %v3448
        %v3605 = vadd.f32 %v3099, %v3453
        %v3606 = vadd.f32 %v3102, %v3456
        %v3607 = vadd.f32 %v3107, %v3461
        %v3608 = vadd.f32 %v3110, %v3464
        %v3609 = vadd.f32 %v3115, %v3469
        %v3610 = vadd.f32 %v3118, %v3472
        %v3611 = vadd.f32 %v3123, %v3477
        %v3612 = vadd.f32 %v3126, %v3480
        %v3613 = vadd.f32 %v3131, %v3485
        %v3614 = vadd.f32 %v3134, %v3488
        %v3615 = vadd.f32 %v3139, %v3493
        %v3616 = vadd.f32 %v3142, %v3496
        %v3617 = vadd.f32 %v3147, %v3501
        %v3618 = vadd.f32 %v3150, %v3504
        %v3619 = vadd.f32 %v3155, %v3509
        %v3620 = vadd.f32 %v3158, %v3512
        %v3621 = vadd.f32 %v3163, %v3517
        %v3622 = vadd.f32 %v3166, %v3520
        %v3623 = vadd.f32 %v3171, %v3525
        %v3624 = vadd.f32 %v3174, %v3528
        %v3625 = vadd.f32 %v3179, %v3533
        %v3626 = vadd.f32 %v3182, %v3536
        %v3627 = vadd.f32 %v3187, %v3541
        %v3628 = vadd.f32 %v3190, %v3544
        %v3629 = vadd.f32 %v3195, %v3549
        %v3630 = vadd.f32 %v3198, %v3552
        %v3631 = vadd.f32 %v3203, %v3557
        %v3632 = vadd.f32 %v3206, %v3560
        %v3633 = vadd.f32 %v3211, %v3565
        %v3634 = vadd.f32 %v3214, %v3568
        %v3635 = vmax.f32 %v3571, 0.0
        %v3636 = vmax.f32 %v3572, 0.0
        %v3637 = vmax.f32 %v3573, 0.0
        %v3638 = vmax.f32 %v3574, 0.0
        %v3639 = vmax.f32 %v3575, 0.0
        %v3640 = vmax.f32 %v3576, 0.0
        %v3641 = vmax.f32 %v3577, 0.0
        %v3642 = vmax.f32 %v3578, 0.0
        %v3643 = vmax.f32 %v3579, 0.0
        %v3644 = vmax.f32 %v3580, 0.0
        %v3645 = vmax.f32 %v3581, 0.0
        %v3646 = vmax.f32 %v3582, 0.0
        %v3647 = vmax.f32 %v3583, 0.0
        %v3648 = vmax.f32 %v3584, 0.0
        %v3649 = vmax.f32 %v3585, 0.0
        %v3650 = vmax.f32 %v3586, 0.0
        %v3651 = vmax.f32 %v3587, 0.0
        %v3652 = vmax.f32 %v3588, 0.0
        %v3653 = vmax.f32 %v3589, 0.0
        %v3654 = vmax.f32 %v3590, 0.0
        %v3655 = vmax.f32 %v3591, 0.0
        %v3656 = vmax.f32 %v3592, 0.0
        %v3657 = vmax.f32 %v3593, 0.0
        %v3658 = vmax.f32 %v3594, 0.0
        %v3659 = vmax.f32 %v3595, 0.0
        %v3660 = vmax.f32 %v3596, 0.0
        %v3661 = vmax.f32 %v3597, 0.0
        %v3662 = vmax.f32 %v3598, 0.0
        %v3663 = vmax.f32 %v3599, 0.0
        %v3664 = vmax.f32 %v3600, 0.0
        %v3665 = vmax.f32 %v3601, 0.0
        %v3666 = vmax.f32 %v3602, 0.0
        %v3667 = vmax.f32 %v3603, 0.0
        %v3668 = vmax.f32 %v3604, 0.0
        %v3669 = vmax.f32 %v3605, 0.0
        %v3670 = vmax.f32 %v3606, 0.0
        %v3671 = vmax.f32 %v3607, 0.0
        %v3672 = vmax.f32 %v3608, 0.0
        %v3673 = vmax.f32 %v3609, 0.0
        %v3674 = vmax.f32 %v3610, 0.0
        %v3675 = vmax.f32 %v3611, 0.0
        %v3676 = vmax.f32 %v3612, 0.0
        %v3677 = vmax.f32 %v3613, 0.0
        %v3678 = vmax.f32 %v3614, 0.0
        %v3679 = vmax.f32 %v3615, 0.0
        %v3680 = vmax.f32 %v3616, 0.0
        %v3681 = vmax.f32 %v3617, 0.0
        %v3682 = vmax.f32 %v3618, 0.0
        %v3683 = vmax.f32 %v3619, 0.0
        %v3684 = vmax.f32 %v3620, 0.0
        %v3685 = vmax.f32 %v3621, 0.0
        %v3686 = vmax.f32 %v3622, 0.0
        %v3687 = vmax.f32 %v3623, 0.0
        %v3688 = vmax.f32 %v3624, 0.0
        %v3689 = vmax.f32 %v3625, 0.0
        %v3690 = vmax.f32 %v3626, 0.0
        %v3691 = vmax.f32 %v3627, 0.0
        %v3692 = vmax.f32 %v3628, 0.0
        %v3693 = vmax.f32 %v3629, 0.0
        %v3694 = vmax.f32 %v3630, 0.0
        %v3695 = vmax.f32 %v3631, 0.0
        %v3696 = vmax.f32 %v3632, 0.0
        %v3697 = vmax.f32 %v3633, 0.0
        %v3698 = vmax.f32 %v3634, 0.0
        %v3699 = vpack.c.bf16 %v3636, %v3635
        %v3700 = vpack.c.bf16 %v3638, %v3637
        %v3701 = vpack.c.bf16 %v3640, %v3639
        %v3702 = vpack.c.bf16 %v3642, %v3641
        %v3703 = vpack.c.bf16 %v3644, %v3643
        %v3704 = vpack.c.bf16 %v3646, %v3645
        %v3705 = vpack.c.bf16 %v3648, %v3647
        %v3706 = vpack.c.bf16 %v3650, %v3649
        %v3707 = vpack.c.bf16 %v3652, %v3651
        %v3708 = vpack.c.bf16 %v3654, %v3653
        %v3709 = vpack.c.bf16 %v3656, %v3655
        %v3710 = vpack.c.bf16 %v3658, %v3657
        %v3711 = vpack.c.bf16 %v3660, %v3659
        %v3712 = vpack.c.bf16 %v3662, %v3661
        %v3713 = vpack.c.bf16 %v3664, %v3663
        %v3714 = vpack.c.bf16 %v3666, %v3665
        %v3715 = vpack.c.bf16 %v3668, %v3667
        %v3716 = vpack.c.bf16 %v3670, %v3669
        %v3717 = vpack.c.bf16 %v3672, %v3671
        %v3718 = vpack.c.bf16 %v3674, %v3673
        %v3719 = vpack.c.bf16 %v3676, %v3675
        %v3720 = vpack.c.bf16 %v3678, %v3677
        %v3721 = vpack.c.bf16 %v3680, %v3679
        %v3722 = vpack.c.bf16 %v3682, %v3681
        %v3723 = vpack.c.bf16 %v3684, %v3683
        %v3724 = vpack.c.bf16 %v3686, %v3685
        %v3725 = vpack.c.bf16 %v3688, %v3687
        %v3726 = vpack.c.bf16 %v3690, %v3689
        %v3727 = vpack.c.bf16 %v3692, %v3691
        %v3728 = vpack.c.bf16 %v3694, %v3693
        %v3729 = vpack.c.bf16 %v3696, %v3695
        %v3730 = vpack.c.bf16 %v3698, %v3697
        %s3731 = scalar_lea.vmem [#allocation7], 320
        %v3732 = vld [vmem:[%s3731] sm:$0xf]
        %v3733 = vld [vmem:[%s3731 + $0x4] sm:$0xf]
        %v3734 = vld [vmem:[%s3731 + $0x8] sm:$0xf]
        %v3735 = vld [vmem:[%s3731 + $0xc] sm:$0xf]
        %v3736 = vld [vmem:[%s3731 + $0x10] sm:$0xf]
        %v3737 = vld [vmem:[%s3731 + $0x14] sm:$0xf]
        %v3738 = vld [vmem:[%s3731 + $0x18] sm:$0xf]
        %v3739 = vld [vmem:[%s3731 + $0x1c] sm:$0xf]
        %v3740 = vld [vmem:[%s3731 + $0x20] sm:$0xf]
        %v3741 = vld [vmem:[%s3731 + $0x24] sm:$0xf]
        %v3742 = vld [vmem:[%s3731 + $0x28] sm:$0xf]
        %v3743 = vld [vmem:[%s3731 + $0x2c] sm:$0xf]
        %v3744 = vld [vmem:[%s3731 + $0x30] sm:$0xf]
        %v3745 = vld [vmem:[%s3731 + $0x34] sm:$0xf]
        %v3746 = vld [vmem:[%s3731 + $0x38] sm:$0xf]
        %v3747 = vld [vmem:[%s3731 + $0x3c] sm:$0xf]
        %v3748 = vld [vmem:[#allocation8 + $0x6] sm:$0x1]
        %v3749 = vlaneseq
        %v3750 = vshrl.u32 %v3749, 7
        %v3751 = vsub.s32 0, %v3750
        %v3752 = vrot.slane %v3748, %v3751
        %v3769 = vunpack.c.l.b16 %v3732
        %v3770 = vunpack.c.l.b16 %v3733
        %v3771 = vunpack.c.l.b16 %v3734
        %v3772 = vunpack.c.l.b16 %v3735
        %v3773 = vunpack.c.l.b16 %v3736
        %v3774 = vunpack.c.l.b16 %v3737
        %v3775 = vunpack.c.l.b16 %v3738
        %v3776 = vunpack.c.l.b16 %v3739
        %v3777 = vunpack.c.l.b16 %v3740
        %v3778 = vunpack.c.l.b16 %v3741
        %v3779 = vunpack.c.l.b16 %v3742
        %v3780 = vunpack.c.l.b16 %v3743
        %v3781 = vunpack.c.l.b16 %v3744
        %v3782 = vunpack.c.l.b16 %v3745
        %v3783 = vunpack.c.l.b16 %v3746
        %v3784 = vunpack.c.l.b16 %v3747
        %v3785 = vpack.c.b16 %v3770, %v3769
        %v3786 = vpack.c.b16 %v3772, %v3771
        %v3787 = vpack.c.b16 %v3774, %v3773
        %v3788 = vpack.c.b16 %v3776, %v3775
        %v3789 = vpack.c.b16 %v3778, %v3777
        %v3790 = vpack.c.b16 %v3780, %v3779
        %v3791 = vpack.c.b16 %v3782, %v3781
        %v3792 = vpack.c.b16 %v3784, %v3783
        %3801 = vmatprep.subr.bf16.mxu0 0
        %3802 = vmatpush1.bf16.msra.mxu0 %v3792
        %3803 = vmatprep.subr.bf16.mxu0 0
        %3804 = vmatpush1.bf16.msra.mxu0 %v3791
        %3805 = vmatprep.subr.bf16.mxu0 0
        %3806 = vmatpush1.bf16.msra.mxu0 %v3790
        %3807 = vmatprep.subr.bf16.mxu0 0
        %3808 = vmatpush1.bf16.msra.mxu0 %v3789
        %3809 = vmatprep.subr.bf16.mxu0 0
        %3810 = vmatpush1.bf16.msra.mxu0 %v3788
        %3811 = vmatprep.subr.bf16.mxu0 0
        %3812 = vmatpush1.bf16.msra.mxu0 %v3787
        %3813 = vmatprep.subr.bf16.mxu0 0
        %3814 = vmatpush1.bf16.msra.mxu0 %v3786
        %3815 = vmatprep.subr.bf16.mxu0 0
        %3816 = vmatpush1.bf16.msra.mxu0 %v3785
        %3817 = vmatprep.subr.bf16.mxu0 0
        %3818 = vmatpush2.bf16.msra.mxu0 0
        %3819 = vmatprep.subr.bf16.mxu0 0
        %3820 = vmatpush2.bf16.msra.mxu0 0
        %3821 = vmatprep.subr.bf16.mxu0 0
        %3822 = vmatpush2.bf16.msra.mxu0 0
        %3823 = vmatprep.subr.bf16.mxu0 0
        %3824 = vmatpush2.bf16.msra.mxu0 0
        %3825 = vmatprep.subr.bf16.mxu0 0
        %3826 = vmatpush2.bf16.msra.mxu0 0
        %3827 = vmatprep.subr.bf16.mxu0 0
        %3828 = vmatpush2.bf16.msra.mxu0 0
        %3829 = vmatprep.subr.bf16.mxu0 0
        %3830 = vmatpush2.bf16.msra.mxu0 0
        %3831 = vmatprep.subr.bf16.mxu0 0
        %3832 = vmatpush2.bf16.msra.mxu0 0
        %3833 = vmatprep.mubr.bf16.mxu0 0
        %3834 = vmatmul.mubr.bf16.gmra.mxu0 %v3699
        %v3835 = vpop.f32.mrf.mxu0
        %v3836 = vadd.f32 %v3752, %v3835
        %v3837 = vpop.f32.mrf.mxu0
        %v3838 = vpop.f32.mrf.mxu0
        %v3839 = vadd.f32 %v3752, %v3838
        %v3840 = vpop.f32.mrf.mxu0
        %3841 = vmatprep.mubr.bf16.mxu0 0
        %3842 = vmatmul.mubr.bf16.gmra.mxu0 %v3700
        %v3843 = vpop.f32.mrf.mxu0
        %v3844 = vadd.f32 %v3752, %v3843
        %v3845 = vpop.f32.mrf.mxu0
        %v3846 = vpop.f32.mrf.mxu0
        %v3847 = vadd.f32 %v3752, %v3846
        %v3848 = vpop.f32.mrf.mxu0
        %3849 = vmatprep.mubr.bf16.mxu0 0
        %3850 = vmatmul.mubr.bf16.gmra.mxu0 %v3701
        %v3851 = vpop.f32.mrf.mxu0
        %v3852 = vadd.f32 %v3752, %v3851
        %v3853 = vpop.f32.mrf.mxu0
        %v3854 = vpop.f32.mrf.mxu0
        %v3855 = vadd.f32 %v3752, %v3854
        %v3856 = vpop.f32.mrf.mxu0
        %3857 = vmatprep.mubr.bf16.mxu0 0
        %3858 = vmatmul.mubr.bf16.gmra.mxu0 %v3702
        %v3859 = vpop.f32.mrf.mxu0
        %v3860 = vadd.f32 %v3752, %v3859
        %v3861 = vpop.f32.mrf.mxu0
        %v3862 = vpop.f32.mrf.mxu0
        %v3863 = vadd.f32 %v3752, %v3862
        %v3864 = vpop.f32.mrf.mxu0
        %3865 = vmatprep.mubr.bf16.mxu0 0
        %3866 = vmatmul.mubr.bf16.gmra.mxu0 %v3703
        %v3867 = vpop.f32.mrf.mxu0
        %v3868 = vadd.f32 %v3752, %v3867
        %v3869 = vpop.f32.mrf.mxu0
        %v3870 = vpop.f32.mrf.mxu0
        %v3871 = vadd.f32 %v3752, %v3870
        %v3872 = vpop.f32.mrf.mxu0
        %3873 = vmatprep.mubr.bf16.mxu0 0
        %3874 = vmatmul.mubr.bf16.gmra.mxu0 %v3704
        %v3875 = vpop.f32.mrf.mxu0
        %v3876 = vadd.f32 %v3752, %v3875
        %v3877 = vpop.f32.mrf.mxu0
        %v3878 = vpop.f32.mrf.mxu0
        %v3879 = vadd.f32 %v3752, %v3878
        %v3880 = vpop.f32.mrf.mxu0
        %3881 = vmatprep.mubr.bf16.mxu0 0
        %3882 = vmatmul.mubr.bf16.gmra.mxu0 %v3705
        %v3883 = vpop.f32.mrf.mxu0
        %v3884 = vadd.f32 %v3752, %v3883
        %v3885 = vpop.f32.mrf.mxu0
        %v3886 = vpop.f32.mrf.mxu0
        %v3887 = vadd.f32 %v3752, %v3886
        %v3888 = vpop.f32.mrf.mxu0
        %3889 = vmatprep.mubr.bf16.mxu0 0
        %3890 = vmatmul.mubr.bf16.gmra.mxu0 %v3706
        %v3891 = vpop.f32.mrf.mxu0
        %v3892 = vadd.f32 %v3752, %v3891
        %v3893 = vpop.f32.mrf.mxu0
        %v3894 = vpop.f32.mrf.mxu0
        %v3895 = vadd.f32 %v3752, %v3894
        %v3896 = vpop.f32.mrf.mxu0
        %3897 = vmatprep.mubr.bf16.mxu0 0
        %3898 = vmatmul.mubr.bf16.gmra.mxu0 %v3707
        %v3899 = vpop.f32.mrf.mxu0
        %v3900 = vadd.f32 %v3752, %v3899
        %v3901 = vpop.f32.mrf.mxu0
        %v3902 = vpop.f32.mrf.mxu0
        %v3903 = vadd.f32 %v3752, %v3902
        %v3904 = vpop.f32.mrf.mxu0
        %3905 = vmatprep.mubr.bf16.mxu0 0
        %3906 = vmatmul.mubr.bf16.gmra.mxu0 %v3708
        %v3907 = vpop.f32.mrf.mxu0
        %v3908 = vadd.f32 %v3752, %v3907
        %v3909 = vpop.f32.mrf.mxu0
        %v3910 = vpop.f32.mrf.mxu0
        %v3911 = vadd.f32 %v3752, %v3910
        %v3912 = vpop.f32.mrf.mxu0
        %3913 = vmatprep.mubr.bf16.mxu0 0
        %3914 = vmatmul.mubr.bf16.gmra.mxu0 %v3709
        %v3915 = vpop.f32.mrf.mxu0
        %v3916 = vadd.f32 %v3752, %v3915
        %v3917 = vpop.f32.mrf.mxu0
        %v3918 = vpop.f32.mrf.mxu0
        %v3919 = vadd.f32 %v3752, %v3918
        %v3920 = vpop.f32.mrf.mxu0
        %3921 = vmatprep.mubr.bf16.mxu0 0
        %3922 = vmatmul.mubr.bf16.gmra.mxu0 %v3710
        %v3923 = vpop.f32.mrf.mxu0
        %v3924 = vadd.f32 %v3752, %v3923
        %v3925 = vpop.f32.mrf.mxu0
        %v3926 = vpop.f32.mrf.mxu0
        %v3927 = vadd.f32 %v3752, %v3926
        %v3928 = vpop.f32.mrf.mxu0
        %3929 = vmatprep.mubr.bf16.mxu0 0
        %3930 = vmatmul.mubr.bf16.gmra.mxu0 %v3711
        %v3931 = vpop.f32.mrf.mxu0
        %v3932 = vadd.f32 %v3752, %v3931
        %v3933 = vpop.f32.mrf.mxu0
        %v3934 = vpop.f32.mrf.mxu0
        %v3935 = vadd.f32 %v3752, %v3934
        %v3936 = vpop.f32.mrf.mxu0
        %3937 = vmatprep.mubr.bf16.mxu0 0
        %3938 = vmatmul.mubr.bf16.gmra.mxu0 %v3712
        %v3939 = vpop.f32.mrf.mxu0
        %v3940 = vadd.f32 %v3752, %v3939
        %v3941 = vpop.f32.mrf.mxu0
        %v3942 = vpop.f32.mrf.mxu0
        %v3943 = vadd.f32 %v3752, %v3942
        %v3944 = vpop.f32.mrf.mxu0
        %3945 = vmatprep.mubr.bf16.mxu0 0
        %3946 = vmatmul.mubr.bf16.gmra.mxu0 %v3713
        %v3947 = vpop.f32.mrf.mxu0
        %v3948 = vadd.f32 %v3752, %v3947
        %v3949 = vpop.f32.mrf.mxu0
        %v3950 = vpop.f32.mrf.mxu0
        %v3951 = vadd.f32 %v3752, %v3950
        %v3952 = vpop.f32.mrf.mxu0
        %3953 = vmatprep.mubr.bf16.mxu0 0
        %3954 = vmatmul.mubr.bf16.gmra.mxu0 %v3714
        %v3955 = vpop.f32.mrf.mxu0
        %v3956 = vadd.f32 %v3752, %v3955
        %v3957 = vpop.f32.mrf.mxu0
        %v3958 = vpop.f32.mrf.mxu0
        %v3959 = vadd.f32 %v3752, %v3958
        %v3960 = vpop.f32.mrf.mxu0
        %3961 = vmatprep.mubr.bf16.mxu0 0
        %3962 = vmatmul.mubr.bf16.gmra.mxu0 %v3715
        %v3963 = vpop.f32.mrf.mxu0
        %v3964 = vadd.f32 %v3752, %v3963
        %v3965 = vpop.f32.mrf.mxu0
        %v3966 = vpop.f32.mrf.mxu0
        %v3967 = vadd.f32 %v3752, %v3966
        %v3968 = vpop.f32.mrf.mxu0
        %3969 = vmatprep.mubr.bf16.mxu0 0
        %3970 = vmatmul.mubr.bf16.gmra.mxu0 %v3716
        %v3971 = vpop.f32.mrf.mxu0
        %v3972 = vadd.f32 %v3752, %v3971
        %v3973 = vpop.f32.mrf.mxu0
        %v3974 = vpop.f32.mrf.mxu0
        %v3975 = vadd.f32 %v3752, %v3974
        %v3976 = vpop.f32.mrf.mxu0
        %3977 = vmatprep.mubr.bf16.mxu0 0
        %3978 = vmatmul.mubr.bf16.gmra.mxu0 %v3717
        %v3979 = vpop.f32.mrf.mxu0
        %v3980 = vadd.f32 %v3752, %v3979
        %v3981 = vpop.f32.mrf.mxu0
        %v3982 = vpop.f32.mrf.mxu0
        %v3983 = vadd.f32 %v3752, %v3982
        %v3984 = vpop.f32.mrf.mxu0
        %3985 = vmatprep.mubr.bf16.mxu0 0
        %3986 = vmatmul.mubr.bf16.gmra.mxu0 %v3718
        %v3987 = vpop.f32.mrf.mxu0
        %v3988 = vadd.f32 %v3752, %v3987
        %v3989 = vpop.f32.mrf.mxu0
        %v3990 = vpop.f32.mrf.mxu0
        %v3991 = vadd.f32 %v3752, %v3990
        %v3992 = vpop.f32.mrf.mxu0
        %3993 = vmatprep.mubr.bf16.mxu0 0
        %3994 = vmatmul.mubr.bf16.gmra.mxu0 %v3719
        %v3995 = vpop.f32.mrf.mxu0
        %v3996 = vadd.f32 %v3752, %v3995
        %v3997 = vpop.f32.mrf.mxu0
        %v3998 = vpop.f32.mrf.mxu0
        %v3999 = vadd.f32 %v3752, %v3998
        %v4000 = vpop.f32.mrf.mxu0
        %4001 = vmatprep.mubr.bf16.mxu0 0
        %4002 = vmatmul.mubr.bf16.gmra.mxu0 %v3720
        %v4003 = vpop.f32.mrf.mxu0
        %v4004 = vadd.f32 %v3752, %v4003
        %v4005 = vpop.f32.mrf.mxu0
        %v4006 = vpop.f32.mrf.mxu0
        %v4007 = vadd.f32 %v3752, %v4006
        %v4008 = vpop.f32.mrf.mxu0
        %4009 = vmatprep.mubr.bf16.mxu0 0
        %4010 = vmatmul.mubr.bf16.gmra.mxu0 %v3721
        %v4011 = vpop.f32.mrf.mxu0
        %v4012 = vadd.f32 %v3752, %v4011
        %v4013 = vpop.f32.mrf.mxu0
        %v4014 = vpop.f32.mrf.mxu0
        %v4015 = vadd.f32 %v3752, %v4014
        %v4016 = vpop.f32.mrf.mxu0
        %4017 = vmatprep.mubr.bf16.mxu0 0
        %4018 = vmatmul.mubr.bf16.gmra.mxu0 %v3722
        %v4019 = vpop.f32.mrf.mxu0
        %v4020 = vadd.f32 %v3752, %v4019
        %v4021 = vpop.f32.mrf.mxu0
        %v4022 = vpop.f32.mrf.mxu0
        %v4023 = vadd.f32 %v3752, %v4022
        %v4024 = vpop.f32.mrf.mxu0
        %4025 = vmatprep.mubr.bf16.mxu0 0
        %4026 = vmatmul.mubr.bf16.gmra.mxu0 %v3723
        %v4027 = vpop.f32.mrf.mxu0
        %v4028 = vadd.f32 %v3752, %v4027
        %v4029 = vpop.f32.mrf.mxu0
        %v4030 = vpop.f32.mrf.mxu0
        %v4031 = vadd.f32 %v3752, %v4030
        %v4032 = vpop.f32.mrf.mxu0
        %4033 = vmatprep.mubr.bf16.mxu0 0
        %4034 = vmatmul.mubr.bf16.gmra.mxu0 %v3724
        %v4035 = vpop.f32.mrf.mxu0
        %v4036 = vadd.f32 %v3752, %v4035
        %v4037 = vpop.f32.mrf.mxu0
        %v4038 = vpop.f32.mrf.mxu0
        %v4039 = vadd.f32 %v3752, %v4038
        %v4040 = vpop.f32.mrf.mxu0
        %4041 = vmatprep.mubr.bf16.mxu0 0
        %4042 = vmatmul.mubr.bf16.gmra.mxu0 %v3725
        %v4043 = vpop.f32.mrf.mxu0
        %v4044 = vadd.f32 %v3752, %v4043
        %v4045 = vpop.f32.mrf.mxu0
        %v4046 = vpop.f32.mrf.mxu0
        %v4047 = vadd.f32 %v3752, %v4046
        %v4048 = vpop.f32.mrf.mxu0
        %4049 = vmatprep.mubr.bf16.mxu0 0
        %4050 = vmatmul.mubr.bf16.gmra.mxu0 %v3726
        %v4051 = vpop.f32.mrf.mxu0
        %v4052 = vadd.f32 %v3752, %v4051
        %v4053 = vpop.f32.mrf.mxu0
        %v4054 = vpop.f32.mrf.mxu0
        %v4055 = vadd.f32 %v3752, %v4054
        %v4056 = vpop.f32.mrf.mxu0
        %4057 = vmatprep.mubr.bf16.mxu0 0
        %4058 = vmatmul.mubr.bf16.gmra.mxu0 %v3727
        %v4059 = vpop.f32.mrf.mxu0
        %v4060 = vadd.f32 %v3752, %v4059
        %v4061 = vpop.f32.mrf.mxu0
        %v4062 = vpop.f32.mrf.mxu0
        %v4063 = vadd.f32 %v3752, %v4062
        %v4064 = vpop.f32.mrf.mxu0
        %4065 = vmatprep.mubr.bf16.mxu0 0
        %4066 = vmatmul.mubr.bf16.gmra.mxu0 %v3728
        %v4067 = vpop.f32.mrf.mxu0
        %v4068 = vadd.f32 %v3752, %v4067
        %v4069 = vpop.f32.mrf.mxu0
        %v4070 = vpop.f32.mrf.mxu0
        %v4071 = vadd.f32 %v3752, %v4070
        %v4072 = vpop.f32.mrf.mxu0
        %4073 = vmatprep.mubr.bf16.mxu0 0
        %4074 = vmatmul.mubr.bf16.gmra.mxu0 %v3729
        %v4075 = vpop.f32.mrf.mxu0
        %v4076 = vadd.f32 %v3752, %v4075
        %v4077 = vpop.f32.mrf.mxu0
        %v4078 = vpop.f32.mrf.mxu0
        %v4079 = vadd.f32 %v3752, %v4078
        %v4080 = vpop.f32.mrf.mxu0
        %4081 = vmatprep.mubr.bf16.mxu0 0
        %4082 = vmatmul.mubr.bf16.gmra.mxu0 %v3730
        %v4083 = vpop.f32.mrf.mxu0
        %v4084 = vadd.f32 %v3752, %v4083
        %v4085 = vpop.f32.mrf.mxu0
        %v4086 = vpop.f32.mrf.mxu0
        %v4087 = vadd.f32 %v3752, %v4086
        %v4088 = vpop.f32.mrf.mxu0
        %4089 = vdwg.mxu0
        %v4090 = vmax.f32 %v3836, 0.0
        %v4091 = vmax.f32 %v3839, 0.0
        %v4092 = vmax.f32 %v3844, 0.0
        %v4093 = vmax.f32 %v3847, 0.0
        %v4094 = vmax.f32 %v3852, 0.0
        %v4095 = vmax.f32 %v3855, 0.0
        %v4096 = vmax.f32 %v3860, 0.0
        %v4097 = vmax.f32 %v3863, 0.0
        %v4098 = vmax.f32 %v3868, 0.0
        %v4099 = vmax.f32 %v3871, 0.0
        %v4100 = vmax.f32 %v3876, 0.0
        %v4101 = vmax.f32 %v3879, 0.0
        %v4102 = vmax.f32 %v3884, 0.0
        %v4103 = vmax.f32 %v3887, 0.0
        %v4104 = vmax.f32 %v3892, 0.0
        %v4105 = vmax.f32 %v3895, 0.0
        %v4106 = vmax.f32 %v3900, 0.0
        %v4107 = vmax.f32 %v3903, 0.0
        %v4108 = vmax.f32 %v3908, 0.0
        %v4109 = vmax.f32 %v3911, 0.0
        %v4110 = vmax.f32 %v3916, 0.0
        %v4111 = vmax.f32 %v3919, 0.0
        %v4112 = vmax.f32 %v3924, 0.0
        %v4113 = vmax.f32 %v3927, 0.0
        %v4114 = vmax.f32 %v3932, 0.0
        %v4115 = vmax.f32 %v3935, 0.0
        %v4116 = vmax.f32 %v3940, 0.0
        %v4117 = vmax.f32 %v3943, 0.0
        %v4118 = vmax.f32 %v3948, 0.0
        %v4119 = vmax.f32 %v3951, 0.0
        %v4120 = vmax.f32 %v3956, 0.0
        %v4121 = vmax.f32 %v3959, 0.0
        %v4122 = vmax.f32 %v3964, 0.0
        %v4123 = vmax.f32 %v3967, 0.0
        %v4124 = vmax.f32 %v3972, 0.0
        %v4125 = vmax.f32 %v3975, 0.0
        %v4126 = vmax.f32 %v3980, 0.0
        %v4127 = vmax.f32 %v3983, 0.0
        %v4128 = vmax.f32 %v3988, 0.0
        %v4129 = vmax.f32 %v3991, 0.0
        %v4130 = vmax.f32 %v3996, 0.0
        %v4131 = vmax.f32 %v3999, 0.0
        %v4132 = vmax.f32 %v4004, 0.0
        %v4133 = vmax.f32 %v4007, 0.0
        %v4134 = vmax.f32 %v4012, 0.0
        %v4135 = vmax.f32 %v4015, 0.0
        %v4136 = vmax.f32 %v4020, 0.0
        %v4137 = vmax.f32 %v4023, 0.0
        %v4138 = vmax.f32 %v4028, 0.0
        %v4139 = vmax.f32 %v4031, 0.0
        %v4140 = vmax.f32 %v4036, 0.0
        %v4141 = vmax.f32 %v4039, 0.0
        %v4142 = vmax.f32 %v4044, 0.0
        %v4143 = vmax.f32 %v4047, 0.0
        %v4144 = vmax.f32 %v4052, 0.0
        %v4145 = vmax.f32 %v4055, 0.0
        %v4146 = vmax.f32 %v4060, 0.0
        %v4147 = vmax.f32 %v4063, 0.0
        %v4148 = vmax.f32 %v4068, 0.0
        %v4149 = vmax.f32 %v4071, 0.0
        %v4150 = vmax.f32 %v4076, 0.0
        %v4151 = vmax.f32 %v4079, 0.0
        %v4152 = vmax.f32 %v4084, 0.0
        %v4153 = vmax.f32 %v4087, 0.0
        %v4154 = vpack.c.bf16 %v4091, %v4090
        %v4155 = vpack.c.bf16 %v4093, %v4092
        %v4156 = vpack.c.bf16 %v4095, %v4094
        %v4157 = vpack.c.bf16 %v4097, %v4096
        %v4158 = vpack.c.bf16 %v4099, %v4098
        %v4159 = vpack.c.bf16 %v4101, %v4100
        %v4160 = vpack.c.bf16 %v4103, %v4102
        %v4161 = vpack.c.bf16 %v4105, %v4104
        %v4162 = vpack.c.bf16 %v4107, %v4106
        %v4163 = vpack.c.bf16 %v4109, %v4108
        %v4164 = vpack.c.bf16 %v4111, %v4110
        %v4165 = vpack.c.bf16 %v4113, %v4112
        %v4166 = vpack.c.bf16 %v4115, %v4114
        %v4167 = vpack.c.bf16 %v4117, %v4116
        %v4168 = vpack.c.bf16 %v4119, %v4118
        %v4169 = vpack.c.bf16 %v4121, %v4120
        %v4170 = vpack.c.bf16 %v4123, %v4122
        %v4171 = vpack.c.bf16 %v4125, %v4124
        %v4172 = vpack.c.bf16 %v4127, %v4126
        %v4173 = vpack.c.bf16 %v4129, %v4128
        %v4174 = vpack.c.bf16 %v4131, %v4130
        %v4175 = vpack.c.bf16 %v4133, %v4132
        %v4176 = vpack.c.bf16 %v4135, %v4134
        %v4177 = vpack.c.bf16 %v4137, %v4136
        %v4178 = vpack.c.bf16 %v4139, %v4138
        %v4179 = vpack.c.bf16 %v4141, %v4140
        %v4180 = vpack.c.bf16 %v4143, %v4142
        %v4181 = vpack.c.bf16 %v4145, %v4144
        %v4182 = vpack.c.bf16 %v4147, %v4146
        %v4183 = vpack.c.bf16 %v4149, %v4148
        %v4184 = vpack.c.bf16 %v4151, %v4150
        %v4185 = vpack.c.bf16 %v4153, %v4152
        %s4186 = scalar_lea.vmem [#allocation7], 384
        %v4187 = vld [vmem:[%s4186] sm:$0xf]
        %v4188 = vld [vmem:[%s4186 + $0x4] sm:$0xf]
        %v4189 = vld [vmem:[%s4186 + $0x8] sm:$0xf]
        %v4190 = vld [vmem:[%s4186 + $0xc] sm:$0xf]
        %v4191 = vld [vmem:[%s4186 + $0x10] sm:$0xf]
        %v4192 = vld [vmem:[%s4186 + $0x14] sm:$0xf]
        %v4193 = vld [vmem:[%s4186 + $0x18] sm:$0xf]
        %v4194 = vld [vmem:[%s4186 + $0x1c] sm:$0xf]
        %v4195 = vld [vmem:[%s4186 + $0x20] sm:$0xf]
        %v4196 = vld [vmem:[%s4186 + $0x24] sm:$0xf]
        %v4197 = vld [vmem:[%s4186 + $0x28] sm:$0xf]
        %v4198 = vld [vmem:[%s4186 + $0x2c] sm:$0xf]
        %v4199 = vld [vmem:[%s4186 + $0x30] sm:$0xf]
        %v4200 = vld [vmem:[%s4186 + $0x34] sm:$0xf]
        %v4201 = vld [vmem:[%s4186 + $0x38] sm:$0xf]
        %v4202 = vld [vmem:[%s4186 + $0x3c] sm:$0xf]
        %v4203 = vld [vmem:[#allocation8 + $0x7] sm:$0x1]
        %v4204 = vlaneseq
        %v4205 = vshrl.u32 %v4204, 7
        %v4206 = vsub.s32 0, %v4205
        %v4207 = vrot.slane %v4203, %v4206
        %v4224 = vunpack.c.l.b16 %v4187
        %v4225 = vunpack.c.l.b16 %v4188
        %v4226 = vunpack.c.l.b16 %v4189
        %v4227 = vunpack.c.l.b16 %v4190
        %v4228 = vunpack.c.l.b16 %v4191
        %v4229 = vunpack.c.l.b16 %v4192
        %v4230 = vunpack.c.l.b16 %v4193
        %v4231 = vunpack.c.l.b16 %v4194
        %v4232 = vunpack.c.l.b16 %v4195
        %v4233 = vunpack.c.l.b16 %v4196
        %v4234 = vunpack.c.l.b16 %v4197
        %v4235 = vunpack.c.l.b16 %v4198
        %v4236 = vunpack.c.l.b16 %v4199
        %v4237 = vunpack.c.l.b16 %v4200
        %v4238 = vunpack.c.l.b16 %v4201
        %v4239 = vunpack.c.l.b16 %v4202
        %v4240 = vpack.c.b16 %v4225, %v4224
        %v4241 = vpack.c.b16 %v4227, %v4226
        %v4242 = vpack.c.b16 %v4229, %v4228
        %v4243 = vpack.c.b16 %v4231, %v4230
        %v4244 = vpack.c.b16 %v4233, %v4232
        %v4245 = vpack.c.b16 %v4235, %v4234
        %v4246 = vpack.c.b16 %v4237, %v4236
        %v4247 = vpack.c.b16 %v4239, %v4238
        %4256 = vmatprep.subr.bf16.mxu0 0
        %4257 = vmatpush1.bf16.msra.mxu0 %v4247
        %4258 = vmatprep.subr.bf16.mxu0 0
        %4259 = vmatpush1.bf16.msra.mxu0 %v4246
        %4260 = vmatprep.subr.bf16.mxu0 0
        %4261 = vmatpush1.bf16.msra.mxu0 %v4245
        %4262 = vmatprep.subr.bf16.mxu0 0
        %4263 = vmatpush1.bf16.msra.mxu0 %v4244
        %4264 = vmatprep.subr.bf16.mxu0 0
        %4265 = vmatpush1.bf16.msra.mxu0 %v4243
        %4266 = vmatprep.subr.bf16.mxu0 0
        %4267 = vmatpush1.bf16.msra.mxu0 %v4242
        %4268 = vmatprep.subr.bf16.mxu0 0
        %4269 = vmatpush1.bf16.msra.mxu0 %v4241
        %4270 = vmatprep.subr.bf16.mxu0 0
        %4271 = vmatpush1.bf16.msra.mxu0 %v4240
        %4272 = vmatprep.subr.bf16.mxu0 0
        %4273 = vmatpush2.bf16.msra.mxu0 0
        %4274 = vmatprep.subr.bf16.mxu0 0
        %4275 = vmatpush2.bf16.msra.mxu0 0
        %4276 = vmatprep.subr.bf16.mxu0 0
        %4277 = vmatpush2.bf16.msra.mxu0 0
        %4278 = vmatprep.subr.bf16.mxu0 0
        %4279 = vmatpush2.bf16.msra.mxu0 0
        %4280 = vmatprep.subr.bf16.mxu0 0
        %4281 = vmatpush2.bf16.msra.mxu0 0
        %4282 = vmatprep.subr.bf16.mxu0 0
        %4283 = vmatpush2.bf16.msra.mxu0 0
        %4284 = vmatprep.subr.bf16.mxu0 0
        %4285 = vmatpush2.bf16.msra.mxu0 0
        %4286 = vmatprep.subr.bf16.mxu0 0
        %4287 = vmatpush2.bf16.msra.mxu0 0
        %4288 = vmatprep.mubr.bf16.mxu0 0
        %4289 = vmatmul.mubr.bf16.gmra.mxu0 %v4154
        %v4290 = vpop.f32.mrf.mxu0
        %v4291 = vadd.f32 %v4207, %v4290
        %v4292 = vpop.f32.mrf.mxu0
        %v4293 = vpop.f32.mrf.mxu0
        %v4294 = vadd.f32 %v4207, %v4293
        %v4295 = vpop.f32.mrf.mxu0
        %4296 = vmatprep.mubr.bf16.mxu0 0
        %4297 = vmatmul.mubr.bf16.gmra.mxu0 %v4155
        %v4298 = vpop.f32.mrf.mxu0
        %v4299 = vadd.f32 %v4207, %v4298
        %v4300 = vpop.f32.mrf.mxu0
        %v4301 = vpop.f32.mrf.mxu0
        %v4302 = vadd.f32 %v4207, %v4301
        %v4303 = vpop.f32.mrf.mxu0
        %4304 = vmatprep.mubr.bf16.mxu0 0
        %4305 = vmatmul.mubr.bf16.gmra.mxu0 %v4156
        %v4306 = vpop.f32.mrf.mxu0
        %v4307 = vadd.f32 %v4207, %v4306
        %v4308 = vpop.f32.mrf.mxu0
        %v4309 = vpop.f32.mrf.mxu0
        %v4310 = vadd.f32 %v4207, %v4309
        %v4311 = vpop.f32.mrf.mxu0
        %4312 = vmatprep.mubr.bf16.mxu0 0
        %4313 = vmatmul.mubr.bf16.gmra.mxu0 %v4157
        %v4314 = vpop.f32.mrf.mxu0
        %v4315 = vadd.f32 %v4207, %v4314
        %v4316 = vpop.f32.mrf.mxu0
        %v4317 = vpop.f32.mrf.mxu0
        %v4318 = vadd.f32 %v4207, %v4317
        %v4319 = vpop.f32.mrf.mxu0
        %4320 = vmatprep.mubr.bf16.mxu0 0
        %4321 = vmatmul.mubr.bf16.gmra.mxu0 %v4158
        %v4322 = vpop.f32.mrf.mxu0
        %v4323 = vadd.f32 %v4207, %v4322
        %v4324 = vpop.f32.mrf.mxu0
        %v4325 = vpop.f32.mrf.mxu0
        %v4326 = vadd.f32 %v4207, %v4325
        %v4327 = vpop.f32.mrf.mxu0
        %4328 = vmatprep.mubr.bf16.mxu0 0
        %4329 = vmatmul.mubr.bf16.gmra.mxu0 %v4159
        %v4330 = vpop.f32.mrf.mxu0
        %v4331 = vadd.f32 %v4207, %v4330
        %v4332 = vpop.f32.mrf.mxu0
        %v4333 = vpop.f32.mrf.mxu0
        %v4334 = vadd.f32 %v4207, %v4333
        %v4335 = vpop.f32.mrf.mxu0
        %4336 = vmatprep.mubr.bf16.mxu0 0
        %4337 = vmatmul.mubr.bf16.gmra.mxu0 %v4160
        %v4338 = vpop.f32.mrf.mxu0
        %v4339 = vadd.f32 %v4207, %v4338
        %v4340 = vpop.f32.mrf.mxu0
        %v4341 = vpop.f32.mrf.mxu0
        %v4342 = vadd.f32 %v4207, %v4341
        %v4343 = vpop.f32.mrf.mxu0
        %4344 = vmatprep.mubr.bf16.mxu0 0
        %4345 = vmatmul.mubr.bf16.gmra.mxu0 %v4161
        %v4346 = vpop.f32.mrf.mxu0
        %v4347 = vadd.f32 %v4207, %v4346
        %v4348 = vpop.f32.mrf.mxu0
        %v4349 = vpop.f32.mrf.mxu0
        %v4350 = vadd.f32 %v4207, %v4349
        %v4351 = vpop.f32.mrf.mxu0
        %4352 = vmatprep.mubr.bf16.mxu0 0
        %4353 = vmatmul.mubr.bf16.gmra.mxu0 %v4162
        %v4354 = vpop.f32.mrf.mxu0
        %v4355 = vadd.f32 %v4207, %v4354
        %v4356 = vpop.f32.mrf.mxu0
        %v4357 = vpop.f32.mrf.mxu0
        %v4358 = vadd.f32 %v4207, %v4357
        %v4359 = vpop.f32.mrf.mxu0
        %4360 = vmatprep.mubr.bf16.mxu0 0
        %4361 = vmatmul.mubr.bf16.gmra.mxu0 %v4163
        %v4362 = vpop.f32.mrf.mxu0
        %v4363 = vadd.f32 %v4207, %v4362
        %v4364 = vpop.f32.mrf.mxu0
        %v4365 = vpop.f32.mrf.mxu0
        %v4366 = vadd.f32 %v4207, %v4365
        %v4367 = vpop.f32.mrf.mxu0
        %4368 = vmatprep.mubr.bf16.mxu0 0
        %4369 = vmatmul.mubr.bf16.gmra.mxu0 %v4164
        %v4370 = vpop.f32.mrf.mxu0
        %v4371 = vadd.f32 %v4207, %v4370
        %v4372 = vpop.f32.mrf.mxu0
        %v4373 = vpop.f32.mrf.mxu0
        %v4374 = vadd.f32 %v4207, %v4373
        %v4375 = vpop.f32.mrf.mxu0
        %4376 = vmatprep.mubr.bf16.mxu0 0
        %4377 = vmatmul.mubr.bf16.gmra.mxu0 %v4165
        %v4378 = vpop.f32.mrf.mxu0
        %v4379 = vadd.f32 %v4207, %v4378
        %v4380 = vpop.f32.mrf.mxu0
        %v4381 = vpop.f32.mrf.mxu0
        %v4382 = vadd.f32 %v4207, %v4381
        %v4383 = vpop.f32.mrf.mxu0
        %4384 = vmatprep.mubr.bf16.mxu0 0
        %4385 = vmatmul.mubr.bf16.gmra.mxu0 %v4166
        %v4386 = vpop.f32.mrf.mxu0
        %v4387 = vadd.f32 %v4207, %v4386
        %v4388 = vpop.f32.mrf.mxu0
        %v4389 = vpop.f32.mrf.mxu0
        %v4390 = vadd.f32 %v4207, %v4389
        %v4391 = vpop.f32.mrf.mxu0
        %4392 = vmatprep.mubr.bf16.mxu0 0
        %4393 = vmatmul.mubr.bf16.gmra.mxu0 %v4167
        %v4394 = vpop.f32.mrf.mxu0
        %v4395 = vadd.f32 %v4207, %v4394
        %v4396 = vpop.f32.mrf.mxu0
        %v4397 = vpop.f32.mrf.mxu0
        %v4398 = vadd.f32 %v4207, %v4397
        %v4399 = vpop.f32.mrf.mxu0
        %4400 = vmatprep.mubr.bf16.mxu0 0
        %4401 = vmatmul.mubr.bf16.gmra.mxu0 %v4168
        %v4402 = vpop.f32.mrf.mxu0
        %v4403 = vadd.f32 %v4207, %v4402
        %v4404 = vpop.f32.mrf.mxu0
        %v4405 = vpop.f32.mrf.mxu0
        %v4406 = vadd.f32 %v4207, %v4405
        %v4407 = vpop.f32.mrf.mxu0
        %4408 = vmatprep.mubr.bf16.mxu0 0
        %4409 = vmatmul.mubr.bf16.gmra.mxu0 %v4169
        %v4410 = vpop.f32.mrf.mxu0
        %v4411 = vadd.f32 %v4207, %v4410
        %v4412 = vpop.f32.mrf.mxu0
        %v4413 = vpop.f32.mrf.mxu0
        %v4414 = vadd.f32 %v4207, %v4413
        %v4415 = vpop.f32.mrf.mxu0
        %4416 = vmatprep.mubr.bf16.mxu0 0
        %4417 = vmatmul.mubr.bf16.gmra.mxu0 %v4170
        %v4418 = vpop.f32.mrf.mxu0
        %v4419 = vadd.f32 %v4207, %v4418
        %v4420 = vpop.f32.mrf.mxu0
        %v4421 = vpop.f32.mrf.mxu0
        %v4422 = vadd.f32 %v4207, %v4421
        %v4423 = vpop.f32.mrf.mxu0
        %4424 = vmatprep.mubr.bf16.mxu0 0
        %4425 = vmatmul.mubr.bf16.gmra.mxu0 %v4171
        %v4426 = vpop.f32.mrf.mxu0
        %v4427 = vadd.f32 %v4207, %v4426
        %v4428 = vpop.f32.mrf.mxu0
        %v4429 = vpop.f32.mrf.mxu0
        %v4430 = vadd.f32 %v4207, %v4429
        %v4431 = vpop.f32.mrf.mxu0
        %4432 = vmatprep.mubr.bf16.mxu0 0
        %4433 = vmatmul.mubr.bf16.gmra.mxu0 %v4172
        %v4434 = vpop.f32.mrf.mxu0
        %v4435 = vadd.f32 %v4207, %v4434
        %v4436 = vpop.f32.mrf.mxu0
        %v4437 = vpop.f32.mrf.mxu0
        %v4438 = vadd.f32 %v4207, %v4437
        %v4439 = vpop.f32.mrf.mxu0
        %4440 = vmatprep.mubr.bf16.mxu0 0
        %4441 = vmatmul.mubr.bf16.gmra.mxu0 %v4173
        %v4442 = vpop.f32.mrf.mxu0
        %v4443 = vadd.f32 %v4207, %v4442
        %v4444 = vpop.f32.mrf.mxu0
        %v4445 = vpop.f32.mrf.mxu0
        %v4446 = vadd.f32 %v4207, %v4445
        %v4447 = vpop.f32.mrf.mxu0
        %4448 = vmatprep.mubr.bf16.mxu0 0
        %4449 = vmatmul.mubr.bf16.gmra.mxu0 %v4174
        %v4450 = vpop.f32.mrf.mxu0
        %v4451 = vadd.f32 %v4207, %v4450
        %v4452 = vpop.f32.mrf.mxu0
        %v4453 = vpop.f32.mrf.mxu0
        %v4454 = vadd.f32 %v4207, %v4453
        %v4455 = vpop.f32.mrf.mxu0
        %4456 = vmatprep.mubr.bf16.mxu0 0
        %4457 = vmatmul.mubr.bf16.gmra.mxu0 %v4175
        %v4458 = vpop.f32.mrf.mxu0
        %v4459 = vadd.f32 %v4207, %v4458
        %v4460 = vpop.f32.mrf.mxu0
        %v4461 = vpop.f32.mrf.mxu0
        %v4462 = vadd.f32 %v4207, %v4461
        %v4463 = vpop.f32.mrf.mxu0
        %4464 = vmatprep.mubr.bf16.mxu0 0
        %4465 = vmatmul.mubr.bf16.gmra.mxu0 %v4176
        %v4466 = vpop.f32.mrf.mxu0
        %v4467 = vadd.f32 %v4207, %v4466
        %v4468 = vpop.f32.mrf.mxu0
        %v4469 = vpop.f32.mrf.mxu0
        %v4470 = vadd.f32 %v4207, %v4469
        %v4471 = vpop.f32.mrf.mxu0
        %4472 = vmatprep.mubr.bf16.mxu0 0
        %4473 = vmatmul.mubr.bf16.gmra.mxu0 %v4177
        %v4474 = vpop.f32.mrf.mxu0
        %v4475 = vadd.f32 %v4207, %v4474
        %v4476 = vpop.f32.mrf.mxu0
        %v4477 = vpop.f32.mrf.mxu0
        %v4478 = vadd.f32 %v4207, %v4477
        %v4479 = vpop.f32.mrf.mxu0
        %4480 = vmatprep.mubr.bf16.mxu0 0
        %4481 = vmatmul.mubr.bf16.gmra.mxu0 %v4178
        %v4482 = vpop.f32.mrf.mxu0
        %v4483 = vadd.f32 %v4207, %v4482
        %v4484 = vpop.f32.mrf.mxu0
        %v4485 = vpop.f32.mrf.mxu0
        %v4486 = vadd.f32 %v4207, %v4485
        %v4487 = vpop.f32.mrf.mxu0
        %4488 = vmatprep.mubr.bf16.mxu0 0
        %4489 = vmatmul.mubr.bf16.gmra.mxu0 %v4179
        %v4490 = vpop.f32.mrf.mxu0
        %v4491 = vadd.f32 %v4207, %v4490
        %v4492 = vpop.f32.mrf.mxu0
        %v4493 = vpop.f32.mrf.mxu0
        %v4494 = vadd.f32 %v4207, %v4493
        %v4495 = vpop.f32.mrf.mxu0
        %4496 = vmatprep.mubr.bf16.mxu0 0
        %4497 = vmatmul.mubr.bf16.gmra.mxu0 %v4180
        %v4498 = vpop.f32.mrf.mxu0
        %v4499 = vadd.f32 %v4207, %v4498
        %v4500 = vpop.f32.mrf.mxu0
        %v4501 = vpop.f32.mrf.mxu0
        %v4502 = vadd.f32 %v4207, %v4501
        %v4503 = vpop.f32.mrf.mxu0
        %4504 = vmatprep.mubr.bf16.mxu0 0
        %4505 = vmatmul.mubr.bf16.gmra.mxu0 %v4181
        %v4506 = vpop.f32.mrf.mxu0
        %v4507 = vadd.f32 %v4207, %v4506
        %v4508 = vpop.f32.mrf.mxu0
        %v4509 = vpop.f32.mrf.mxu0
        %v4510 = vadd.f32 %v4207, %v4509
        %v4511 = vpop.f32.mrf.mxu0
        %4512 = vmatprep.mubr.bf16.mxu0 0
        %4513 = vmatmul.mubr.bf16.gmra.mxu0 %v4182
        %v4514 = vpop.f32.mrf.mxu0
        %v4515 = vadd.f32 %v4207, %v4514
        %v4516 = vpop.f32.mrf.mxu0
        %v4517 = vpop.f32.mrf.mxu0
        %v4518 = vadd.f32 %v4207, %v4517
        %v4519 = vpop.f32.mrf.mxu0
        %4520 = vmatprep.mubr.bf16.mxu0 0
        %4521 = vmatmul.mubr.bf16.gmra.mxu0 %v4183
        %v4522 = vpop.f32.mrf.mxu0
        %v4523 = vadd.f32 %v4207, %v4522
        %v4524 = vpop.f32.mrf.mxu0
        %v4525 = vpop.f32.mrf.mxu0
        %v4526 = vadd.f32 %v4207, %v4525
        %v4527 = vpop.f32.mrf.mxu0
        %4528 = vmatprep.mubr.bf16.mxu0 0
        %4529 = vmatmul.mubr.bf16.gmra.mxu0 %v4184
        %v4530 = vpop.f32.mrf.mxu0
        %v4531 = vadd.f32 %v4207, %v4530
        %v4532 = vpop.f32.mrf.mxu0
        %v4533 = vpop.f32.mrf.mxu0
        %v4534 = vadd.f32 %v4207, %v4533
        %v4535 = vpop.f32.mrf.mxu0
        %4536 = vmatprep.mubr.bf16.mxu0 0
        %4537 = vmatmul.mubr.bf16.gmra.mxu0 %v4185
        %v4538 = vpop.f32.mrf.mxu0
        %v4539 = vadd.f32 %v4207, %v4538
        %v4540 = vpop.f32.mrf.mxu0
        %v4541 = vpop.f32.mrf.mxu0
        %v4542 = vadd.f32 %v4207, %v4541
        %v4543 = vpop.f32.mrf.mxu0
        %4544 = vdwg.mxu0
        %v4545 = vmax.f32 %v4291, 0.0
        %v4546 = vmax.f32 %v4294, 0.0
        %v4547 = vmax.f32 %v4299, 0.0
        %v4548 = vmax.f32 %v4302, 0.0
        %v4549 = vmax.f32 %v4307, 0.0
        %v4550 = vmax.f32 %v4310, 0.0
        %v4551 = vmax.f32 %v4315, 0.0
        %v4552 = vmax.f32 %v4318, 0.0
        %v4553 = vmax.f32 %v4323, 0.0
        %v4554 = vmax.f32 %v4326, 0.0
        %v4555 = vmax.f32 %v4331, 0.0
        %v4556 = vmax.f32 %v4334, 0.0
        %v4557 = vmax.f32 %v4339, 0.0
        %v4558 = vmax.f32 %v4342, 0.0
        %v4559 = vmax.f32 %v4347, 0.0
        %v4560 = vmax.f32 %v4350, 0.0
        %v4561 = vmax.f32 %v4355, 0.0
        %v4562 = vmax.f32 %v4358, 0.0
        %v4563 = vmax.f32 %v4363, 0.0
        %v4564 = vmax.f32 %v4366, 0.0
        %v4565 = vmax.f32 %v4371, 0.0
        %v4566 = vmax.f32 %v4374, 0.0
        %v4567 = vmax.f32 %v4379, 0.0
        %v4568 = vmax.f32 %v4382, 0.0
        %v4569 = vmax.f32 %v4387, 0.0
        %v4570 = vmax.f32 %v4390, 0.0
        %v4571 = vmax.f32 %v4395, 0.0
        %v4572 = vmax.f32 %v4398, 0.0
        %v4573 = vmax.f32 %v4403, 0.0
        %v4574 = vmax.f32 %v4406, 0.0
        %v4575 = vmax.f32 %v4411, 0.0
        %v4576 = vmax.f32 %v4414, 0.0
        %v4577 = vmax.f32 %v4419, 0.0
        %v4578 = vmax.f32 %v4422, 0.0
        %v4579 = vmax.f32 %v4427, 0.0
        %v4580 = vmax.f32 %v4430, 0.0
        %v4581 = vmax.f32 %v4435, 0.0
        %v4582 = vmax.f32 %v4438, 0.0
        %v4583 = vmax.f32 %v4443, 0.0
        %v4584 = vmax.f32 %v4446, 0.0
        %v4585 = vmax.f32 %v4451, 0.0
        %v4586 = vmax.f32 %v4454, 0.0
        %v4587 = vmax.f32 %v4459, 0.0
        %v4588 = vmax.f32 %v4462, 0.0
        %v4589 = vmax.f32 %v4467, 0.0
        %v4590 = vmax.f32 %v4470, 0.0
        %v4591 = vmax.f32 %v4475, 0.0
        %v4592 = vmax.f32 %v4478, 0.0
        %v4593 = vmax.f32 %v4483, 0.0
        %v4594 = vmax.f32 %v4486, 0.0
        %v4595 = vmax.f32 %v4491, 0.0
        %v4596 = vmax.f32 %v4494, 0.0
        %v4597 = vmax.f32 %v4499, 0.0
        %v4598 = vmax.f32 %v4502, 0.0
        %v4599 = vmax.f32 %v4507, 0.0
        %v4600 = vmax.f32 %v4510, 0.0
        %v4601 = vmax.f32 %v4515, 0.0
        %v4602 = vmax.f32 %v4518, 0.0
        %v4603 = vmax.f32 %v4523, 0.0
        %v4604 = vmax.f32 %v4526, 0.0
        %v4605 = vmax.f32 %v4531, 0.0
        %v4606 = vmax.f32 %v4534, 0.0
        %v4607 = vmax.f32 %v4539, 0.0
        %v4608 = vmax.f32 %v4542, 0.0
        %v4609 = vpack.c.bf16 %v4546, %v4545
        %v4610 = vpack.c.bf16 %v4548, %v4547
        %v4611 = vpack.c.bf16 %v4550, %v4549
        %v4612 = vpack.c.bf16 %v4552, %v4551
        %v4613 = vpack.c.bf16 %v4554, %v4553
        %v4614 = vpack.c.bf16 %v4556, %v4555
        %v4615 = vpack.c.bf16 %v4558, %v4557
        %v4616 = vpack.c.bf16 %v4560, %v4559
        %v4617 = vpack.c.bf16 %v4562, %v4561
        %v4618 = vpack.c.bf16 %v4564, %v4563
        %v4619 = vpack.c.bf16 %v4566, %v4565
        %v4620 = vpack.c.bf16 %v4568, %v4567
        %v4621 = vpack.c.bf16 %v4570, %v4569
        %v4622 = vpack.c.bf16 %v4572, %v4571
        %v4623 = vpack.c.bf16 %v4574, %v4573
        %v4624 = vpack.c.bf16 %v4576, %v4575
        %v4625 = vpack.c.bf16 %v4578, %v4577
        %v4626 = vpack.c.bf16 %v4580, %v4579
        %v4627 = vpack.c.bf16 %v4582, %v4581
        %v4628 = vpack.c.bf16 %v4584, %v4583
        %v4629 = vpack.c.bf16 %v4586, %v4585
        %v4630 = vpack.c.bf16 %v4588, %v4587
        %v4631 = vpack.c.bf16 %v4590, %v4589
        %v4632 = vpack.c.bf16 %v4592, %v4591
        %v4633 = vpack.c.bf16 %v4594, %v4593
        %v4634 = vpack.c.bf16 %v4596, %v4595
        %v4635 = vpack.c.bf16 %v4598, %v4597
        %v4636 = vpack.c.bf16 %v4600, %v4599
        %v4637 = vpack.c.bf16 %v4602, %v4601
        %v4638 = vpack.c.bf16 %v4604, %v4603
        %v4639 = vpack.c.bf16 %v4606, %v4605
        %v4640 = vpack.c.bf16 %v4608, %v4607
        %v4641 = vld [vmem:[#allocation10] sm:$0xf]
        %v4642 = vld [vmem:[#allocation10 + $0x4] sm:$0xf]
        %v4643 = vld [vmem:[#allocation10 + $0x8] sm:$0xf]
        %v4644 = vld [vmem:[#allocation10 + $0xc] sm:$0xf]
        %v4645 = vld [vmem:[#allocation10 + $0x10] sm:$0xf]
        %v4646 = vld [vmem:[#allocation10 + $0x14] sm:$0xf]
        %v4647 = vld [vmem:[#allocation10 + $0x18] sm:$0xf]
        %v4648 = vld [vmem:[#allocation10 + $0x1c] sm:$0xf]
        %v4649 = vld [vmem:[#allocation10 + $0x20] sm:$0xf]
        %v4650 = vld [vmem:[#allocation10 + $0x24] sm:$0xf]
        %v4651 = vld [vmem:[#allocation10 + $0x28] sm:$0xf]
        %v4652 = vld [vmem:[#allocation10 + $0x2c] sm:$0xf]
        %v4653 = vld [vmem:[#allocation10 + $0x30] sm:$0xf]
        %v4654 = vld [vmem:[#allocation10 + $0x34] sm:$0xf]
        %v4655 = vld [vmem:[#allocation10 + $0x38] sm:$0xf]
        %v4656 = vld [vmem:[#allocation10 + $0x3c] sm:$0xf]
        %v4657 = vld [vmem:[%s5] sm:$0x1]
        %v4659 = vlaneseq
        %v4660 = vshrl.u32 %v4659, 7
        %v4661 = vsub.s32 0, %v4660
        %v4662 = vrot.slane %v4657, %v4661
        %v4680 = vunpack.c.l.b16 %v4641
        %v4681 = vunpack.c.l.b16 %v4642
        %v4682 = vunpack.c.l.b16 %v4643
        %v4683 = vunpack.c.l.b16 %v4644
        %v4684 = vunpack.c.l.b16 %v4645
        %v4685 = vunpack.c.l.b16 %v4646
        %v4686 = vunpack.c.l.b16 %v4647
        %v4687 = vunpack.c.l.b16 %v4648
        %v4688 = vunpack.c.l.b16 %v4649
        %v4689 = vunpack.c.l.b16 %v4650
        %v4690 = vunpack.c.l.b16 %v4651
        %v4691 = vunpack.c.l.b16 %v4652
        %v4692 = vunpack.c.l.b16 %v4653
        %v4693 = vunpack.c.l.b16 %v4654
        %v4694 = vunpack.c.l.b16 %v4655
        %v4695 = vunpack.c.l.b16 %v4656
        %v4696 = vpack.c.b16 %v4681, %v4680
        %v4697 = vpack.c.b16 %v4683, %v4682
        %v4698 = vpack.c.b16 %v4685, %v4684
        %v4699 = vpack.c.b16 %v4687, %v4686
        %v4700 = vpack.c.b16 %v4689, %v4688
        %v4701 = vpack.c.b16 %v4691, %v4690
        %v4702 = vpack.c.b16 %v4693, %v4692
        %v4703 = vpack.c.b16 %v4695, %v4694
        %4712 = vmatprep.subr.bf16.mxu0 0
        %4713 = vmatpush1.bf16.msra.mxu0 %v4703
        %4714 = vmatprep.subr.bf16.mxu0 0
        %4715 = vmatpush1.bf16.msra.mxu0 %v4702
        %4716 = vmatprep.subr.bf16.mxu0 0
        %4717 = vmatpush1.bf16.msra.mxu0 %v4701
        %4718 = vmatprep.subr.bf16.mxu0 0
        %4719 = vmatpush1.bf16.msra.mxu0 %v4700
        %4720 = vmatprep.subr.bf16.mxu0 0
        %4721 = vmatpush1.bf16.msra.mxu0 %v4699
        %4722 = vmatprep.subr.bf16.mxu0 0
        %4723 = vmatpush1.bf16.msra.mxu0 %v4698
        %4724 = vmatprep.subr.bf16.mxu0 0
        %4725 = vmatpush1.bf16.msra.mxu0 %v4697
        %4726 = vmatprep.subr.bf16.mxu0 0
        %4727 = vmatpush1.bf16.msra.mxu0 %v4696
        %4728 = vmatprep.subr.bf16.mxu0 0
        %4729 = vmatpush2.bf16.msra.mxu0 0
        %4730 = vmatprep.subr.bf16.mxu0 0
        %4731 = vmatpush2.bf16.msra.mxu0 0
        %4732 = vmatprep.subr.bf16.mxu0 0
        %4733 = vmatpush2.bf16.msra.mxu0 0
        %4734 = vmatprep.subr.bf16.mxu0 0
        %4735 = vmatpush2.bf16.msra.mxu0 0
        %4736 = vmatprep.subr.bf16.mxu0 0
        %4737 = vmatpush2.bf16.msra.mxu0 0
        %4738 = vmatprep.subr.bf16.mxu0 0
        %4739 = vmatpush2.bf16.msra.mxu0 0
        %4740 = vmatprep.subr.bf16.mxu0 0
        %4741 = vmatpush2.bf16.msra.mxu0 0
        %4742 = vmatprep.subr.bf16.mxu0 0
        %4743 = vmatpush2.bf16.msra.mxu0 0
        %4744 = vmatprep.mubr.bf16.mxu0 0
        %4745 = vmatmul.mubr.bf16.gmra.mxu0 %v4609
        %v4746 = vpop.f32.mrf.mxu0
        %v4747 = vadd.f32 %v4662, %v4746
        %v4748 = vpop.f32.mrf.mxu0
        %v4749 = vpop.f32.mrf.mxu0
        %v4750 = vadd.f32 %v4662, %v4749
        %v4751 = vpop.f32.mrf.mxu0
        %4752 = vmatprep.mubr.bf16.mxu0 0
        %4753 = vmatmul.mubr.bf16.gmra.mxu0 %v4610
        %v4754 = vpop.f32.mrf.mxu0
        %v4755 = vadd.f32 %v4662, %v4754
        %v4756 = vpop.f32.mrf.mxu0
        %v4757 = vpop.f32.mrf.mxu0
        %v4758 = vadd.f32 %v4662, %v4757
        %v4759 = vpop.f32.mrf.mxu0
        %4760 = vmatprep.mubr.bf16.mxu0 0
        %4761 = vmatmul.mubr.bf16.gmra.mxu0 %v4611
        %v4762 = vpop.f32.mrf.mxu0
        %v4763 = vadd.f32 %v4662, %v4762
        %v4764 = vpop.f32.mrf.mxu0
        %v4765 = vpop.f32.mrf.mxu0
        %v4766 = vadd.f32 %v4662, %v4765
        %v4767 = vpop.f32.mrf.mxu0
        %4768 = vmatprep.mubr.bf16.mxu0 0
        %4769 = vmatmul.mubr.bf16.gmra.mxu0 %v4612
        %v4770 = vpop.f32.mrf.mxu0
        %v4771 = vadd.f32 %v4662, %v4770
        %v4772 = vpop.f32.mrf.mxu0
        %v4773 = vpop.f32.mrf.mxu0
        %v4774 = vadd.f32 %v4662, %v4773
        %v4775 = vpop.f32.mrf.mxu0
        %4776 = vmatprep.mubr.bf16.mxu0 0
        %4777 = vmatmul.mubr.bf16.gmra.mxu0 %v4613
        %v4778 = vpop.f32.mrf.mxu0
        %v4779 = vadd.f32 %v4662, %v4778
        %v4780 = vpop.f32.mrf.mxu0
        %v4781 = vpop.f32.mrf.mxu0
        %v4782 = vadd.f32 %v4662, %v4781
        %v4783 = vpop.f32.mrf.mxu0
        %4784 = vmatprep.mubr.bf16.mxu0 0
        %4785 = vmatmul.mubr.bf16.gmra.mxu0 %v4614
        %v4786 = vpop.f32.mrf.mxu0
        %v4787 = vadd.f32 %v4662, %v4786
        %v4788 = vpop.f32.mrf.mxu0
        %v4789 = vpop.f32.mrf.mxu0
        %v4790 = vadd.f32 %v4662, %v4789
        %v4791 = vpop.f32.mrf.mxu0
        %4792 = vmatprep.mubr.bf16.mxu0 0
        %4793 = vmatmul.mubr.bf16.gmra.mxu0 %v4615
        %v4794 = vpop.f32.mrf.mxu0
        %v4795 = vadd.f32 %v4662, %v4794
        %v4796 = vpop.f32.mrf.mxu0
        %v4797 = vpop.f32.mrf.mxu0
        %v4798 = vadd.f32 %v4662, %v4797
        %v4799 = vpop.f32.mrf.mxu0
        %4800 = vmatprep.mubr.bf16.mxu0 0
        %4801 = vmatmul.mubr.bf16.gmra.mxu0 %v4616
        %v4802 = vpop.f32.mrf.mxu0
        %v4803 = vadd.f32 %v4662, %v4802
        %v4804 = vpop.f32.mrf.mxu0
        %v4805 = vpop.f32.mrf.mxu0
        %v4806 = vadd.f32 %v4662, %v4805
        %v4807 = vpop.f32.mrf.mxu0
        %4808 = vmatprep.mubr.bf16.mxu0 0
        %4809 = vmatmul.mubr.bf16.gmra.mxu0 %v4617
        %v4810 = vpop.f32.mrf.mxu0
        %v4811 = vadd.f32 %v4662, %v4810
        %v4812 = vpop.f32.mrf.mxu0
        %v4813 = vpop.f32.mrf.mxu0
        %v4814 = vadd.f32 %v4662, %v4813
        %v4815 = vpop.f32.mrf.mxu0
        %4816 = vmatprep.mubr.bf16.mxu0 0
        %4817 = vmatmul.mubr.bf16.gmra.mxu0 %v4618
        %v4818 = vpop.f32.mrf.mxu0
        %v4819 = vadd.f32 %v4662, %v4818
        %v4820 = vpop.f32.mrf.mxu0
        %v4821 = vpop.f32.mrf.mxu0
        %v4822 = vadd.f32 %v4662, %v4821
        %v4823 = vpop.f32.mrf.mxu0
        %4824 = vmatprep.mubr.bf16.mxu0 0
        %4825 = vmatmul.mubr.bf16.gmra.mxu0 %v4619
        %v4826 = vpop.f32.mrf.mxu0
        %v4827 = vadd.f32 %v4662, %v4826
        %v4828 = vpop.f32.mrf.mxu0
        %v4829 = vpop.f32.mrf.mxu0
        %v4830 = vadd.f32 %v4662, %v4829
        %v4831 = vpop.f32.mrf.mxu0
        %4832 = vmatprep.mubr.bf16.mxu0 0
        %4833 = vmatmul.mubr.bf16.gmra.mxu0 %v4620
        %v4834 = vpop.f32.mrf.mxu0
        %v4835 = vadd.f32 %v4662, %v4834
        %v4836 = vpop.f32.mrf.mxu0
        %v4837 = vpop.f32.mrf.mxu0
        %v4838 = vadd.f32 %v4662, %v4837
        %v4839 = vpop.f32.mrf.mxu0
        %4840 = vmatprep.mubr.bf16.mxu0 0
        %4841 = vmatmul.mubr.bf16.gmra.mxu0 %v4621
        %v4842 = vpop.f32.mrf.mxu0
        %v4843 = vadd.f32 %v4662, %v4842
        %v4844 = vpop.f32.mrf.mxu0
        %v4845 = vpop.f32.mrf.mxu0
        %v4846 = vadd.f32 %v4662, %v4845
        %v4847 = vpop.f32.mrf.mxu0
        %4848 = vmatprep.mubr.bf16.mxu0 0
        %4849 = vmatmul.mubr.bf16.gmra.mxu0 %v4622
        %v4850 = vpop.f32.mrf.mxu0
        %v4851 = vadd.f32 %v4662, %v4850
        %v4852 = vpop.f32.mrf.mxu0
        %v4853 = vpop.f32.mrf.mxu0
        %v4854 = vadd.f32 %v4662, %v4853
        %v4855 = vpop.f32.mrf.mxu0
        %4856 = vmatprep.mubr.bf16.mxu0 0
        %4857 = vmatmul.mubr.bf16.gmra.mxu0 %v4623
        %v4858 = vpop.f32.mrf.mxu0
        %v4859 = vadd.f32 %v4662, %v4858
        %v4860 = vpop.f32.mrf.mxu0
        %v4861 = vpop.f32.mrf.mxu0
        %v4862 = vadd.f32 %v4662, %v4861
        %v4863 = vpop.f32.mrf.mxu0
        %4864 = vmatprep.mubr.bf16.mxu0 0
        %4865 = vmatmul.mubr.bf16.gmra.mxu0 %v4624
        %v4866 = vpop.f32.mrf.mxu0
        %v4867 = vadd.f32 %v4662, %v4866
        %v4868 = vpop.f32.mrf.mxu0
        %v4869 = vpop.f32.mrf.mxu0
        %v4870 = vadd.f32 %v4662, %v4869
        %v4871 = vpop.f32.mrf.mxu0
        %4872 = vmatprep.mubr.bf16.mxu0 0
        %4873 = vmatmul.mubr.bf16.gmra.mxu0 %v4625
        %v4874 = vpop.f32.mrf.mxu0
        %v4875 = vadd.f32 %v4662, %v4874
        %v4876 = vpop.f32.mrf.mxu0
        %v4877 = vpop.f32.mrf.mxu0
        %v4878 = vadd.f32 %v4662, %v4877
        %v4879 = vpop.f32.mrf.mxu0
        %4880 = vmatprep.mubr.bf16.mxu0 0
        %4881 = vmatmul.mubr.bf16.gmra.mxu0 %v4626
        %v4882 = vpop.f32.mrf.mxu0
        %v4883 = vadd.f32 %v4662, %v4882
        %v4884 = vpop.f32.mrf.mxu0
        %v4885 = vpop.f32.mrf.mxu0
        %v4886 = vadd.f32 %v4662, %v4885
        %v4887 = vpop.f32.mrf.mxu0
        %4888 = vmatprep.mubr.bf16.mxu0 0
        %4889 = vmatmul.mubr.bf16.gmra.mxu0 %v4627
        %v4890 = vpop.f32.mrf.mxu0
        %v4891 = vadd.f32 %v4662, %v4890
        %v4892 = vpop.f32.mrf.mxu0
        %v4893 = vpop.f32.mrf.mxu0
        %v4894 = vadd.f32 %v4662, %v4893
        %v4895 = vpop.f32.mrf.mxu0
        %4896 = vmatprep.mubr.bf16.mxu0 0
        %4897 = vmatmul.mubr.bf16.gmra.mxu0 %v4628
        %v4898 = vpop.f32.mrf.mxu0
        %v4899 = vadd.f32 %v4662, %v4898
        %v4900 = vpop.f32.mrf.mxu0
        %v4901 = vpop.f32.mrf.mxu0
        %v4902 = vadd.f32 %v4662, %v4901
        %v4903 = vpop.f32.mrf.mxu0
        %4904 = vmatprep.mubr.bf16.mxu0 0
        %4905 = vmatmul.mubr.bf16.gmra.mxu0 %v4629
        %v4906 = vpop.f32.mrf.mxu0
        %v4907 = vadd.f32 %v4662, %v4906
        %v4908 = vpop.f32.mrf.mxu0
        %v4909 = vpop.f32.mrf.mxu0
        %v4910 = vadd.f32 %v4662, %v4909
        %v4911 = vpop.f32.mrf.mxu0
        %4912 = vmatprep.mubr.bf16.mxu0 0
        %4913 = vmatmul.mubr.bf16.gmra.mxu0 %v4630
        %v4914 = vpop.f32.mrf.mxu0
        %v4915 = vadd.f32 %v4662, %v4914
        %v4916 = vpop.f32.mrf.mxu0
        %v4917 = vpop.f32.mrf.mxu0
        %v4918 = vadd.f32 %v4662, %v4917
        %v4919 = vpop.f32.mrf.mxu0
        %4920 = vmatprep.mubr.bf16.mxu0 0
        %4921 = vmatmul.mubr.bf16.gmra.mxu0 %v4631
        %v4922 = vpop.f32.mrf.mxu0
        %v4923 = vadd.f32 %v4662, %v4922
        %v4924 = vpop.f32.mrf.mxu0
        %v4925 = vpop.f32.mrf.mxu0
        %v4926 = vadd.f32 %v4662, %v4925
        %v4927 = vpop.f32.mrf.mxu0
        %4928 = vmatprep.mubr.bf16.mxu0 0
        %4929 = vmatmul.mubr.bf16.gmra.mxu0 %v4632
        %v4930 = vpop.f32.mrf.mxu0
        %v4931 = vadd.f32 %v4662, %v4930
        %v4932 = vpop.f32.mrf.mxu0
        %v4933 = vpop.f32.mrf.mxu0
        %v4934 = vadd.f32 %v4662, %v4933
        %v4935 = vpop.f32.mrf.mxu0
        %4936 = vmatprep.mubr.bf16.mxu0 0
        %4937 = vmatmul.mubr.bf16.gmra.mxu0 %v4633
        %v4938 = vpop.f32.mrf.mxu0
        %v4939 = vadd.f32 %v4662, %v4938
        %v4940 = vpop.f32.mrf.mxu0
        %v4941 = vpop.f32.mrf.mxu0
        %v4942 = vadd.f32 %v4662, %v4941
        %v4943 = vpop.f32.mrf.mxu0
        %4944 = vmatprep.mubr.bf16.mxu0 0
        %4945 = vmatmul.mubr.bf16.gmra.mxu0 %v4634
        %v4946 = vpop.f32.mrf.mxu0
        %v4947 = vadd.f32 %v4662, %v4946
        %v4948 = vpop.f32.mrf.mxu0
        %v4949 = vpop.f32.mrf.mxu0
        %v4950 = vadd.f32 %v4662, %v4949
        %v4951 = vpop.f32.mrf.mxu0
        %4952 = vmatprep.mubr.bf16.mxu0 0
        %4953 = vmatmul.mubr.bf16.gmra.mxu0 %v4635
        %v4954 = vpop.f32.mrf.mxu0
        %v4955 = vadd.f32 %v4662, %v4954
        %v4956 = vpop.f32.mrf.mxu0
        %v4957 = vpop.f32.mrf.mxu0
        %v4958 = vadd.f32 %v4662, %v4957
        %v4959 = vpop.f32.mrf.mxu0
        %4960 = vmatprep.mubr.bf16.mxu0 0
        %4961 = vmatmul.mubr.bf16.gmra.mxu0 %v4636
        %v4962 = vpop.f32.mrf.mxu0
        %v4963 = vadd.f32 %v4662, %v4962
        %v4964 = vpop.f32.mrf.mxu0
        %v4965 = vpop.f32.mrf.mxu0
        %v4966 = vadd.f32 %v4662, %v4965
        %v4967 = vpop.f32.mrf.mxu0
        %4968 = vmatprep.mubr.bf16.mxu0 0
        %4969 = vmatmul.mubr.bf16.gmra.mxu0 %v4637
        %v4970 = vpop.f32.mrf.mxu0
        %v4971 = vadd.f32 %v4662, %v4970
        %v4972 = vpop.f32.mrf.mxu0
        %v4973 = vpop.f32.mrf.mxu0
        %v4974 = vadd.f32 %v4662, %v4973
        %v4975 = vpop.f32.mrf.mxu0
        %4976 = vmatprep.mubr.bf16.mxu0 0
        %4977 = vmatmul.mubr.bf16.gmra.mxu0 %v4638
        %v4978 = vpop.f32.mrf.mxu0
        %v4979 = vadd.f32 %v4662, %v4978
        %v4980 = vpop.f32.mrf.mxu0
        %v4981 = vpop.f32.mrf.mxu0
        %v4982 = vadd.f32 %v4662, %v4981
        %v4983 = vpop.f32.mrf.mxu0
        %4984 = vmatprep.mubr.bf16.mxu0 0
        %4985 = vmatmul.mubr.bf16.gmra.mxu0 %v4639
        %v4986 = vpop.f32.mrf.mxu0
        %v4987 = vadd.f32 %v4662, %v4986
        %v4988 = vpop.f32.mrf.mxu0
        %v4989 = vpop.f32.mrf.mxu0
        %v4990 = vadd.f32 %v4662, %v4989
        %v4991 = vpop.f32.mrf.mxu0
        %4992 = vmatprep.mubr.bf16.mxu0 0
        %4993 = vmatmul.mubr.bf16.gmra.mxu0 %v4640
        %v4994 = vpop.f32.mrf.mxu0
        %v4995 = vadd.f32 %v4662, %v4994
        %v4996 = vpop.f32.mrf.mxu0
        %v4997 = vpop.f32.mrf.mxu0
        %v4998 = vadd.f32 %v4662, %v4997
        %v4999 = vpop.f32.mrf.mxu0
        %5000 = vdwg.mxu0
        %v5001 = vpack.c.bf16 %v4750, %v4747
        %v5002 = vpack.c.bf16 %v4758, %v4755
        %v5003 = vpack.c.bf16 %v4766, %v4763
        %v5004 = vpack.c.bf16 %v4774, %v4771
        %v5005 = vpack.c.bf16 %v4782, %v4779
        %v5006 = vpack.c.bf16 %v4790, %v4787
        %v5007 = vpack.c.bf16 %v4798, %v4795
        %v5008 = vpack.c.bf16 %v4806, %v4803
        %v5009 = vpack.c.bf16 %v4814, %v4811
        %v5010 = vpack.c.bf16 %v4822, %v4819
        %v5011 = vpack.c.bf16 %v4830, %v4827
        %v5012 = vpack.c.bf16 %v4838, %v4835
        %v5013 = vpack.c.bf16 %v4846, %v4843
        %v5014 = vpack.c.bf16 %v4854, %v4851
        %v5015 = vpack.c.bf16 %v4862, %v4859
        %v5016 = vpack.c.bf16 %v4870, %v4867
        %v5017 = vpack.c.bf16 %v4878, %v4875
        %v5018 = vpack.c.bf16 %v4886, %v4883
        %v5019 = vpack.c.bf16 %v4894, %v4891
        %v5020 = vpack.c.bf16 %v4902, %v4899
        %v5021 = vpack.c.bf16 %v4910, %v4907
        %v5022 = vpack.c.bf16 %v4918, %v4915
        %v5023 = vpack.c.bf16 %v4926, %v4923
        %v5024 = vpack.c.bf16 %v4934, %v4931
        %v5025 = vpack.c.bf16 %v4942, %v4939
        %v5026 = vpack.c.bf16 %v4950, %v4947
        %v5027 = vpack.c.bf16 %v4958, %v4955
        %v5028 = vpack.c.bf16 %v4966, %v4963
        %v5029 = vpack.c.bf16 %v4974, %v4971
        %v5030 = vpack.c.bf16 %v4982, %v4979
        %v5031 = vpack.c.bf16 %v4990, %v4987
        %v5032 = vpack.c.bf16 %v4998, %v4995
        %v5065 = vunpack.c.l.b16 %v5001
        %v5066 = vunpack.c.h.b16 %v5001
        %v5067 = vunpack.c.l.b16 %v5002
        %v5068 = vunpack.c.h.b16 %v5002
        %v5069 = vunpack.c.l.b16 %v5003
        %v5070 = vunpack.c.h.b16 %v5003
        %v5071 = vunpack.c.l.b16 %v5004
        %v5072 = vunpack.c.h.b16 %v5004
        %v5073 = vunpack.c.l.b16 %v5005
        %v5074 = vunpack.c.h.b16 %v5005
        %v5075 = vunpack.c.l.b16 %v5006
        %v5076 = vunpack.c.h.b16 %v5006
        %v5077 = vunpack.c.l.b16 %v5007
        %v5078 = vunpack.c.h.b16 %v5007
        %v5079 = vunpack.c.l.b16 %v5008
        %v5080 = vunpack.c.h.b16 %v5008
        %v5081 = vunpack.c.l.b16 %v5009
        %v5082 = vunpack.c.h.b16 %v5009
        %v5083 = vunpack.c.l.b16 %v5010
        %v5084 = vunpack.c.h.b16 %v5010
        %v5085 = vunpack.c.l.b16 %v5011
        %v5086 = vunpack.c.h.b16 %v5011
        %v5087 = vunpack.c.l.b16 %v5012
        %v5088 = vunpack.c.h.b16 %v5012
        %v5089 = vunpack.c.l.b16 %v5013
        %v5090 = vunpack.c.h.b16 %v5013
        %v5091 = vunpack.c.l.b16 %v5014
        %v5092 = vunpack.c.h.b16 %v5014
        %v5093 = vunpack.c.l.b16 %v5015
        %v5094 = vunpack.c.h.b16 %v5015
        %v5095 = vunpack.c.l.b16 %v5016
        %v5096 = vunpack.c.h.b16 %v5016
        %v5097 = vunpack.c.l.b16 %v5017
        %v5098 = vunpack.c.h.b16 %v5017
        %v5099 = vunpack.c.l.b16 %v5018
        %v5100 = vunpack.c.h.b16 %v5018
        %v5101 = vunpack.c.l.b16 %v5019
        %v5102 = vunpack.c.h.b16 %v5019
        %v5103 = vunpack.c.l.b16 %v5020
        %v5104 = vunpack.c.h.b16 %v5020
        %v5105 = vunpack.c.l.b16 %v5021
        %v5106 = vunpack.c.h.b16 %v5021
        %v5107 = vunpack.c.l.b16 %v5022
        %v5108 = vunpack.c.h.b16 %v5022
        %v5109 = vunpack.c.l.b16 %v5023
        %v5110 = vunpack.c.h.b16 %v5023
        %v5111 = vunpack.c.l.b16 %v5024
        %v5112 = vunpack.c.h.b16 %v5024
        %v5113 = vunpack.c.l.b16 %v5025
        %v5114 = vunpack.c.h.b16 %v5025
        %v5115 = vunpack.c.l.b16 %v5026
        %v5116 = vunpack.c.h.b16 %v5026
        %v5117 = vunpack.c.l.b16 %v5027
        %v5118 = vunpack.c.h.b16 %v5027
        %v5119 = vunpack.c.l.b16 %v5028
        %v5120 = vunpack.c.h.b16 %v5028
        %v5121 = vunpack.c.l.b16 %v5029
        %v5122 = vunpack.c.h.b16 %v5029
        %v5123 = vunpack.c.l.b16 %v5030
        %v5124 = vunpack.c.h.b16 %v5030
        %v5125 = vunpack.c.l.b16 %v5031
        %v5126 = vunpack.c.h.b16 %v5031
        %v5127 = vunpack.c.l.b16 %v5032
        %v5128 = vunpack.c.h.b16 %v5032
        %v5129 = vpack.c.b16 %v5065, %v5065
        %v5130 = vpack.c.b16 %v5066, %v5066
        %v5131 = vpack.c.b16 %v5067, %v5067
        %v5132 = vpack.c.b16 %v5068, %v5068
        %v5133 = vpack.c.b16 %v5069, %v5069
        %v5134 = vpack.c.b16 %v5070, %v5070
        %v5135 = vpack.c.b16 %v5071, %v5071
        %v5136 = vpack.c.b16 %v5072, %v5072
        %v5137 = vpack.c.b16 %v5073, %v5073
        %v5138 = vpack.c.b16 %v5074, %v5074
        %v5139 = vpack.c.b16 %v5075, %v5075
        %v5140 = vpack.c.b16 %v5076, %v5076
        %v5141 = vpack.c.b16 %v5077, %v5077
        %v5142 = vpack.c.b16 %v5078, %v5078
        %v5143 = vpack.c.b16 %v5079, %v5079
        %v5144 = vpack.c.b16 %v5080, %v5080
        %v5145 = vpack.c.b16 %v5081, %v5081
        %v5146 = vpack.c.b16 %v5082, %v5082
        %v5147 = vpack.c.b16 %v5083, %v5083
        %v5148 = vpack.c.b16 %v5084, %v5084
        %v5149 = vpack.c.b16 %v5085, %v5085
        %v5150 = vpack.c.b16 %v5086, %v5086
        %v5151 = vpack.c.b16 %v5087, %v5087
        %v5152 = vpack.c.b16 %v5088, %v5088
        %v5153 = vpack.c.b16 %v5089, %v5089
        %v5154 = vpack.c.b16 %v5090, %v5090
        %v5155 = vpack.c.b16 %v5091, %v5091
        %v5156 = vpack.c.b16 %v5092, %v5092
        %v5157 = vpack.c.b16 %v5093, %v5093
        %v5158 = vpack.c.b16 %v5094, %v5094
        %v5159 = vpack.c.b16 %v5095, %v5095
        %v5160 = vpack.c.b16 %v5096, %v5096
        %v5161 = vpack.c.b16 %v5097, %v5097
        %v5162 = vpack.c.b16 %v5098, %v5098
        %v5163 = vpack.c.b16 %v5099, %v5099
        %v5164 = vpack.c.b16 %v5100, %v5100
        %v5165 = vpack.c.b16 %v5101, %v5101
        %v5166 = vpack.c.b16 %v5102, %v5102
        %v5167 = vpack.c.b16 %v5103, %v5103
        %v5168 = vpack.c.b16 %v5104, %v5104
        %v5169 = vpack.c.b16 %v5105, %v5105
        %v5170 = vpack.c.b16 %v5106, %v5106
        %v5171 = vpack.c.b16 %v5107, %v5107
        %v5172 = vpack.c.b16 %v5108, %v5108
        %v5173 = vpack.c.b16 %v5109, %v5109
        %v5174 = vpack.c.b16 %v5110, %v5110
        %v5175 = vpack.c.b16 %v5111, %v5111
        %v5176 = vpack.c.b16 %v5112, %v5112
        %v5177 = vpack.c.b16 %v5113, %v5113
        %v5178 = vpack.c.b16 %v5114, %v5114
        %v5179 = vpack.c.b16 %v5115, %v5115
        %v5180 = vpack.c.b16 %v5116, %v5116
        %v5181 = vpack.c.b16 %v5117, %v5117
        %v5182 = vpack.c.b16 %v5118, %v5118
        %v5183 = vpack.c.b16 %v5119, %v5119
        %v5184 = vpack.c.b16 %v5120, %v5120
        %v5185 = vpack.c.b16 %v5121, %v5121
        %v5186 = vpack.c.b16 %v5122, %v5122
        %v5187 = vpack.c.b16 %v5123, %v5123
        %v5188 = vpack.c.b16 %v5124, %v5124
        %v5189 = vpack.c.b16 %v5125, %v5125
        %v5190 = vpack.c.b16 %v5126, %v5126
        %v5191 = vpack.c.b16 %v5127, %v5127
        %v5192 = vpack.c.b16 %v5128, %v5128
        %5257 = vst [vmem:[%s325] sm:$0xf] %v5129
        %5258 = vst [vmem:[%s325 + $0x4] sm:$0xf] %v5130
        %5259 = vst [vmem:[%s325 + $0x8] sm:$0xf] %v5131
        %5260 = vst [vmem:[%s325 + $0xc] sm:$0xf] %v5132
        %5261 = vst [vmem:[%s325 + $0x10] sm:$0xf] %v5133
        %5262 = vst [vmem:[%s325 + $0x14] sm:$0xf] %v5134
        %5263 = vst [vmem:[%s325 + $0x18] sm:$0xf] %v5135
        %5264 = vst [vmem:[%s325 + $0x1c] sm:$0xf] %v5136
        %5265 = vst [vmem:[%s325 + $0x20] sm:$0xf] %v5137
        %5266 = vst [vmem:[%s325 + $0x24] sm:$0xf] %v5138
        %5267 = vst [vmem:[%s325 + $0x28] sm:$0xf] %v5139
        %5268 = vst [vmem:[%s325 + $0x2c] sm:$0xf] %v5140
        %5269 = vst [vmem:[%s325 + $0x30] sm:$0xf] %v5141
        %5270 = vst [vmem:[%s325 + $0x34] sm:$0xf] %v5142
        %5271 = vst [vmem:[%s325 + $0x38] sm:$0xf] %v5143
        %5272 = vst [vmem:[%s325 + $0x3c] sm:$0xf] %v5144
        %5273 = vst [vmem:[%s325 + $0x40] sm:$0xf] %v5145
        %5274 = vst [vmem:[%s325 + $0x44] sm:$0xf] %v5146
        %5275 = vst [vmem:[%s325 + $0x48] sm:$0xf] %v5147
        %5276 = vst [vmem:[%s325 + $0x4c] sm:$0xf] %v5148
        %5277 = vst [vmem:[%s325 + $0x50] sm:$0xf] %v5149
        %5278 = vst [vmem:[%s325 + $0x54] sm:$0xf] %v5150
        %5279 = vst [vmem:[%s325 + $0x58] sm:$0xf] %v5151
        %5280 = vst [vmem:[%s325 + $0x5c] sm:$0xf] %v5152
        %5281 = vst [vmem:[%s325 + $0x60] sm:$0xf] %v5153
        %5282 = vst [vmem:[%s325 + $0x64] sm:$0xf] %v5154
        %5283 = vst [vmem:[%s325 + $0x68] sm:$0xf] %v5155
        %5284 = vst [vmem:[%s325 + $0x6c] sm:$0xf] %v5156
        %5285 = vst [vmem:[%s325 + $0x70] sm:$0xf] %v5157
        %5286 = vst [vmem:[%s325 + $0x74] sm:$0xf] %v5158
        %5287 = vst [vmem:[%s325 + $0x78] sm:$0xf] %v5159
        %5288 = vst [vmem:[%s325 + $0x7c] sm:$0xf] %v5160
        %5289 = vst [vmem:[%s325 + $0x80] sm:$0xf] %v5161
        %5290 = vst [vmem:[%s325 + $0x84] sm:$0xf] %v5162
        %5291 = vst [vmem:[%s325 + $0x88] sm:$0xf] %v5163
        %5292 = vst [vmem:[%s325 + $0x8c] sm:$0xf] %v5164
        %5293 = vst [vmem:[%s325 + $0x90] sm:$0xf] %v5165
        %5294 = vst [vmem:[%s325 + $0x94] sm:$0xf] %v5166
        %5295 = vst [vmem:[%s325 + $0x98] sm:$0xf] %v5167
        %5296 = vst [vmem:[%s325 + $0x9c] sm:$0xf] %v5168
        %5297 = vst [vmem:[%s325 + $0xa0] sm:$0xf] %v5169
        %5298 = vst [vmem:[%s325 + $0xa4] sm:$0xf] %v5170
        %5299 = vst [vmem:[%s325 + $0xa8] sm:$0xf] %v5171
        %5300 = vst [vmem:[%s325 + $0xac] sm:$0xf] %v5172
        %5301 = vst [vmem:[%s325 + $0xb0] sm:$0xf] %v5173
        %5302 = vst [vmem:[%s325 + $0xb4] sm:$0xf] %v5174
        %5303 = vst [vmem:[%s325 + $0xb8] sm:$0xf] %v5175
        %5304 = vst [vmem:[%s325 + $0xbc] sm:$0xf] %v5176
        %5305 = vst [vmem:[%s325 + $0xc0] sm:$0xf] %v5177
        %5306 = vst [vmem:[%s325 + $0xc4] sm:$0xf] %v5178
        %5307 = vst [vmem:[%s325 + $0xc8] sm:$0xf] %v5179
        %5308 = vst [vmem:[%s325 + $0xcc] sm:$0xf] %v5180
        %5309 = vst [vmem:[%s325 + $0xd0] sm:$0xf] %v5181
        %5310 = vst [vmem:[%s325 + $0xd4] sm:$0xf] %v5182
        %5311 = vst [vmem:[%s325 + $0xd8] sm:$0xf] %v5183
        %5312 = vst [vmem:[%s325 + $0xdc] sm:$0xf] %v5184
        %5313 = vst [vmem:[%s325 + $0xe0] sm:$0xf] %v5185
        %5314 = vst [vmem:[%s325 + $0xe4] sm:$0xf] %v5186
        %5315 = vst [vmem:[%s325 + $0xe8] sm:$0xf] %v5187
        %5316 = vst [vmem:[%s325 + $0xec] sm:$0xf] %v5188
        %5317 = vst [vmem:[%s325 + $0xf0] sm:$0xf] %v5189
        %5318 = vst [vmem:[%s325 + $0xf4] sm:$0xf] %v5190
        %5319 = vst [vmem:[%s325 + $0xf8] sm:$0xf] %v5191
        %5320 = vst [vmem:[%s325 + $0xfc] sm:$0xf] %v5192
        %s5321 = sand.u32 %s164, 1
        %s5322 = scalar_lea.sflag [#allocation4], %s5321
        %s5323 = sand.u32 %s164, 1
        %s5324 = smul.addr %s5323, 256
        %s5325 = scalar_lea.vmem [#allocation11], %s5324
        // Predicated region
        $region65: #{tpu_custom_call.1} parent=43 // pred_check
          %p5326 = pneg %p174
        $region66: #{tpu_custom_call.1} parent=43 // pred_check_branch
          %5328 = sbr.rel (%p5326) target = $region68
        $region67: #{tpu_custom_call.1} parent=43 // pred_region
          %s5329 = smul.u32 64, %s25
          %s5331 = ssub.s32 4096, 4096
          %5332 = vsyncadd %s5322, %s5331
          %s5333 = smul.addr %s5329, 64
          %s5334 = scalar_lea.hbm %s6, %s5333
          %s5335 = sshll.u32 %s5325, 4
          %s5336 = int_to_ptr.vmem [resolvable:$true] %s5335
          %5341 = dma.vmem_to_hbm [thread:$0]  %s5336, 4096, %s5334, %s5322, 64, 64, 4
        $region68: #{tpu_custom_call.1} parent=43 // pred_fallthru
          _
      $region44: #{tpu_custom_call.1} parent=5 // pred_fallthru
        _
      %p5342 = scmp.le.s32.totalorder 2, %s20
      // Predicated region
      $region69: #{tpu_custom_call.1} parent=5 // pred_check
        %p5343 = pneg %p5342
      $region70: #{tpu_custom_call.1} parent=5 // pred_check_branch
        %5345 = sbr.rel (%p5343) target = $region72
      $region71: #{tpu_custom_call.1} parent=5 // pred_region
        %s5346 = ssub.s32 %s20, 2
        // Predicated region
        $region73: #{tpu_custom_call.1} parent=71 // pred_check
          %p5347 = pneg %p180
        $region74: #{tpu_custom_call.1} parent=71 // pred_check_branch
          %5349 = sbr.rel (%p5347) target = $region76
        $region75: #{tpu_custom_call.1} parent=71 // pred_region
          %s5350 = sand.u32 %s165, 1
          %s5351 = scalar_lea.sflag [#allocation4], %s5350
          %s5352 = sand.u32 %s165, 1
          %s5353 = smul.addr %s5352, 256
          %s5354 = scalar_lea.vmem [#allocation11], %s5353
          %5355 = dma.done %s5351, 4096
        $region76: #{tpu_custom_call.1} parent=71 // pred_fallthru
          _
      $region72: #{tpu_custom_call.1} parent=5 // pred_fallthru
        _
    $region6: #{tpu_custom_call.1} parent=1 // loop_footer
      %s24 = sadd.s32 1, %s20
    $region7: #{tpu_custom_call.1} parent=1 // loop_footer_branch
      %19 = sbr.rel target = $region3
    $region8: #{tpu_custom_call.1} parent=1 // loop_exit
      _
    %5356 = vsyncpa [#allocation3], 1
    %s5357 = scalar_lea.sflag [#allocation3], 1
    %5358 = vsyncpa %s5357, 1
    %5359 = vsyncpa [#allocation6], 1
    %5360 = vsyncpa [#allocation9], 1
    %5361 = vsyncpa [#allocation4], 1
    %s5362 = scalar_lea.sflag [#allocation4], 1
    %5363 = vsyncpa %s5362, 1

</llo_original>
